<compile_context>
chip_gen: v7x
topology: tpu7x:2x2x1
jax: 0.10.0
libtpu: 0.0.40
codegen_flags: <defaults>
</compile_context>

<pallas_src>
import functools

import jax
import jax.numpy as jnp
from jax import lax
from jax.experimental import pallas as pl
from jax.experimental.pallas import tpu as pltpu

EPS = 1e-5


# ------------------------------ fused kernel --------------------------------

def _shift_lanes(y, delta, M):
    """out[:, m] = y[:, m + delta]; zero where m + delta falls outside [0, M)."""
    C = y.shape[0]
    if delta == 0:
        return y
    if delta > 0:
        return jnp.concatenate(
            [y[:, delta:], jnp.zeros((C, delta), y.dtype)], axis=1)
    return jnp.concatenate(
        [jnp.zeros((C, -delta), y.dtype), y[:, :M + delta]], axis=1)


def _se_resblock_kernel(D, H, W, N,
                        x_ref, w1_ref, b1_ref, g1_ref, bt1_ref,
                        w2_ref, b2_ref, g2_ref, bt2_ref,
                        w3_ref, b3_ref,
                        fw1_ref, fb1_ref, fw2_ref, fb2_ref,
                        g_ref, bt_ref, mask_ref, o_ref):
    C, M = o_ref.shape
    S = D * H * W

    def bn_relu(y, g, bt):
        # BatchNorm3d with batch statistics (training mode), folded to one FMA.
        mean = jnp.mean(y, axis=1, keepdims=True)
        var = jnp.mean((y - mean) * (y - mean), axis=1, keepdims=True)
        a = g * lax.rsqrt(var + EPS)
        b = bt - a * mean
        return jnp.maximum(y * a + b, 0.0)

    x = x_ref[...]                                            # (C, M) f32

    # ---- conv1 (1x1x1) + bn1 + relu
    y1 = jnp.dot(w1_ref[...], x.astype(jnp.bfloat16),
                 preferred_element_type=jnp.float32) + b1_ref[...]
    y1 = bn_relu(y1, g1_ref[...], bt1_ref[...])

    # ---- conv2 (3x3x3, pad 1) + bn2 + relu
    # im2col rows: tap-major (kd, kh, kw), channel-minor -> (27*C, M).  Each tap
    # is a lane shift of y1 with zeros wherever the shift would cross a d/h/w
    # boundary (mask), so the whole conv is ONE K = 27*C matmul.
    mask = mask_ref[...]                                      # (27, M) f32 {0,1}
    pieces = []
    tap = 0
    for od in (-1, 0, 1):
        for oh in (-1, 0, 1):
            for ow in (-1, 0, 1):
                delta = od * H * W + oh * W + ow
                shifted = _shift_lanes(y1, delta, M)
                pieces.append(shifted * mask[tap:tap + 1, :])
                tap += 1
    im2col = jnp.concatenate(pieces, axis=0).astype(jnp.bfloat16)   # (27C, M)
    y2 = jnp.dot(w2_ref[...], im2col,
                 preferred_element_type=jnp.float32) + b2_ref[...]
    y2 = bn_relu(y2, g2_ref[...], bt2_ref[...])

    # ---- conv3 (1x1x1)
    x1 = jnp.dot(w3_ref[...], y2.astype(jnp.bfloat16),
                 preferred_element_type=jnp.float32) + b3_ref[...]

    # ---- SELayer: per-sample global avg pool -> fc -> LeakyReLU -> fc -> sigmoid
    pooled = jnp.concatenate(
        [jnp.mean(x1[:, n * S:(n + 1) * S], axis=1, keepdims=True)
         for n in range(N)], axis=1)                          # (C, N)
    h = jnp.dot(fw1_ref[...], pooled,
                preferred_element_type=jnp.float32) + fb1_ref[...]
    h = jnp.where(h > 0, h, 0.01 * h)                         # LeakyReLU(0.01)
    s = jnp.dot(fw2_ref[...], h,
                preferred_element_type=jnp.float32) + fb2_ref[...]
    s = 1.0 / (1.0 + jnp.exp(-s))                             # Sigmoid, (C, N)
    scale = jnp.concatenate(
        [jnp.broadcast_to(s[:, n:n + 1], (C, S)) for n in range(N)], axis=1)

    # ---- residual + bn + relu
    o_ref[...] = bn_relu(x + x1 * scale, g_ref[...], bt_ref[...])


# ------------------------------ forward wrapper ------------------------------

def se_resblock_forward(x_ncdhw, params):
    N, C, D, H, W = x_ncdhw.shape
    S = D * H * W
    M = N * S

    # channels-first 2-D layout: columns ordered (n, d, h, w) row-major.
    x2d = jnp.transpose(x_ncdhw, (1, 0, 2, 3, 4)).reshape(C, M).astype(jnp.float32)

    col = lambda v: v.reshape(-1, 1).astype(jnp.float32)
    w1 = params["w1"][:, :, 0, 0, 0].astype(jnp.bfloat16)            # (C, C)
    w3 = params["w3"][:, :, 0, 0, 0].astype(jnp.bfloat16)            # (C, C)
    # (C_out, 27*C_in), taps (kd, kh, kw) row-major, channel-minor.
    w2 = jnp.transpose(params["w2"], (0, 2, 3, 4, 1)).reshape(C, 27 * C)
    w2 = w2.astype(jnp.bfloat16)

    # Boundary masks for the 27 taps (identical for every sample -> tile over N).
    sidx = jnp.arange(S)
    di = sidx // (H * W)
    hi = (sidx // W) % H
    wi = sidx % W
    rows = []
    for od in (-1, 0, 1):
        for oh in (-1, 0, 1):
            for ow in (-1, 0, 1):
                rows.append((di + od >= 0) & (di + od < D) &
                            (hi + oh >= 0) & (hi + oh < H) &
                            (wi + ow >= 0) & (wi + ow < W))
    mask = jnp.tile(jnp.stack(rows, axis=0).astype(jnp.float32), (1, N))  # (27, M)

    kernel = functools.partial(_se_resblock_kernel, D, H, W, N)
    vmem = pl.BlockSpec(memory_space=pltpu.MemorySpace.VMEM)
    out = pl.pallas_call(
        kernel,
        out_shape=jax.ShapeDtypeStruct((C, M), jnp.float32),
        in_specs=[vmem] * 18,
        out_specs=vmem,
        compiler_params=pltpu.CompilerParams(vmem_limit_bytes=32 * 1024 * 1024),
    )(x2d, w1, col(params["b1"]), col(params["g1"]), col(params["bt1"]),
      w2, col(params["b2"]), col(params["g2"]), col(params["bt2"]),
      w3, col(params["b3"]),
      params["fw1"].astype(jnp.float32), col(params["fb1"]),
      params["fw2"].astype(jnp.float32), col(params["fb2"]),
      col(params["g"]), col(params["bt"]), mask)

    return jnp.transpose(out.reshape(C, N, D, H, W), (1, 0, 2, 3, 4))


# ------------------------------ pure-JAX reference ---------------------------

def ref_forward(x, p):
    hi = lax.Precision.HIGHEST

    def conv(h, w, b, pad):
        out = lax.conv_general_dilated(h, w, (1, 1, 1), [(pad, pad)] * 3,
                                       dimension_numbers=("NCDHW", "OIDHW", "NCDHW"),
                                       precision=hi)
        return out + b[None, :, None, None, None]

    def bn(h, g, bt):
        m = jnp.mean(h, axis=(0, 2, 3, 4), keepdims=True)
        v = jnp.mean((h - m) ** 2, axis=(0, 2, 3, 4), keepdims=True)
        return (g[None, :, None, None, None] * (h - m) * lax.rsqrt(v + EPS)
                + bt[None, :, None, None, None])

    h = jax.nn.relu(bn(conv(x, p["w1"], p["b1"], 0), p["g1"], p["bt1"]))
    h = jax.nn.relu(bn(conv(h, p["w2"], p["b2"], 1), p["g2"], p["bt2"]))
    h = conv(h, p["w3"], p["b3"], 0)
    y = jnp.mean(h, axis=(2, 3, 4))
    y = jnp.dot(y, p["fw1"].T, precision=hi) + p["fb1"]
    y = jnp.where(y > 0, y, 0.01 * y)
    y = jnp.dot(y, p["fw2"].T, precision=hi) + p["fb2"]
    y = 1.0 / (1.0 + jnp.exp(-y))
    h = h * y[:, :, None, None, None]
    r = x + h
    return jax.nn.relu(bn(r, p["g"], p["bt"]))


# ----------------------------------- main ------------------------------------

if __name__ == "__main__":
    N, C, D, H, W = 2, 8, 8, 8, 8
    Cmid = C // 4

    key = jax.random.PRNGKey(0)
    ks = jax.random.split(key, 12)
    p = {
        "w1": jax.random.normal(ks[0], (C, C, 1, 1, 1), jnp.float32) * 0.2,
        "b1": jax.random.normal(ks[1], (C,), jnp.float32) * 0.1,
        "g1": jnp.ones((C,), jnp.float32), "bt1": jnp.zeros((C,), jnp.float32),
        "w2": jax.random.normal(ks[2], (C, C, 3, 3, 3), jnp.float32) * 0.1,
        "b2": jax.random.normal(ks[3], (C,), jnp.float32) * 0.1,
        "g2": jnp.ones((C,), jnp.float32), "bt2": jnp.zeros((C,), jnp.float32),
        "w3": jax.random.normal(ks[4], (C, C, 1, 1, 1), jnp.float32) * 0.2,
        "b3": jax.random.normal(ks[5], (C,), jnp.float32) * 0.1,
        "fw1": jax.random.normal(ks[6], (Cmid, C), jnp.float32) * 0.3,
        "fb1": jax.random.normal(ks[7], (Cmid,), jnp.float32) * 0.1,
        "fw2": jax.random.normal(ks[8], (C, Cmid), jnp.float32) * 0.3,
        "fb2": jax.random.normal(ks[9], (C,), jnp.float32) * 0.1,
        "g": jnp.ones((C,), jnp.float32), "bt": jnp.zeros((C,), jnp.float32),
    }
    x = jax.random.normal(ks[10], (N, C, D, H, W), jnp.float32)

    out = jax.block_until_ready(jax.jit(se_resblock_forward)(x, p))
    ref = jax.block_until_ready(ref_forward(x, p))

    assert out.shape == x.shape and out.dtype == jnp.float32
    max_err = float(jnp.max(jnp.abs(out - ref)))
    assert max_err < 2e-2, f"max abs err {max_err}"
    print("KERNEL_OK")
</pallas_src>

<mosaic_0001>
module attributes {stable_mosaic.version = 11 : i64} {
  func.func @_se_resblock_kernel(%arg0: memref<8x1024xf32, #tpu.memory_space<vmem>>, %arg1: memref<8x8xbf16, #tpu.memory_space<vmem>>, %arg2: memref<8x1xf32, #tpu.memory_space<vmem>>, %arg3: memref<8x1xf32, #tpu.memory_space<vmem>>, %arg4: memref<8x1xf32, #tpu.memory_space<vmem>>, %arg5: memref<8x216xbf16, #tpu.memory_space<vmem>>, %arg6: memref<8x1xf32, #tpu.memory_space<vmem>>, %arg7: memref<8x1xf32, #tpu.memory_space<vmem>>, %arg8: memref<8x1xf32, #tpu.memory_space<vmem>>, %arg9: memref<8x8xbf16, #tpu.memory_space<vmem>>, %arg10: memref<8x1xf32, #tpu.memory_space<vmem>>, %arg11: memref<2x8xf32, #tpu.memory_space<vmem>>, %arg12: memref<2x1xf32, #tpu.memory_space<vmem>>, %arg13: memref<8x2xf32, #tpu.memory_space<vmem>>, %arg14: memref<8x1xf32, #tpu.memory_space<vmem>>, %arg15: memref<8x1xf32, #tpu.memory_space<vmem>>, %arg16: memref<8x1xf32, #tpu.memory_space<vmem>>, %arg17: memref<27x1024xf32, #tpu.memory_space<vmem>>, %arg18: memref<8x1024xf32, #tpu.memory_space<vmem>>) attributes {dimension_semantics = [], scalar_prefetch = 0 : i64, scratch_operands = 0 : i64, tpu.core_type = #tpu.core_type<tc>} {
    %c0 = arith.constant 0 : index
    %c0_0 = arith.constant 0 : index
    %0 = vector.load %arg0[%c0, %c0_0] : memref<8x1024xf32, #tpu.memory_space<vmem>>, vector<8x1024xf32>
    %c0_1 = arith.constant 0 : index
    %c0_2 = arith.constant 0 : index
    %1 = vector.load %arg1[%c0_1, %c0_2] : memref<8x8xbf16, #tpu.memory_space<vmem>>, vector<8x8xbf16>
    %2 = arith.truncf %0 : vector<8x1024xf32> to vector<8x1024xbf16>
    %cst = arith.constant dense<0.000000e+00> : vector<8x1024xf32>
    %3 = tpu.matmul %1, %2, %cst {dimension_numbers = #tpu.dot_dimension_numbers<[1], [0], [0], [1], [0, 0, 1, 1], [], []>} : vector<8x8xbf16>, vector<8x1024xbf16>, vector<8x1024xf32> -> vector<8x1024xf32>
    %c0_3 = arith.constant 0 : index
    %c0_4 = arith.constant 0 : index
    %4 = vector.load %arg2[%c0_3, %c0_4] : memref<8x1xf32, #tpu.memory_space<vmem>>, vector<8x1xf32>
    %5 = vector.broadcast %4 : vector<8x1xf32> to vector<8x1024xf32>
    %6 = arith.addf %3, %5 : vector<8x1024xf32>
    %c0_5 = arith.constant 0 : index
    %c0_6 = arith.constant 0 : index
    %7 = vector.load %arg3[%c0_5, %c0_6] : memref<8x1xf32, #tpu.memory_space<vmem>>, vector<8x1xf32>
    %c0_7 = arith.constant 0 : index
    %c0_8 = arith.constant 0 : index
    %8 = vector.load %arg4[%c0_7, %c0_8] : memref<8x1xf32, #tpu.memory_space<vmem>>, vector<8x1xf32>
    %cst_9 = arith.constant dense<0.000000e+00> : vector<8xf32>
    %9 = vector.multi_reduction <add>, %6, %cst_9 [1] : vector<8x1024xf32> to vector<8xf32>
    %10 = vector.shape_cast %9 : vector<8xf32> to vector<8x1xf32>
    %cst_10 = arith.constant 1.024000e+03 : f32
    %11 = vector.broadcast %cst_10 : f32 to vector<8x1xf32>
    %12 = arith.divf %10, %11 : vector<8x1xf32>
    %13 = vector.broadcast %12 : vector<8x1xf32> to vector<8x1024xf32>
    %14 = arith.subf %6, %13 : vector<8x1024xf32>
    %15 = vector.broadcast %12 : vector<8x1xf32> to vector<8x1024xf32>
    %16 = arith.subf %6, %15 : vector<8x1024xf32>
    %17 = arith.mulf %14, %16 : vector<8x1024xf32>
    %cst_11 = arith.constant dense<0.000000e+00> : vector<8xf32>
    %18 = vector.multi_reduction <add>, %17, %cst_11 [1] : vector<8x1024xf32> to vector<8xf32>
    %19 = vector.shape_cast %18 : vector<8xf32> to vector<8x1xf32>
    %cst_12 = arith.constant 1.024000e+03 : f32
    %20 = vector.broadcast %cst_12 : f32 to vector<8x1xf32>
    %21 = arith.divf %19, %20 : vector<8x1xf32>
    %cst_13 = arith.constant 9.99999974E-6 : f32
    %22 = vector.broadcast %cst_13 : f32 to vector<8x1xf32>
    %23 = arith.addf %21, %22 : vector<8x1xf32>
    %24 = math.rsqrt %23 : vector<8x1xf32>
    %25 = arith.mulf %7, %24 : vector<8x1xf32>
    %26 = arith.mulf %25, %12 : vector<8x1xf32>
    %27 = arith.subf %8, %26 : vector<8x1xf32>
    %28 = vector.broadcast %25 : vector<8x1xf32> to vector<8x1024xf32>
    %29 = arith.mulf %6, %28 : vector<8x1024xf32>
    %30 = vector.broadcast %27 : vector<8x1xf32> to vector<8x1024xf32>
    %31 = arith.addf %29, %30 : vector<8x1024xf32>
    %cst_14 = arith.constant 0.000000e+00 : f32
    %32 = vector.broadcast %cst_14 : f32 to vector<8x1024xf32>
    %33 = arith.maximumf %31, %32 : vector<8x1024xf32>
    %c0_15 = arith.constant 0 : index
    %c0_16 = arith.constant 0 : index
    %34 = vector.load %arg17[%c0_15, %c0_16] : memref<27x1024xf32, #tpu.memory_space<vmem>>, vector<27x1024xf32>
    %cst_17 = arith.constant 0.000000e+00 : f32
    %35 = vector.broadcast %cst_17 : f32 to vector<8x73xf32>
    %36 = vector.extract_strided_slice %33 {offsets = [0, 0], sizes = [8, 951], strides = [1, 1]} : vector<8x1024xf32> to vector<8x951xf32>
    %37 = tpu.concatenate %35, %36 in 1 : vector<8x73xf32>, vector<8x951xf32> -> vector<8x1024xf32>
    %38 = vector.extract_strided_slice %34 {offsets = [0, 0], sizes = [1, 1024], strides = [1, 1]} : vector<27x1024xf32> to vector<1x1024xf32>
    %39 = vector.broadcast %38 : vector<1x1024xf32> to vector<8x1024xf32>
    %40 = arith.mulf %37, %39 : vector<8x1024xf32>
    %cst_18 = arith.constant 0.000000e+00 : f32
    %41 = vector.broadcast %cst_18 : f32 to vector<8x72xf32>
    %42 = vector.extract_strided_slice %33 {offsets = [0, 0], sizes = [8, 952], strides = [1, 1]} : vector<8x1024xf32> to vector<8x952xf32>
    %43 = tpu.concatenate %41, %42 in 1 : vector<8x72xf32>, vector<8x952xf32> -> vector<8x1024xf32>
    %44 = vector.extract_strided_slice %34 {offsets = [1, 0], sizes = [1, 1024], strides = [1, 1]} : vector<27x1024xf32> to vector<1x1024xf32>
    %45 = vector.broadcast %44 : vector<1x1024xf32> to vector<8x1024xf32>
    %46 = arith.mulf %43, %45 : vector<8x1024xf32>
    %cst_19 = arith.constant 0.000000e+00 : f32
    %47 = vector.broadcast %cst_19 : f32 to vector<8x71xf32>
    %48 = vector.extract_strided_slice %33 {offsets = [0, 0], sizes = [8, 953], strides = [1, 1]} : vector<8x1024xf32> to vector<8x953xf32>
    %49 = tpu.concatenate %47, %48 in 1 : vector<8x71xf32>, vector<8x953xf32> -> vector<8x1024xf32>
    %50 = vector.extract_strided_slice %34 {offsets = [2, 0], sizes = [1, 1024], strides = [1, 1]} : vector<27x1024xf32> to vector<1x1024xf32>
    %51 = vector.broadcast %50 : vector<1x1024xf32> to vector<8x1024xf32>
    %52 = arith.mulf %49, %51 : vector<8x1024xf32>
    %cst_20 = arith.constant 0.000000e+00 : f32
    %53 = vector.broadcast %cst_20 : f32 to vector<8x65xf32>
    %54 = vector.extract_strided_slice %33 {offsets = [0, 0], sizes = [8, 959], strides = [1, 1]} : vector<8x1024xf32> to vector<8x959xf32>
    %55 = tpu.concatenate %53, %54 in 1 : vector<8x65xf32>, vector<8x959xf32> -> vector<8x1024xf32>
    %56 = vector.extract_strided_slice %34 {offsets = [3, 0], sizes = [1, 1024], strides = [1, 1]} : vector<27x1024xf32> to vector<1x1024xf32>
    %57 = vector.broadcast %56 : vector<1x1024xf32> to vector<8x1024xf32>
    %58 = arith.mulf %55, %57 : vector<8x1024xf32>
    %cst_21 = arith.constant 0.000000e+00 : f32
    %59 = vector.broadcast %cst_21 : f32 to vector<8x64xf32>
    %60 = vector.extract_strided_slice %33 {offsets = [0, 0], sizes = [8, 960], strides = [1, 1]} : vector<8x1024xf32> to vector<8x960xf32>
    %61 = tpu.concatenate %59, %60 in 1 : vector<8x64xf32>, vector<8x960xf32> -> vector<8x1024xf32>
    %62 = vector.extract_strided_slice %34 {offsets = [4, 0], sizes = [1, 1024], strides = [1, 1]} : vector<27x1024xf32> to vector<1x1024xf32>
    %63 = vector.broadcast %62 : vector<1x1024xf32> to vector<8x1024xf32>
    %64 = arith.mulf %61, %63 : vector<8x1024xf32>
    %cst_22 = arith.constant 0.000000e+00 : f32
    %65 = vector.broadcast %cst_22 : f32 to vector<8x63xf32>
    %66 = vector.extract_strided_slice %33 {offsets = [0, 0], sizes = [8, 961], strides = [1, 1]} : vector<8x1024xf32> to vector<8x961xf32>
    %67 = tpu.concatenate %65, %66 in 1 : vector<8x63xf32>, vector<8x961xf32> -> vector<8x1024xf32>
    %68 = vector.extract_strided_slice %34 {offsets = [5, 0], sizes = [1, 1024], strides = [1, 1]} : vector<27x1024xf32> to vector<1x1024xf32>
    %69 = vector.broadcast %68 : vector<1x1024xf32> to vector<8x1024xf32>
    %70 = arith.mulf %67, %69 : vector<8x1024xf32>
    %cst_23 = arith.constant 0.000000e+00 : f32
    %71 = vector.broadcast %cst_23 : f32 to vector<8x57xf32>
    %72 = vector.extract_strided_slice %33 {offsets = [0, 0], sizes = [8, 967], strides = [1, 1]} : vector<8x1024xf32> to vector<8x967xf32>
    %73 = tpu.concatenate %71, %72 in 1 : vector<8x57xf32>, vector<8x967xf32> -> vector<8x1024xf32>
    %74 = vector.extract_strided_slice %34 {offsets = [6, 0], sizes = [1, 1024], strides = [1, 1]} : vector<27x1024xf32> to vector<1x1024xf32>
    %75 = vector.broadcast %74 : vector<1x1024xf32> to vector<8x1024xf32>
    %76 = arith.mulf %73, %75 : vector<8x1024xf32>
    %cst_24 = arith.constant 0.000000e+00 : f32
    %77 = vector.broadcast %cst_24 : f32 to vector<8x56xf32>
    %78 = vector.extract_strided_slice %33 {offsets = [0, 0], sizes = [8, 968], strides = [1, 1]} : vector<8x1024xf32> to vector<8x968xf32>
    %79 = tpu.concatenate %77, %78 in 1 : vector<8x56xf32>, vector<8x968xf32> -> vector<8x1024xf32>
    %80 = vector.extract_strided_slice %34 {offsets = [7, 0], sizes = [1, 1024], strides = [1, 1]} : vector<27x1024xf32> to vector<1x1024xf32>
    %81 = vector.broadcast %80 : vector<1x1024xf32> to vector<8x1024xf32>
    %82 = arith.mulf %79, %81 : vector<8x1024xf32>
    %cst_25 = arith.constant 0.000000e+00 : f32
    %83 = vector.broadcast %cst_25 : f32 to vector<8x55xf32>
    %84 = vector.extract_strided_slice %33 {offsets = [0, 0], sizes = [8, 969], strides = [1, 1]} : vector<8x1024xf32> to vector<8x969xf32>
    %85 = tpu.concatenate %83, %84 in 1 : vector<8x55xf32>, vector<8x969xf32> -> vector<8x1024xf32>
    %86 = vector.extract_strided_slice %34 {offsets = [8, 0], sizes = [1, 1024], strides = [1, 1]} : vector<27x1024xf32> to vector<1x1024xf32>
    %87 = vector.broadcast %86 : vector<1x1024xf32> to vector<8x1024xf32>
    %88 = arith.mulf %85, %87 : vector<8x1024xf32>
    %cst_26 = arith.constant 0.000000e+00 : f32
    %89 = vector.broadcast %cst_26 : f32 to vector<8x9xf32>
    %90 = vector.extract_strided_slice %33 {offsets = [0, 0], sizes = [8, 1015], strides = [1, 1]} : vector<8x1024xf32> to vector<8x1015xf32>
    %91 = tpu.concatenate %89, %90 in 1 : vector<8x9xf32>, vector<8x1015xf32> -> vector<8x1024xf32>
    %92 = vector.extract_strided_slice %34 {offsets = [9, 0], sizes = [1, 1024], strides = [1, 1]} : vector<27x1024xf32> to vector<1x1024xf32>
    %93 = vector.broadcast %92 : vector<1x1024xf32> to vector<8x1024xf32>
    %94 = arith.mulf %91, %93 : vector<8x1024xf32>
    %cst_27 = arith.constant 0.000000e+00 : f32
    %95 = vector.broadcast %cst_27 : f32 to vector<8x8xf32>
    %96 = vector.extract_strided_slice %33 {offsets = [0, 0], sizes = [8, 1016], strides = [1, 1]} : vector<8x1024xf32> to vector<8x1016xf32>
    %97 = tpu.concatenate %95, %96 in 1 : vector<8x8xf32>, vector<8x1016xf32> -> vector<8x1024xf32>
    %98 = vector.extract_strided_slice %34 {offsets = [10, 0], sizes = [1, 1024], strides = [1, 1]} : vector<27x1024xf32> to vector<1x1024xf32>
    %99 = vector.broadcast %98 : vector<1x1024xf32> to vector<8x1024xf32>
    %100 = arith.mulf %97, %99 : vector<8x1024xf32>
    %cst_28 = arith.constant 0.000000e+00 : f32
    %101 = vector.broadcast %cst_28 : f32 to vector<8x7xf32>
    %102 = vector.extract_strided_slice %33 {offsets = [0, 0], sizes = [8, 1017], strides = [1, 1]} : vector<8x1024xf32> to vector<8x1017xf32>
    %103 = tpu.concatenate %101, %102 in 1 : vector<8x7xf32>, vector<8x1017xf32> -> vector<8x1024xf32>
    %104 = vector.extract_strided_slice %34 {offsets = [11, 0], sizes = [1, 1024], strides = [1, 1]} : vector<27x1024xf32> to vector<1x1024xf32>
    %105 = vector.broadcast %104 : vector<1x1024xf32> to vector<8x1024xf32>
    %106 = arith.mulf %103, %105 : vector<8x1024xf32>
    %cst_29 = arith.constant 0.000000e+00 : f32
    %107 = vector.broadcast %cst_29 : f32 to vector<8x1xf32>
    %108 = vector.extract_strided_slice %33 {offsets = [0, 0], sizes = [8, 1023], strides = [1, 1]} : vector<8x1024xf32> to vector<8x1023xf32>
    %109 = tpu.concatenate %107, %108 in 1 : vector<8x1xf32>, vector<8x1023xf32> -> vector<8x1024xf32>
    %110 = vector.extract_strided_slice %34 {offsets = [12, 0], sizes = [1, 1024], strides = [1, 1]} : vector<27x1024xf32> to vector<1x1024xf32>
    %111 = vector.broadcast %110 : vector<1x1024xf32> to vector<8x1024xf32>
    %112 = arith.mulf %109, %111 : vector<8x1024xf32>
    %113 = vector.extract_strided_slice %34 {offsets = [13, 0], sizes = [1, 1024], strides = [1, 1]} : vector<27x1024xf32> to vector<1x1024xf32>
    %114 = vector.broadcast %113 : vector<1x1024xf32> to vector<8x1024xf32>
    %115 = arith.mulf %33, %114 : vector<8x1024xf32>
    %116 = vector.extract_strided_slice %33 {offsets = [0, 1], sizes = [8, 1023], strides = [1, 1]} : vector<8x1024xf32> to vector<8x1023xf32>
    %cst_30 = arith.constant 0.000000e+00 : f32
    %117 = vector.broadcast %cst_30 : f32 to vector<8x1xf32>
    %118 = tpu.concatenate %116, %117 in 1 : vector<8x1023xf32>, vector<8x1xf32> -> vector<8x1024xf32>
    %119 = vector.extract_strided_slice %34 {offsets = [14, 0], sizes = [1, 1024], strides = [1, 1]} : vector<27x1024xf32> to vector<1x1024xf32>
    %120 = vector.broadcast %119 : vector<1x1024xf32> to vector<8x1024xf32>
    %121 = arith.mulf %118, %120 : vector<8x1024xf32>
    %122 = vector.extract_strided_slice %33 {offsets = [0, 7], sizes = [8, 1017], strides = [1, 1]} : vector<8x1024xf32> to vector<8x1017xf32>
    %cst_31 = arith.constant 0.000000e+00 : f32
    %123 = vector.broadcast %cst_31 : f32 to vector<8x7xf32>
    %124 = tpu.concatenate %122, %123 in 1 : vector<8x1017xf32>, vector<8x7xf32> -> vector<8x1024xf32>
    %125 = vector.extract_strided_slice %34 {offsets = [15, 0], sizes = [1, 1024], strides = [1, 1]} : vector<27x1024xf32> to vector<1x1024xf32>
    %126 = vector.broadcast %125 : vector<1x1024xf32> to vector<8x1024xf32>
    %127 = arith.mulf %124, %126 : vector<8x1024xf32>
    %128 = vector.extract_strided_slice %33 {offsets = [0, 8], sizes = [8, 1016], strides = [1, 1]} : vector<8x1024xf32> to vector<8x1016xf32>
    %cst_32 = arith.constant 0.000000e+00 : f32
    %129 = vector.broadcast %cst_32 : f32 to vector<8x8xf32>
    %130 = tpu.concatenate %128, %129 in 1 : vector<8x1016xf32>, vector<8x8xf32> -> vector<8x1024xf32>
    %131 = vector.extract_strided_slice %34 {offsets = [16, 0], sizes = [1, 1024], strides = [1, 1]} : vector<27x1024xf32> to vector<1x1024xf32>
    %132 = vector.broadcast %131 : vector<1x1024xf32> to vector<8x1024xf32>
    %133 = arith.mulf %130, %132 : vector<8x1024xf32>
    %134 = vector.extract_strided_slice %33 {offsets = [0, 9], sizes = [8, 1015], strides = [1, 1]} : vector<8x1024xf32> to vector<8x1015xf32>
    %cst_33 = arith.constant 0.000000e+00 : f32
    %135 = vector.broadcast %cst_33 : f32 to vector<8x9xf32>
    %136 = tpu.concatenate %134, %135 in 1 : vector<8x1015xf32>, vector<8x9xf32> -> vector<8x1024xf32>
    %137 = vector.extract_strided_slice %34 {offsets = [17, 0], sizes = [1, 1024], strides = [1, 1]} : vector<27x1024xf32> to vector<1x1024xf32>
    %138 = vector.broadcast %137 : vector<1x1024xf32> to vector<8x1024xf32>
    %139 = arith.mulf %136, %138 : vector<8x1024xf32>
    %140 = vector.extract_strided_slice %33 {offsets = [0, 55], sizes = [8, 969], strides = [1, 1]} : vector<8x1024xf32> to vector<8x969xf32>
    %cst_34 = arith.constant 0.000000e+00 : f32
    %141 = vector.broadcast %cst_34 : f32 to vector<8x55xf32>
    %142 = tpu.concatenate %140, %141 in 1 : vector<8x969xf32>, vector<8x55xf32> -> vector<8x1024xf32>
    %143 = vector.extract_strided_slice %34 {offsets = [18, 0], sizes = [1, 1024], strides = [1, 1]} : vector<27x1024xf32> to vector<1x1024xf32>
    %144 = vector.broadcast %143 : vector<1x1024xf32> to vector<8x1024xf32>
    %145 = arith.mulf %142, %144 : vector<8x1024xf32>
    %146 = vector.extract_strided_slice %33 {offsets = [0, 56], sizes = [8, 968], strides = [1, 1]} : vector<8x1024xf32> to vector<8x968xf32>
    %cst_35 = arith.constant 0.000000e+00 : f32
    %147 = vector.broadcast %cst_35 : f32 to vector<8x56xf32>
    %148 = tpu.concatenate %146, %147 in 1 : vector<8x968xf32>, vector<8x56xf32> -> vector<8x1024xf32>
    %149 = vector.extract_strided_slice %34 {offsets = [19, 0], sizes = [1, 1024], strides = [1, 1]} : vector<27x1024xf32> to vector<1x1024xf32>
    %150 = vector.broadcast %149 : vector<1x1024xf32> to vector<8x1024xf32>
    %151 = arith.mulf %148, %150 : vector<8x1024xf32>
    %152 = vector.extract_strided_slice %33 {offsets = [0, 57], sizes = [8, 967], strides = [1, 1]} : vector<8x1024xf32> to vector<8x967xf32>
    %cst_36 = arith.constant 0.000000e+00 : f32
    %153 = vector.broadcast %cst_36 : f32 to vector<8x57xf32>
    %154 = tpu.concatenate %152, %153 in 1 : vector<8x967xf32>, vector<8x57xf32> -> vector<8x1024xf32>
    %155 = vector.extract_strided_slice %34 {offsets = [20, 0], sizes = [1, 1024], strides = [1, 1]} : vector<27x1024xf32> to vector<1x1024xf32>
    %156 = vector.broadcast %155 : vector<1x1024xf32> to vector<8x1024xf32>
    %157 = arith.mulf %154, %156 : vector<8x1024xf32>
    %158 = vector.extract_strided_slice %33 {offsets = [0, 63], sizes = [8, 961], strides = [1, 1]} : vector<8x1024xf32> to vector<8x961xf32>
    %cst_37 = arith.constant 0.000000e+00 : f32
    %159 = vector.broadcast %cst_37 : f32 to vector<8x63xf32>
    %160 = tpu.concatenate %158, %159 in 1 : vector<8x961xf32>, vector<8x63xf32> -> vector<8x1024xf32>
    %161 = vector.extract_strided_slice %34 {offsets = [21, 0], sizes = [1, 1024], strides = [1, 1]} : vector<27x1024xf32> to vector<1x1024xf32>
    %162 = vector.broadcast %161 : vector<1x1024xf32> to vector<8x1024xf32>
    %163 = arith.mulf %160, %162 : vector<8x1024xf32>
    %164 = vector.extract_strided_slice %33 {offsets = [0, 64], sizes = [8, 960], strides = [1, 1]} : vector<8x1024xf32> to vector<8x960xf32>
    %cst_38 = arith.constant 0.000000e+00 : f32
    %165 = vector.broadcast %cst_38 : f32 to vector<8x64xf32>
    %166 = tpu.concatenate %164, %165 in 1 : vector<8x960xf32>, vector<8x64xf32> -> vector<8x1024xf32>
    %167 = vector.extract_strided_slice %34 {offsets = [22, 0], sizes = [1, 1024], strides = [1, 1]} : vector<27x1024xf32> to vector<1x1024xf32>
    %168 = vector.broadcast %167 : vector<1x1024xf32> to vector<8x1024xf32>
    %169 = arith.mulf %166, %168 : vector<8x1024xf32>
    %170 = vector.extract_strided_slice %33 {offsets = [0, 65], sizes = [8, 959], strides = [1, 1]} : vector<8x1024xf32> to vector<8x959xf32>
    %cst_39 = arith.constant 0.000000e+00 : f32
    %171 = vector.broadcast %cst_39 : f32 to vector<8x65xf32>
    %172 = tpu.concatenate %170, %171 in 1 : vector<8x959xf32>, vector<8x65xf32> -> vector<8x1024xf32>
    %173 = vector.extract_strided_slice %34 {offsets = [23, 0], sizes = [1, 1024], strides = [1, 1]} : vector<27x1024xf32> to vector<1x1024xf32>
    %174 = vector.broadcast %173 : vector<1x1024xf32> to vector<8x1024xf32>
    %175 = arith.mulf %172, %174 : vector<8x1024xf32>
    %176 = vector.extract_strided_slice %33 {offsets = [0, 71], sizes = [8, 953], strides = [1, 1]} : vector<8x1024xf32> to vector<8x953xf32>
    %cst_40 = arith.constant 0.000000e+00 : f32
    %177 = vector.broadcast %cst_40 : f32 to vector<8x71xf32>
    %178 = tpu.concatenate %176, %177 in 1 : vector<8x953xf32>, vector<8x71xf32> -> vector<8x1024xf32>
    %179 = vector.extract_strided_slice %34 {offsets = [24, 0], sizes = [1, 1024], strides = [1, 1]} : vector<27x1024xf32> to vector<1x1024xf32>
    %180 = vector.broadcast %179 : vector<1x1024xf32> to vector<8x1024xf32>
    %181 = arith.mulf %178, %180 : vector<8x1024xf32>
    %182 = vector.extract_strided_slice %33 {offsets = [0, 72], sizes = [8, 952], strides = [1, 1]} : vector<8x1024xf32> to vector<8x952xf32>
    %cst_41 = arith.constant 0.000000e+00 : f32
    %183 = vector.broadcast %cst_41 : f32 to vector<8x72xf32>
    %184 = tpu.concatenate %182, %183 in 1 : vector<8x952xf32>, vector<8x72xf32> -> vector<8x1024xf32>
    %185 = vector.extract_strided_slice %34 {offsets = [25, 0], sizes = [1, 1024], strides = [1, 1]} : vector<27x1024xf32> to vector<1x1024xf32>
    %186 = vector.broadcast %185 : vector<1x1024xf32> to vector<8x1024xf32>
    %187 = arith.mulf %184, %186 : vector<8x1024xf32>
    %188 = vector.extract_strided_slice %33 {offsets = [0, 73], sizes = [8, 951], strides = [1, 1]} : vector<8x1024xf32> to vector<8x951xf32>
    %cst_42 = arith.constant 0.000000e+00 : f32
    %189 = vector.broadcast %cst_42 : f32 to vector<8x73xf32>
    %190 = tpu.concatenate %188, %189 in 1 : vector<8x951xf32>, vector<8x73xf32> -> vector<8x1024xf32>
    %191 = vector.extract_strided_slice %34 {offsets = [26, 0], sizes = [1, 1024], strides = [1, 1]} : vector<27x1024xf32> to vector<1x1024xf32>
    %192 = vector.broadcast %191 : vector<1x1024xf32> to vector<8x1024xf32>
    %193 = arith.mulf %190, %192 : vector<8x1024xf32>
    %194 = tpu.concatenate %40, %46, %52, %58, %64, %70, %76, %82, %88, %94, %100, %106, %112, %115, %121, %127 in 0 : vector<8x1024xf32>, vector<8x1024xf32>, vector<8x1024xf32>, vector<8x1024xf32>, vector<8x1024xf32>, vector<8x1024xf32>, vector<8x1024xf32>, vector<8x1024xf32>, vector<8x1024xf32>, vector<8x1024xf32>, vector<8x1024xf32>, vector<8x1024xf32>, vector<8x1024xf32>, vector<8x1024xf32>, vector<8x1024xf32>, vector<8x1024xf32> -> vector<128x1024xf32>
    %195 = tpu.concatenate %133, %139, %145, %151, %157, %163, %169, %175, %181, %187, %193 in 0 : vector<8x1024xf32>, vector<8x1024xf32>, vector<8x1024xf32>, vector<8x1024xf32>, vector<8x1024xf32>, vector<8x1024xf32>, vector<8x1024xf32>, vector<8x1024xf32>, vector<8x1024xf32>, vector<8x1024xf32>, vector<8x1024xf32> -> vector<88x1024xf32>
    %196 = tpu.concatenate %194, %195 in 0 : vector<128x1024xf32>, vector<88x1024xf32> -> vector<216x1024xf32>
    %197 = arith.truncf %196 : vector<216x1024xf32> to vector<216x1024xbf16>
    %c0_43 = arith.constant 0 : index
    %c0_44 = arith.constant 0 : index
    %198 = vector.load %arg5[%c0_43, %c0_44] : memref<8x216xbf16, #tpu.memory_space<vmem>>, vector<8x216xbf16>
    %cst_45 = arith.constant dense<0.000000e+00> : vector<8x1024xf32>
    %199 = tpu.matmul %198, %197, %cst_45 {dimension_numbers = #tpu.dot_dimension_numbers<[1], [0], [0], [1], [0, 0, 1, 1], [], []>} : vector<8x216xbf16>, vector<216x1024xbf16>, vector<8x1024xf32> -> vector<8x1024xf32>
    %c0_46 = arith.constant 0 : index
    %c0_47 = arith.constant 0 : index
    %200 = vector.load %arg6[%c0_46, %c0_47] : memref<8x1xf32, #tpu.memory_space<vmem>>, vector<8x1xf32>
    %201 = vector.broadcast %200 : vector<8x1xf32> to vector<8x1024xf32>
    %202 = arith.addf %199, %201 : vector<8x1024xf32>
    %c0_48 = arith.constant 0 : index
    %c0_49 = arith.constant 0 : index
    %203 = vector.load %arg7[%c0_48, %c0_49] : memref<8x1xf32, #tpu.memory_space<vmem>>, vector<8x1xf32>
    %c0_50 = arith.constant 0 : index
    %c0_51 = arith.constant 0 : index
    %204 = vector.load %arg8[%c0_50, %c0_51] : memref<8x1xf32, #tpu.memory_space<vmem>>, vector<8x1xf32>
    %cst_52 = arith.constant dense<0.000000e+00> : vector<8xf32>
    %205 = vector.multi_reduction <add>, %202, %cst_52 [1] : vector<8x1024xf32> to vector<8xf32>
    %206 = vector.shape_cast %205 : vector<8xf32> to vector<8x1xf32>
    %cst_53 = arith.constant 1.024000e+03 : f32
    %207 = vector.broadcast %cst_53 : f32 to vector<8x1xf32>
    %208 = arith.divf %206, %207 : vector<8x1xf32>
    %209 = vector.broadcast %208 : vector<8x1xf32> to vector<8x1024xf32>
    %210 = arith.subf %202, %209 : vector<8x1024xf32>
    %211 = vector.broadcast %208 : vector<8x1xf32> to vector<8x1024xf32>
    %212 = arith.subf %202, %211 : vector<8x1024xf32>
    %213 = arith.mulf %210, %212 : vector<8x1024xf32>
    %cst_54 = arith.constant dense<0.000000e+00> : vector<8xf32>
    %214 = vector.multi_reduction <add>, %213, %cst_54 [1] : vector<8x1024xf32> to vector<8xf32>
    %215 = vector.shape_cast %214 : vector<8xf32> to vector<8x1xf32>
    %cst_55 = arith.constant 1.024000e+03 : f32
    %216 = vector.broadcast %cst_55 : f32 to vector<8x1xf32>
    %217 = arith.divf %215, %216 : vector<8x1xf32>
    %cst_56 = arith.constant 9.99999974E-6 : f32
    %218 = vector.broadcast %cst_56 : f32 to vector<8x1xf32>
    %219 = arith.addf %217, %218 : vector<8x1xf32>
    %220 = math.rsqrt %219 : vector<8x1xf32>
    %221 = arith.mulf %203, %220 : vector<8x1xf32>
    %222 = arith.mulf %221, %208 : vector<8x1xf32>
    %223 = arith.subf %204, %222 : vector<8x1xf32>
    %224 = vector.broadcast %221 : vector<8x1xf32> to vector<8x1024xf32>
    %225 = arith.mulf %202, %224 : vector<8x1024xf32>
    %226 = vector.broadcast %223 : vector<8x1xf32> to vector<8x1024xf32>
    %227 = arith.addf %225, %226 : vector<8x1024xf32>
    %cst_57 = arith.constant 0.000000e+00 : f32
    %228 = vector.broadcast %cst_57 : f32 to vector<8x1024xf32>
    %229 = arith.maximumf %227, %228 : vector<8x1024xf32>
    %c0_58 = arith.constant 0 : index
    %c0_59 = arith.constant 0 : index
    %230 = vector.load %arg9[%c0_58, %c0_59] : memref<8x8xbf16, #tpu.memory_space<vmem>>, vector<8x8xbf16>
    %231 = arith.truncf %229 : vector<8x1024xf32> to vector<8x1024xbf16>
    %cst_60 = arith.constant dense<0.000000e+00> : vector<8x1024xf32>
    %232 = tpu.matmul %230, %231, %cst_60 {dimension_numbers = #tpu.dot_dimension_numbers<[1], [0], [0], [1], [0, 0, 1, 1], [], []>} : vector<8x8xbf16>, vector<8x1024xbf16>, vector<8x1024xf32> -> vector<8x1024xf32>
    %c0_61 = arith.constant 0 : index
    %c0_62 = arith.constant 0 : index
    %233 = vector.load %arg10[%c0_61, %c0_62] : memref<8x1xf32, #tpu.memory_space<vmem>>, vector<8x1xf32>
    %234 = vector.broadcast %233 : vector<8x1xf32> to vector<8x1024xf32>
    %235 = arith.addf %232, %234 : vector<8x1024xf32>
    %236 = vector.extract_strided_slice %235 {offsets = [0, 0], sizes = [8, 512], strides = [1, 1]} : vector<8x1024xf32> to vector<8x512xf32>
    %cst_63 = arith.constant dense<0.000000e+00> : vector<8xf32>
    %237 = vector.multi_reduction <add>, %236, %cst_63 [1] : vector<8x512xf32> to vector<8xf32>
    %238 = vector.shape_cast %237 : vector<8xf32> to vector<8x1xf32>
    %cst_64 = arith.constant 5.120000e+02 : f32
    %239 = vector.broadcast %cst_64 : f32 to vector<8x1xf32>
    %240 = arith.divf %238, %239 : vector<8x1xf32>
    %241 = vector.extract_strided_slice %235 {offsets = [0, 512], sizes = [8, 512], strides = [1, 1]} : vector<8x1024xf32> to vector<8x512xf32>
    %cst_65 = arith.constant dense<0.000000e+00> : vector<8xf32>
    %242 = vector.multi_reduction <add>, %241, %cst_65 [1] : vector<8x512xf32> to vector<8xf32>
    %243 = vector.shape_cast %242 : vector<8xf32> to vector<8x1xf32>
    %cst_66 = arith.constant 5.120000e+02 : f32
    %244 = vector.broadcast %cst_66 : f32 to vector<8x1xf32>
    %245 = arith.divf %243, %244 : vector<8x1xf32>
    %246 = tpu.concatenate %240, %245 in 1 : vector<8x1xf32>, vector<8x1xf32> -> vector<8x2xf32>
    %c0_67 = arith.constant 0 : index
    %c0_68 = arith.constant 0 : index
    %247 = vector.load %arg11[%c0_67, %c0_68] : memref<2x8xf32, #tpu.memory_space<vmem>>, vector<2x8xf32>
    %cst_69 = arith.constant dense<0.000000e+00> : vector<2x2xf32>
    %248 = tpu.matmul %247, %246, %cst_69 {dimension_numbers = #tpu.dot_dimension_numbers<[1], [0], [0], [1], [0, 0, 1, 1], [], []>} : vector<2x8xf32>, vector<8x2xf32>, vector<2x2xf32> -> vector<2x2xf32>
    %c0_70 = arith.constant 0 : index
    %c0_71 = arith.constant 0 : index
    %249 = vector.load %arg12[%c0_70, %c0_71] : memref<2x1xf32, #tpu.memory_space<vmem>>, vector<2x1xf32>
    %250 = vector.broadcast %249 : vector<2x1xf32> to vector<2x2xf32>
    %251 = arith.addf %248, %250 : vector<2x2xf32>
    %cst_72 = arith.constant 0.000000e+00 : f32
    %252 = vector.broadcast %cst_72 : f32 to vector<2x2xf32>
    %253 = arith.cmpf ogt, %251, %252 : vector<2x2xf32>
    %cst_73 = arith.constant 0.00999999977 : f32
    %254 = vector.broadcast %cst_73 : f32 to vector<2x2xf32>
    %255 = arith.mulf %254, %251 : vector<2x2xf32>
    %256 = arith.select %253, %251, %255 : vector<2x2xi1>, vector<2x2xf32>
    %c0_74 = arith.constant 0 : index
    %c0_75 = arith.constant 0 : index
    %257 = vector.load %arg13[%c0_74, %c0_75] : memref<8x2xf32, #tpu.memory_space<vmem>>, vector<8x2xf32>
    %cst_76 = arith.constant dense<0.000000e+00> : vector<8x2xf32>
    %258 = tpu.matmul %257, %256, %cst_76 {dimension_numbers = #tpu.dot_dimension_numbers<[1], [0], [0], [1], [0, 0, 1, 1], [], []>} : vector<8x2xf32>, vector<2x2xf32>, vector<8x2xf32> -> vector<8x2xf32>
    %c0_77 = arith.constant 0 : index
    %c0_78 = arith.constant 0 : index
    %259 = vector.load %arg14[%c0_77, %c0_78] : memref<8x1xf32, #tpu.memory_space<vmem>>, vector<8x1xf32>
    %260 = vector.broadcast %259 : vector<8x1xf32> to vector<8x2xf32>
    %261 = arith.addf %258, %260 : vector<8x2xf32>
    %cst_79 = arith.constant 0.000000e+00 : f32
    %262 = vector.broadcast %cst_79 : f32 to vector<8x2xf32>
    %263 = arith.subf %262, %261 : vector<8x2xf32>
    %264 = math.exp %263 : vector<8x2xf32>
    %cst_80 = arith.constant 1.000000e+00 : f32
    %265 = vector.broadcast %cst_80 : f32 to vector<8x2xf32>
    %266 = arith.addf %265, %264 : vector<8x2xf32>
    %cst_81 = arith.constant 1.000000e+00 : f32
    %267 = vector.broadcast %cst_81 : f32 to vector<8x2xf32>
    %268 = arith.divf %267, %266 : vector<8x2xf32>
    %269 = vector.extract_strided_slice %268 {offsets = [0, 0], sizes = [8, 1], strides = [1, 1]} : vector<8x2xf32> to vector<8x1xf32>
    %270 = vector.shape_cast %269 : vector<8x1xf32> to vector<8x1xf32>
    %271 = vector.broadcast %270 : vector<8x1xf32> to vector<8x512xf32>
    %272 = vector.extract_strided_slice %268 {offsets = [0, 1], sizes = [8, 1], strides = [1, 1]} : vector<8x2xf32> to vector<8x1xf32>
    %273 = vector.shape_cast %272 : vector<8x1xf32> to vector<8x1xf32>
    %274 = vector.broadcast %273 : vector<8x1xf32> to vector<8x512xf32>
    %275 = tpu.concatenate %271, %274 in 1 : vector<8x512xf32>, vector<8x512xf32> -> vector<8x1024xf32>
    %276 = arith.mulf %235, %275 : vector<8x1024xf32>
    %277 = arith.addf %0, %276 : vector<8x1024xf32>
    %c0_82 = arith.constant 0 : index
    %c0_83 = arith.constant 0 : index
    %278 = vector.load %arg15[%c0_82, %c0_83] : memref<8x1xf32, #tpu.memory_space<vmem>>, vector<8x1xf32>
    %c0_84 = arith.constant 0 : index
    %c0_85 = arith.constant 0 : index
    %279 = vector.load %arg16[%c0_84, %c0_85] : memref<8x1xf32, #tpu.memory_space<vmem>>, vector<8x1xf32>
    %cst_86 = arith.constant dense<0.000000e+00> : vector<8xf32>
    %280 = vector.multi_reduction <add>, %277, %cst_86 [1] : vector<8x1024xf32> to vector<8xf32>
    %281 = vector.shape_cast %280 : vector<8xf32> to vector<8x1xf32>
    %cst_87 = arith.constant 1.024000e+03 : f32
    %282 = vector.broadcast %cst_87 : f32 to vector<8x1xf32>
    %283 = arith.divf %281, %282 : vector<8x1xf32>
    %284 = vector.broadcast %283 : vector<8x1xf32> to vector<8x1024xf32>
    %285 = arith.subf %277, %284 : vector<8x1024xf32>
    %286 = vector.broadcast %283 : vector<8x1xf32> to vector<8x1024xf32>
    %287 = arith.subf %277, %286 : vector<8x1024xf32>
    %288 = arith.mulf %285, %287 : vector<8x1024xf32>
    %cst_88 = arith.constant dense<0.000000e+00> : vector<8xf32>
    %289 = vector.multi_reduction <add>, %288, %cst_88 [1] : vector<8x1024xf32> to vector<8xf32>
    %290 = vector.shape_cast %289 : vector<8xf32> to vector<8x1xf32>
    %cst_89 = arith.constant 1.024000e+03 : f32
    %291 = vector.broadcast %cst_89 : f32 to vector<8x1xf32>
    %292 = arith.divf %290, %291 : vector<8x1xf32>
    %cst_90 = arith.constant 9.99999974E-6 : f32
    %293 = vector.broadcast %cst_90 : f32 to vector<8x1xf32>
    %294 = arith.addf %292, %293 : vector<8x1xf32>
    %295 = math.rsqrt %294 : vector<8x1xf32>
    %296 = arith.mulf %278, %295 : vector<8x1xf32>
    %297 = arith.mulf %296, %283 : vector<8x1xf32>
    %298 = arith.subf %279, %297 : vector<8x1xf32>
    %299 = vector.broadcast %296 : vector<8x1xf32> to vector<8x1024xf32>
    %300 = arith.mulf %277, %299 : vector<8x1024xf32>
    %301 = vector.broadcast %298 : vector<8x1xf32> to vector<8x1024xf32>
    %302 = arith.addf %300, %301 : vector<8x1024xf32>
    %cst_91 = arith.constant 0.000000e+00 : f32
    %303 = vector.broadcast %cst_91 : f32 to vector<8x1024xf32>
    %304 = arith.maximumf %302, %303 : vector<8x1024xf32>
    %c0_92 = arith.constant 0 : index
    %c0_93 = arith.constant 0 : index
    %305 = vector.load %arg18[%c0_92, %c0_93] : memref<8x1024xf32, #tpu.memory_space<vmem>>, vector<8x1024xf32>
    tpu.vector_store %arg18[%c0_92, %c0_93], %304 {strides = array<i32>} : memref<8x1024xf32, #tpu.memory_space<vmem>>, vector<8x1024xf32>,
    return
  }
}

</mosaic_0001>

<llo_original>
// kernel: se_resblock_forward.1
$region0: #{se_resblock_forward.1}
  #allocation0 [shape = 'u32[]', space=smem, size = 0x4, offset = 0x4, fixed_abs, tag = 'smem constant byte address 0x4 - core index']
  #allocation1 [shape = 'u32[144,128]{1,0:T(1,128)}', space=vmem, size = 0x12000, scoped, tag = 'internal scratch']
  %s0 = inlined_call_operand.vmem [shape: f32[8,1024], index: 0, kind: input, shape index: {}]
  %s1 = inlined_call_operand.vmem [shape: bf16[8,8], index: 1, kind: input, shape index: {}]
  %s2 = inlined_call_operand.vmem [shape: f32[8,1], index: 2, kind: input, shape index: {}]
  %s3 = inlined_call_operand.vmem [shape: f32[8,1], index: 3, kind: input, shape index: {}]
  %s4 = inlined_call_operand.vmem [shape: f32[8,1], index: 4, kind: input, shape index: {}]
  %s5 = inlined_call_operand.vmem [shape: bf16[8,216], index: 5, kind: input, shape index: {}]
  %s6 = inlined_call_operand.vmem [shape: f32[8,1], index: 6, kind: input, shape index: {}]
  %s7 = inlined_call_operand.vmem [shape: f32[8,1], index: 7, kind: input, shape index: {}]
  %s8 = inlined_call_operand.vmem [shape: f32[8,1], index: 8, kind: input, shape index: {}]
  %s9 = inlined_call_operand.vmem [shape: bf16[8,8], index: 9, kind: input, shape index: {}]
  %s10 = inlined_call_operand.vmem [shape: f32[8,1], index: 10, kind: input, shape index: {}]
  %s11 = inlined_call_operand.vmem [shape: f32[2,8], index: 11, kind: input, shape index: {}]
  %s12 = inlined_call_operand.vmem [shape: f32[2,1], index: 12, kind: input, shape index: {}]
  %s13 = inlined_call_operand.vmem [shape: f32[8,2], index: 13, kind: input, shape index: {}]
  %s14 = inlined_call_operand.vmem [shape: f32[8,1], index: 14, kind: input, shape index: {}]
  %s15 = inlined_call_operand.vmem [shape: f32[8,1], index: 15, kind: input, shape index: {}]
  %s16 = inlined_call_operand.vmem [shape: f32[8,1], index: 16, kind: input, shape index: {}]
  %s17 = inlined_call_operand.vmem [shape: f32[27,1024], index: 17, kind: input, shape index: {}]
  %s18 = inlined_call_operand.vmem [shape: f32[8,1024], index: 18, kind: output, shape index: {}]
  %s19 = sld [smem:[#allocation0]]
  $region82: #{se_resblock_forward.1} parent=0
    _
  %s21 = ssub.s32 1, %s19
  %s22 = scalar_select 0, %s21, %s19
  // Predicated region
  $region2: #{se_resblock_forward.1} parent=0 // pred_check
    _
  $region3: #{se_resblock_forward.1} parent=0 // pred_check_branch
    %24 = sbr.rel (0) target = $region5
  $region4: #{se_resblock_forward.1} parent=0 // pred_region
    _
  $region5: #{se_resblock_forward.1} parent=0 // pred_fallthru
    _
  // Predicated region
  $region6: #{se_resblock_forward.1} parent=0 // pred_check
    _
  $region7: #{se_resblock_forward.1} parent=0 // pred_check_branch
    %26 = sbr.rel (0) target = $region9
  $region8: #{se_resblock_forward.1} parent=0 // pred_region
    _
  $region9: #{se_resblock_forward.1} parent=0 // pred_fallthru
    _
  // Predicated region
  $region10: #{se_resblock_forward.1} parent=0 // pred_check
    _
  $region11: #{se_resblock_forward.1} parent=0 // pred_check_branch
    %28 = sbr.rel (0) target = $region13
  $region12: #{se_resblock_forward.1} parent=0 // pred_region
    _
  $region13: #{se_resblock_forward.1} parent=0 // pred_fallthru
    _
  // Predicated region
  $region14: #{se_resblock_forward.1} parent=0 // pred_check
    _
  $region15: #{se_resblock_forward.1} parent=0 // pred_check_branch
    %30 = sbr.rel (0) target = $region17
  $region16: #{se_resblock_forward.1} parent=0 // pred_region
    _
  $region17: #{se_resblock_forward.1} parent=0 // pred_fallthru
    _
  // Predicated region
  $region18: #{se_resblock_forward.1} parent=0 // pred_check
    _
  $region19: #{se_resblock_forward.1} parent=0 // pred_check_branch
    %32 = sbr.rel (0) target = $region21
  $region20: #{se_resblock_forward.1} parent=0 // pred_region
    _
  $region21: #{se_resblock_forward.1} parent=0 // pred_fallthru
    _
  // Predicated region
  $region22: #{se_resblock_forward.1} parent=0 // pred_check
    _
  $region23: #{se_resblock_forward.1} parent=0 // pred_check_branch
    %34 = sbr.rel (0) target = $region25
  $region24: #{se_resblock_forward.1} parent=0 // pred_region
    _
  $region25: #{se_resblock_forward.1} parent=0 // pred_fallthru
    _
  // Predicated region
  $region26: #{se_resblock_forward.1} parent=0 // pred_check
    _
  $region27: #{se_resblock_forward.1} parent=0 // pred_check_branch
    %36 = sbr.rel (0) target = $region29
  $region28: #{se_resblock_forward.1} parent=0 // pred_region
    _
  $region29: #{se_resblock_forward.1} parent=0 // pred_fallthru
    _
  // Predicated region
  $region30: #{se_resblock_forward.1} parent=0 // pred_check
    _
  $region31: #{se_resblock_forward.1} parent=0 // pred_check_branch
    %38 = sbr.rel (0) target = $region33
  $region32: #{se_resblock_forward.1} parent=0 // pred_region
    _
  $region33: #{se_resblock_forward.1} parent=0 // pred_fallthru
    _
  // Predicated region
  $region34: #{se_resblock_forward.1} parent=0 // pred_check
    _
  $region35: #{se_resblock_forward.1} parent=0 // pred_check_branch
    %40 = sbr.rel (0) target = $region37
  $region36: #{se_resblock_forward.1} parent=0 // pred_region
    _
  $region37: #{se_resblock_forward.1} parent=0 // pred_fallthru
    _
  // Predicated region
  $region38: #{se_resblock_forward.1} parent=0 // pred_check
    _
  $region39: #{se_resblock_forward.1} parent=0 // pred_check_branch
    %42 = sbr.rel (0) target = $region41
  $region40: #{se_resblock_forward.1} parent=0 // pred_region
    _
  $region41: #{se_resblock_forward.1} parent=0 // pred_fallthru
    _
  // Predicated region
  $region42: #{se_resblock_forward.1} parent=0 // pred_check
    _
  $region43: #{se_resblock_forward.1} parent=0 // pred_check_branch
    %44 = sbr.rel (0) target = $region45
  $region44: #{se_resblock_forward.1} parent=0 // pred_region
    _
  $region45: #{se_resblock_forward.1} parent=0 // pred_fallthru
    _
  // Predicated region
  $region46: #{se_resblock_forward.1} parent=0 // pred_check
    _
  $region47: #{se_resblock_forward.1} parent=0 // pred_check_branch
    %46 = sbr.rel (0) target = $region49
  $region48: #{se_resblock_forward.1} parent=0 // pred_region
    _
  $region49: #{se_resblock_forward.1} parent=0 // pred_fallthru
    _
  // Predicated region
  $region50: #{se_resblock_forward.1} parent=0 // pred_check
    _
  $region51: #{se_resblock_forward.1} parent=0 // pred_check_branch
    %48 = sbr.rel (0) target = $region53
  $region52: #{se_resblock_forward.1} parent=0 // pred_region
    _
  $region53: #{se_resblock_forward.1} parent=0 // pred_fallthru
    _
  // Predicated region
  $region54: #{se_resblock_forward.1} parent=0 // pred_check
    _
  $region55: #{se_resblock_forward.1} parent=0 // pred_check_branch
    %50 = sbr.rel (0) target = $region57
  $region56: #{se_resblock_forward.1} parent=0 // pred_region
    _
  $region57: #{se_resblock_forward.1} parent=0 // pred_fallthru
    _
  // Predicated region
  $region58: #{se_resblock_forward.1} parent=0 // pred_check
    _
  $region59: #{se_resblock_forward.1} parent=0 // pred_check_branch
    %52 = sbr.rel (0) target = $region61
  $region60: #{se_resblock_forward.1} parent=0 // pred_region
    _
  $region61: #{se_resblock_forward.1} parent=0 // pred_fallthru
    _
  // Predicated region
  $region62: #{se_resblock_forward.1} parent=0 // pred_check
    _
  $region63: #{se_resblock_forward.1} parent=0 // pred_check_branch
    %54 = sbr.rel (0) target = $region65
  $region64: #{se_resblock_forward.1} parent=0 // pred_region
    _
  $region65: #{se_resblock_forward.1} parent=0 // pred_fallthru
    _
  // Predicated region
  $region66: #{se_resblock_forward.1} parent=0 // pred_check
    _
  $region67: #{se_resblock_forward.1} parent=0 // pred_check_branch
    %56 = sbr.rel (0) target = $region69
  $region68: #{se_resblock_forward.1} parent=0 // pred_region
    _
  $region69: #{se_resblock_forward.1} parent=0 // pred_fallthru
    _
  // Predicated region
  $region70: #{se_resblock_forward.1} parent=0 // pred_check
    _
  $region71: #{se_resblock_forward.1} parent=0 // pred_check_branch
    %58 = sbr.rel (0) target = $region73
  $region72: #{se_resblock_forward.1} parent=0 // pred_region
    _
  $region73: #{se_resblock_forward.1} parent=0 // pred_fallthru
    _
  %v60 = vld [vmem:[%s0] sm:$0xff]
  %v61 = vld [vmem:[%s0 + $0x8] sm:$0xff]
  %v62 = vld [vmem:[%s0 + $0x10] sm:$0xff]
  %v63 = vld [vmem:[%s0 + $0x18] sm:$0xff]
  %v64 = vld [vmem:[%s0 + $0x20] sm:$0xff]
  %v65 = vld [vmem:[%s0 + $0x28] sm:$0xff]
  %v66 = vld [vmem:[%s0 + $0x30] sm:$0xff]
  %v67 = vld [vmem:[%s0 + $0x38] sm:$0xff]
  %v68 = vld [vmem:[%s1] sm:$0xf]
  %v69 = vpack.c.bf16 %v60, %v60
  %v70 = vpack.c.bf16 %v61, %v61
  %v71 = vpack.c.bf16 %v62, %v62
  %v72 = vpack.c.bf16 %v63, %v63
  %v73 = vpack.c.bf16 %v64, %v64
  %v74 = vpack.c.bf16 %v65, %v65
  %v75 = vpack.c.bf16 %v66, %v66
  %v76 = vpack.c.bf16 %v67, %v67
  %v77 = vld [vmem:[%s2] sm:$0xff]
  %79 = vset.pattern.permute.xlu0 0
  %80 = vperm.xlu0 %79, %v77
  %v81 = vpop.permute.xlu0 %80
  %vm83 = vcmask 64512
  %v85 = vsel %vm83, %v68, 0
  %vm87 = vcmask 1043456
  %v89 = vsel %vm87, %v69, 0
  %v92 = vsel %vm87, %v70, 0
  %v95 = vsel %vm87, %v71, 0
  %v98 = vsel %vm87, %v72, 0
  %v101 = vsel %vm87, %v73, 0
  %v104 = vsel %vm87, %v74, 0
  %v107 = vsel %vm87, %v75, 0
  %v110 = vsel %vm87, %v76, 0
  %112 = vmatprep.subr.bf16.mxu0 %v92
  %113 = vmatpush1.bf16.msra.mxu0 %v89
  %114 = vmatprep.subr.bf16.mxu0 0
  %115 = vmatpush1.bf16.msra.mxu0 0
  %116 = vmatprep.subr.bf16.mxu0 0
  %117 = vmatpush1.bf16.msra.mxu0 0
  %118 = vmatprep.subr.bf16.mxu0 0
  %119 = vmatpush1.bf16.msra.mxu0 0
  %120 = vmatprep.subr.bf16.mxu0 0
  %121 = vmatpush1.bf16.msra.mxu0 0
  %122 = vmatprep.subr.bf16.mxu0 0
  %123 = vmatpush1.bf16.msra.mxu0 0
  %124 = vmatprep.subr.bf16.mxu0 0
  %125 = vmatpush1.bf16.msra.mxu0 0
  %126 = vmatprep.subr.bf16.mxu0 0
  %127 = vmatpush1.bf16.msra.mxu0 0
  %128 = vmatprep.subr.bf16.mxu0 0
  %129 = vmatpush1.bf16.msra.mxu0 0
  %130 = vmatprep.subr.bf16.mxu0 0
  %131 = vmatpush1.bf16.msra.mxu0 0
  %132 = vmatprep.subr.bf16.mxu0 0
  %133 = vmatpush1.bf16.msra.mxu0 0
  %134 = vmatprep.subr.bf16.mxu0 0
  %135 = vmatpush1.bf16.msra.mxu0 0
  %136 = vmatprep.subr.bf16.mxu0 0
  %137 = vmatpush1.bf16.msra.mxu0 0
  %138 = vmatprep.subr.bf16.mxu0 0
  %139 = vmatpush1.bf16.msra.mxu0 0
  %140 = vmatprep.subr.bf16.mxu0 0
  %141 = vmatpush1.bf16.msra.mxu0 0
  %142 = vmatprep.subr.bf16.mxu0 0
  %143 = vmatpush1.bf16.msra.mxu0 0
  %144 = vmatprep.mubr.bf16.mxu0 0
  %145 = vmatmul.mubr.bf16.gmra.mrb[0].mxu0 %v85
  %v146 = vpop.f32.mrb[0].mxu0
  %v147 = vadd.f32 %v81, %v146
  %v148 = vpop.f32.mrb[0].mxu0
  %v149 = vadd.f32 %v81, %v148
  %v150 = vpop.f32.mrb[0].mxu0
  %v151 = vpop.f32.mrb[0].mxu0
  %152 = vdwg.mxu0
  %153 = vmatprep.subr.bf16.mxu0 %v98
  %154 = vmatpush1.bf16.msra.mxu0 %v95
  %155 = vmatprep.subr.bf16.mxu0 0
  %156 = vmatpush1.bf16.msra.mxu0 0
  %157 = vmatprep.subr.bf16.mxu0 0
  %158 = vmatpush1.bf16.msra.mxu0 0
  %159 = vmatprep.subr.bf16.mxu0 0
  %160 = vmatpush1.bf16.msra.mxu0 0
  %161 = vmatprep.subr.bf16.mxu0 0
  %162 = vmatpush1.bf16.msra.mxu0 0
  %163 = vmatprep.subr.bf16.mxu0 0
  %164 = vmatpush1.bf16.msra.mxu0 0
  %165 = vmatprep.subr.bf16.mxu0 0
  %166 = vmatpush1.bf16.msra.mxu0 0
  %167 = vmatprep.subr.bf16.mxu0 0
  %168 = vmatpush1.bf16.msra.mxu0 0
  %169 = vmatprep.subr.bf16.mxu0 0
  %170 = vmatpush1.bf16.msra.mxu0 0
  %171 = vmatprep.subr.bf16.mxu0 0
  %172 = vmatpush1.bf16.msra.mxu0 0
  %173 = vmatprep.subr.bf16.mxu0 0
  %174 = vmatpush1.bf16.msra.mxu0 0
  %175 = vmatprep.subr.bf16.mxu0 0
  %176 = vmatpush1.bf16.msra.mxu0 0
  %177 = vmatprep.subr.bf16.mxu0 0
  %178 = vmatpush1.bf16.msra.mxu0 0
  %179 = vmatprep.subr.bf16.mxu0 0
  %180 = vmatpush1.bf16.msra.mxu0 0
  %181 = vmatprep.subr.bf16.mxu0 0
  %182 = vmatpush1.bf16.msra.mxu0 0
  %183 = vmatprep.subr.bf16.mxu0 0
  %184 = vmatpush1.bf16.msra.mxu0 0
  %185 = vmatprep.mubr.bf16.mxu0 0
  %186 = vmatmul.mubr.bf16.gmra.mrb[0].mxu0 %v85
  %v187 = vpop.f32.mrb[0].mxu0
  %v188 = vadd.f32 %v81, %v187
  %v189 = vpop.f32.mrb[0].mxu0
  %v190 = vadd.f32 %v81, %v189
  %v191 = vpop.f32.mrb[0].mxu0
  %v192 = vpop.f32.mrb[0].mxu0
  %193 = vdwg.mxu0
  %194 = vmatprep.subr.bf16.mxu0 %v104
  %195 = vmatpush1.bf16.msra.mxu0 %v101
  %196 = vmatprep.subr.bf16.mxu0 0
  %197 = vmatpush1.bf16.msra.mxu0 0
  %198 = vmatprep.subr.bf16.mxu0 0
  %199 = vmatpush1.bf16.msra.mxu0 0
  %200 = vmatprep.subr.bf16.mxu0 0
  %201 = vmatpush1.bf16.msra.mxu0 0
  %202 = vmatprep.subr.bf16.mxu0 0
  %203 = vmatpush1.bf16.msra.mxu0 0
  %204 = vmatprep.subr.bf16.mxu0 0
  %205 = vmatpush1.bf16.msra.mxu0 0
  %206 = vmatprep.subr.bf16.mxu0 0
  %207 = vmatpush1.bf16.msra.mxu0 0
  %208 = vmatprep.subr.bf16.mxu0 0
  %209 = vmatpush1.bf16.msra.mxu0 0
  %210 = vmatprep.subr.bf16.mxu0 0
  %211 = vmatpush1.bf16.msra.mxu0 0
  %212 = vmatprep.subr.bf16.mxu0 0
  %213 = vmatpush1.bf16.msra.mxu0 0
  %214 = vmatprep.subr.bf16.mxu0 0
  %215 = vmatpush1.bf16.msra.mxu0 0
  %216 = vmatprep.subr.bf16.mxu0 0
  %217 = vmatpush1.bf16.msra.mxu0 0
  %218 = vmatprep.subr.bf16.mxu0 0
  %219 = vmatpush1.bf16.msra.mxu0 0
  %220 = vmatprep.subr.bf16.mxu0 0
  %221 = vmatpush1.bf16.msra.mxu0 0
  %222 = vmatprep.subr.bf16.mxu0 0
  %223 = vmatpush1.bf16.msra.mxu0 0
  %224 = vmatprep.subr.bf16.mxu0 0
  %225 = vmatpush1.bf16.msra.mxu0 0
  %226 = vmatprep.mubr.bf16.mxu0 0
  %227 = vmatmul.mubr.bf16.gmra.mrb[0].mxu0 %v85
  %v228 = vpop.f32.mrb[0].mxu0
  %v229 = vadd.f32 %v81, %v228
  %v230 = vpop.f32.mrb[0].mxu0
  %v231 = vadd.f32 %v81, %v230
  %v232 = vpop.f32.mrb[0].mxu0
  %v233 = vpop.f32.mrb[0].mxu0
  %234 = vdwg.mxu0
  %235 = vmatprep.subr.bf16.mxu0 %v110
  %236 = vmatpush1.bf16.msra.mxu0 %v107
  %237 = vmatprep.subr.bf16.mxu0 0
  %238 = vmatpush1.bf16.msra.mxu0 0
  %239 = vmatprep.subr.bf16.mxu0 0
  %240 = vmatpush1.bf16.msra.mxu0 0
  %241 = vmatprep.subr.bf16.mxu0 0
  %242 = vmatpush1.bf16.msra.mxu0 0
  %243 = vmatprep.subr.bf16.mxu0 0
  %244 = vmatpush1.bf16.msra.mxu0 0
  %245 = vmatprep.subr.bf16.mxu0 0
  %246 = vmatpush1.bf16.msra.mxu0 0
  %247 = vmatprep.subr.bf16.mxu0 0
  %248 = vmatpush1.bf16.msra.mxu0 0
  %249 = vmatprep.subr.bf16.mxu0 0
  %250 = vmatpush1.bf16.msra.mxu0 0
  %251 = vmatprep.subr.bf16.mxu0 0
  %252 = vmatpush1.bf16.msra.mxu0 0
  %253 = vmatprep.subr.bf16.mxu0 0
  %254 = vmatpush1.bf16.msra.mxu0 0
  %255 = vmatprep.subr.bf16.mxu0 0
  %256 = vmatpush1.bf16.msra.mxu0 0
  %257 = vmatprep.subr.bf16.mxu0 0
  %258 = vmatpush1.bf16.msra.mxu0 0
  %259 = vmatprep.subr.bf16.mxu0 0
  %260 = vmatpush1.bf16.msra.mxu0 0
  %261 = vmatprep.subr.bf16.mxu0 0
  %262 = vmatpush1.bf16.msra.mxu0 0
  %263 = vmatprep.subr.bf16.mxu0 0
  %264 = vmatpush1.bf16.msra.mxu0 0
  %265 = vmatprep.subr.bf16.mxu0 0
  %266 = vmatpush1.bf16.msra.mxu0 0
  %267 = vmatprep.mubr.bf16.mxu0 0
  %268 = vmatmul.mubr.bf16.gmra.mrb[0].mxu0 %v85
  %v269 = vpop.f32.mrb[0].mxu0
  %v270 = vadd.f32 %v81, %v269
  %v271 = vpop.f32.mrb[0].mxu0
  %v272 = vadd.f32 %v81, %v271
  %v273 = vpop.f32.mrb[0].mxu0
  %v274 = vpop.f32.mrb[0].mxu0
  %275 = vdwg.mxu0
  %v276 = vld [vmem:[%s3] sm:$0xff]
  %v277 = vld [vmem:[%s4] sm:$0xff]
  %v278 = vadd.f32 %v147, %v149
  %v279 = vadd.f32 %v278, %v188
  %v280 = vadd.f32 %v279, %v190
  %v281 = vadd.f32 %v280, %v229
  %v282 = vadd.f32 %v281, %v231
  %v283 = vadd.f32 %v282, %v270
  %v284 = vadd.f32 %v283, %v272
  %285 = vadd.xlane.f32.xlu0 %v284
  %v286 = vpop.xlane.xlu0 %285
  %v287 = vrcp.pop 1024.0
  %v288 = vmul.f32 %v286, %v287
  %v289 = vsub.f32 %v147, %v288
  %v290 = vsub.f32 %v149, %v288
  %v291 = vsub.f32 %v188, %v288
  %v292 = vsub.f32 %v190, %v288
  %v293 = vsub.f32 %v229, %v288
  %v294 = vsub.f32 %v231, %v288
  %v295 = vsub.f32 %v270, %v288
  %v296 = vsub.f32 %v272, %v288
  %v297 = vmul.f32 %v289, %v289
  %v298 = vmul.f32 %v290, %v290
  %v299 = vmul.f32 %v291, %v291
  %v300 = vmul.f32 %v292, %v292
  %v301 = vmul.f32 %v293, %v293
  %v302 = vmul.f32 %v294, %v294
  %v303 = vmul.f32 %v295, %v295
  %v304 = vmul.f32 %v296, %v296
  %v305 = vadd.f32 %v297, %v298
  %v306 = vadd.f32 %v305, %v299
  %v307 = vadd.f32 %v306, %v300
  %v308 = vadd.f32 %v307, %v301
  %v309 = vadd.f32 %v308, %v302
  %v310 = vadd.f32 %v309, %v303
  %v311 = vadd.f32 %v310, %v304
  %312 = vadd.xlane.f32.xlu0 %v311
  %v313 = vpop.xlane.xlu0 %312
  %v314 = vmul.f32 %v313, %v287
  %v315 = vadd.f32 %v314, 1e-05
  %v316 = vrsqrt.pop %v315
  %v317 = vmul.f32 %v276, %v316
  %v318 = vmul.f32 %v317, %v288
  %v319 = vsub.f32 %v277, %v318
  %321 = vset.pattern.permute.xlu0 0
  %322 = vperm.xlu0 %321, %v317
  %v323 = vpop.permute.xlu0 %322
  %v325 = vmul.f32 %v147, %v323
  %v326 = vmul.f32 %v149, %v323
  %v327 = vmul.f32 %v188, %v323
  %v328 = vmul.f32 %v190, %v323
  %v329 = vmul.f32 %v229, %v323
  %v330 = vmul.f32 %v231, %v323
  %v331 = vmul.f32 %v270, %v323
  %v332 = vmul.f32 %v272, %v323
  %334 = vset.pattern.permute.xlu0 0
  %335 = vperm.xlu0 %334, %v319
  %v336 = vpop.permute.xlu0 %335
  %v338 = vadd.f32 %v325, %v336
  %v339 = vadd.f32 %v326, %v336
  %v340 = vadd.f32 %v327, %v336
  %v341 = vadd.f32 %v328, %v336
  %v342 = vadd.f32 %v329, %v336
  %v343 = vadd.f32 %v330, %v336
  %v344 = vadd.f32 %v331, %v336
  %v345 = vadd.f32 %v332, %v336
  %v346 = vmax.f32 %v338, 0.0
  %v347 = vmax.f32 %v339, 0.0
  %v348 = vmax.f32 %v340, 0.0
  %v349 = vmax.f32 %v341, 0.0
  %v350 = vmax.f32 %v342, 0.0
  %v351 = vmax.f32 %v343, 0.0
  %v352 = vmax.f32 %v344, 0.0
  %v353 = vmax.f32 %v345, 0.0
  %v354 = vld [vmem:[%s17] sm:$0xff]
  %v355 = vld [vmem:[%s17 + $0x8] sm:$0xff]
  %v356 = vld [vmem:[%s17 + $0x10] sm:$0xff]
  %v357 = vld [vmem:[%s17 + $0x18] sm:$0xff]
  %v358 = vld [vmem:[%s17 + $0x20] sm:$0xff]
  %v359 = vld [vmem:[%s17 + $0x28] sm:$0xff]
  %v360 = vld [vmem:[%s17 + $0x30] sm:$0xff]
  %v361 = vld [vmem:[%s17 + $0x38] sm:$0xff]
  %v362 = vld [vmem:[%s17 + $0x40] sm:$0xff]
  %v363 = vld [vmem:[%s17 + $0x48] sm:$0xff]
  %v364 = vld [vmem:[%s17 + $0x50] sm:$0xff]
  %v365 = vld [vmem:[%s17 + $0x58] sm:$0xff]
  %v366 = vld [vmem:[%s17 + $0x60] sm:$0xff]
  %v367 = vld [vmem:[%s17 + $0x68] sm:$0xff]
  %v368 = vld [vmem:[%s17 + $0x70] sm:$0xff]
  %v369 = vld [vmem:[%s17 + $0x78] sm:$0xff]
  %v370 = vld [vmem:[%s17 + $0x80] sm:$0xff]
  %v371 = vld [vmem:[%s17 + $0x88] sm:$0xff]
  %v372 = vld [vmem:[%s17 + $0x90] sm:$0xff]
  %v373 = vld [vmem:[%s17 + $0x98] sm:$0xff]
  %v374 = vld [vmem:[%s17 + $0xa0] sm:$0xff]
  %v375 = vld [vmem:[%s17 + $0xa8] sm:$0xff]
  %v376 = vld [vmem:[%s17 + $0xb0] sm:$0xff]
  %v377 = vld [vmem:[%s17 + $0xb8] sm:$0xff]
  %v378 = vld [vmem:[%s17 + $0xc0] sm:$0x7]
  %v379 = vld [vmem:[%s17 + $0xc8] sm:$0x7]
  %v380 = vld [vmem:[%s17 + $0xd0] sm:$0x7]
  %v381 = vld [vmem:[%s17 + $0xd8] sm:$0x7]
  %v382 = vld [vmem:[%s17 + $0xe0] sm:$0x7]
  %v383 = vld [vmem:[%s17 + $0xe8] sm:$0x7]
  %v384 = vld [vmem:[%s17 + $0xf0] sm:$0x7]
  %v385 = vld [vmem:[%s17 + $0xf8] sm:$0x7]
  %394 = vrot.lane.b32.xlu0 %v346, 73
  %v395 = vpop.permute.xlu0 %394
  %396 = vrot.lane.b32.xlu0 %v347, 73
  %v397 = vpop.permute.xlu0 %396
  %398 = vrot.lane.b32.xlu0 %v348, 73
  %v399 = vpop.permute.xlu0 %398
  %400 = vrot.lane.b32.xlu0 %v349, 73
  %v401 = vpop.permute.xlu0 %400
  %402 = vrot.lane.b32.xlu0 %v350, 73
  %v403 = vpop.permute.xlu0 %402
  %404 = vrot.lane.b32.xlu0 %v351, 73
  %v405 = vpop.permute.xlu0 %404
  %406 = vrot.lane.b32.xlu0 %v352, 73
  %v407 = vpop.permute.xlu0 %406
  %408 = vrot.lane.b32.xlu0 %v353, 73
  %v409 = vpop.permute.xlu0 %408
  %vm410 = vcmask 596992
  %v411 = vsel %vm410, %v395, %v397
  %v412 = vsel %vm410, %v397, %v399
  %v413 = vsel %vm410, %v399, %v401
  %v414 = vsel %vm410, %v401, %v403
  %v415 = vsel %vm410, %v403, %v405
  %v416 = vsel %vm410, %v405, %v407
  %v417 = vsel %vm410, %v407, %v409
  %v426 = vsel %vm410, 0.0, %v395
  %v427 = vlaneseq
  %v428 = vshrl.u32 %v427, 7
  %v429 = vsub.s32 0, %v428
  %v430 = vrot.slane %v354, %v429
  %v431 = vlaneseq
  %v432 = vshrl.u32 %v431, 7
  %v433 = vsub.s32 0, %v432
  %v434 = vrot.slane %v355, %v433
  %v435 = vlaneseq
  %v436 = vshrl.u32 %v435, 7
  %v437 = vsub.s32 0, %v436
  %v438 = vrot.slane %v356, %v437
  %v439 = vlaneseq
  %v440 = vshrl.u32 %v439, 7
  %v441 = vsub.s32 0, %v440
  %v442 = vrot.slane %v357, %v441
  %v443 = vlaneseq
  %v444 = vshrl.u32 %v443, 7
  %v445 = vsub.s32 0, %v444
  %v446 = vrot.slane %v358, %v445
  %v447 = vlaneseq
  %v448 = vshrl.u32 %v447, 7
  %v449 = vsub.s32 0, %v448
  %v450 = vrot.slane %v359, %v449
  %v451 = vlaneseq
  %v452 = vshrl.u32 %v451, 7
  %v453 = vsub.s32 0, %v452
  %v454 = vrot.slane %v360, %v453
  %v455 = vlaneseq
  %v456 = vshrl.u32 %v455, 7
  %v457 = vsub.s32 0, %v456
  %v458 = vrot.slane %v361, %v457
  %v459 = vmul.f32 %v426, %v430
  %v460 = vmul.f32 %v411, %v434
  %v461 = vmul.f32 %v412, %v438
  %v462 = vmul.f32 %v413, %v442
  %v463 = vmul.f32 %v414, %v446
  %v464 = vmul.f32 %v415, %v450
  %v465 = vmul.f32 %v416, %v454
  %v466 = vmul.f32 %v417, %v458
  %467 = vrot.lane.b32.xlu0 %v346, 72
  %v468 = vpop.permute.xlu0 %467
  %469 = vrot.lane.b32.xlu0 %v347, 72
  %v470 = vpop.permute.xlu0 %469
  %471 = vrot.lane.b32.xlu0 %v348, 72
  %v472 = vpop.permute.xlu0 %471
  %473 = vrot.lane.b32.xlu0 %v349, 72
  %v474 = vpop.permute.xlu0 %473
  %475 = vrot.lane.b32.xlu0 %v350, 72
  %v476 = vpop.permute.xlu0 %475
  %477 = vrot.lane.b32.xlu0 %v351, 72
  %v478 = vpop.permute.xlu0 %477
  %479 = vrot.lane.b32.xlu0 %v352, 72
  %v480 = vpop.permute.xlu0 %479
  %481 = vrot.lane.b32.xlu0 %v353, 72
  %v482 = vpop.permute.xlu0 %481
  %vm483 = vcmask 588800
  %v484 = vsel %vm483, %v468, %v470
  %v485 = vsel %vm483, %v470, %v472
  %v486 = vsel %vm483, %v472, %v474
  %v487 = vsel %vm483, %v474, %v476
  %v488 = vsel %vm483, %v476, %v478
  %v489 = vsel %vm483, %v478, %v480
  %v490 = vsel %vm483, %v480, %v482
  %v499 = vsel %vm483, 0.0, %v468
  %v500 = vlaneseq
  %v501 = vshrl.u32 %v500, 7
  %v502 = vsub.s32 1, %v501
  %v503 = vrot.slane %v354, %v502
  %v504 = vlaneseq
  %v505 = vshrl.u32 %v504, 7
  %v506 = vsub.s32 1, %v505
  %v507 = vrot.slane %v355, %v506
  %v508 = vlaneseq
  %v509 = vshrl.u32 %v508, 7
  %v510 = vsub.s32 1, %v509
  %v511 = vrot.slane %v356, %v510
  %v512 = vlaneseq
  %v513 = vshrl.u32 %v512, 7
  %v514 = vsub.s32 1, %v513
  %v515 = vrot.slane %v357, %v514
  %v516 = vlaneseq
  %v517 = vshrl.u32 %v516, 7
  %v518 = vsub.s32 1, %v517
  %v519 = vrot.slane %v358, %v518
  %v520 = vlaneseq
  %v521 = vshrl.u32 %v520, 7
  %v522 = vsub.s32 1, %v521
  %v523 = vrot.slane %v359, %v522
  %v524 = vlaneseq
  %v525 = vshrl.u32 %v524, 7
  %v526 = vsub.s32 1, %v525
  %v527 = vrot.slane %v360, %v526
  %v528 = vlaneseq
  %v529 = vshrl.u32 %v528, 7
  %v530 = vsub.s32 1, %v529
  %v531 = vrot.slane %v361, %v530
  %v532 = vmul.f32 %v499, %v503
  %v533 = vmul.f32 %v484, %v507
  %v534 = vmul.f32 %v485, %v511
  %v535 = vmul.f32 %v486, %v515
  %v536 = vmul.f32 %v487, %v519
  %v537 = vmul.f32 %v488, %v523
  %v538 = vmul.f32 %v489, %v527
  %v539 = vmul.f32 %v490, %v531
  %540 = vrot.lane.b32.xlu0 %v346, 71
  %v541 = vpop.permute.xlu0 %540
  %542 = vrot.lane.b32.xlu0 %v347, 71
  %v543 = vpop.permute.xlu0 %542
  %544 = vrot.lane.b32.xlu0 %v348, 71
  %v545 = vpop.permute.xlu0 %544
  %546 = vrot.lane.b32.xlu0 %v349, 71
  %v547 = vpop.permute.xlu0 %546
  %548 = vrot.lane.b32.xlu0 %v350, 71
  %v549 = vpop.permute.xlu0 %548
  %550 = vrot.lane.b32.xlu0 %v351, 71
  %v551 = vpop.permute.xlu0 %550
  %552 = vrot.lane.b32.xlu0 %v352, 71
  %v553 = vpop.permute.xlu0 %552
  %554 = vrot.lane.b32.xlu0 %v353, 71
  %v555 = vpop.permute.xlu0 %554
  %vm556 = vcmask 580608
  %v557 = vsel %vm556, %v541, %v543
  %v558 = vsel %vm556, %v543, %v545
  %v559 = vsel %vm556, %v545, %v547
  %v560 = vsel %vm556, %v547, %v549
  %v561 = vsel %vm556, %v549, %v551
  %v562 = vsel %vm556, %v551, %v553
  %v563 = vsel %vm556, %v553, %v555
  %v572 = vsel %vm556, 0.0, %v541
  %v573 = vlaneseq
  %v574 = vshrl.u32 %v573, 7
  %v575 = vsub.s32 2, %v574
  %v576 = vrot.slane %v354, %v575
  %v577 = vlaneseq
  %v578 = vshrl.u32 %v577, 7
  %v579 = vsub.s32 2, %v578
  %v580 = vrot.slane %v355, %v579
  %v581 = vlaneseq
  %v582 = vshrl.u32 %v581, 7
  %v583 = vsub.s32 2, %v582
  %v584 = vrot.slane %v356, %v583
  %v585 = vlaneseq
  %v586 = vshrl.u32 %v585, 7
  %v587 = vsub.s32 2, %v586
  %v588 = vrot.slane %v357, %v587
  %v589 = vlaneseq
  %v590 = vshrl.u32 %v589, 7
  %v591 = vsub.s32 2, %v590
  %v592 = vrot.slane %v358, %v591
  %v593 = vlaneseq
  %v594 = vshrl.u32 %v593, 7
  %v595 = vsub.s32 2, %v594
  %v596 = vrot.slane %v359, %v595
  %v597 = vlaneseq
  %v598 = vshrl.u32 %v597, 7
  %v599 = vsub.s32 2, %v598
  %v600 = vrot.slane %v360, %v599
  %v601 = vlaneseq
  %v602 = vshrl.u32 %v601, 7
  %v603 = vsub.s32 2, %v602
  %v604 = vrot.slane %v361, %v603
  %v605 = vmul.f32 %v572, %v576
  %v606 = vmul.f32 %v557, %v580
  %v607 = vmul.f32 %v558, %v584
  %v608 = vmul.f32 %v559, %v588
  %v609 = vmul.f32 %v560, %v592
  %v610 = vmul.f32 %v561, %v596
  %v611 = vmul.f32 %v562, %v600
  %v612 = vmul.f32 %v563, %v604
  %613 = vrot.lane.b32.xlu0 %v346, 65
  %v614 = vpop.permute.xlu0 %613
  %615 = vrot.lane.b32.xlu0 %v347, 65
  %v616 = vpop.permute.xlu0 %615
  %617 = vrot.lane.b32.xlu0 %v348, 65
  %v618 = vpop.permute.xlu0 %617
  %619 = vrot.lane.b32.xlu0 %v349, 65
  %v620 = vpop.permute.xlu0 %619
  %621 = vrot.lane.b32.xlu0 %v350, 65
  %v622 = vpop.permute.xlu0 %621
  %623 = vrot.lane.b32.xlu0 %v351, 65
  %v624 = vpop.permute.xlu0 %623
  %625 = vrot.lane.b32.xlu0 %v352, 65
  %v626 = vpop.permute.xlu0 %625
  %627 = vrot.lane.b32.xlu0 %v353, 65
  %v628 = vpop.permute.xlu0 %627
  %vm629 = vcmask 531456
  %v630 = vsel %vm629, %v614, %v616
  %v631 = vsel %vm629, %v616, %v618
  %v632 = vsel %vm629, %v618, %v620
  %v633 = vsel %vm629, %v620, %v622
  %v634 = vsel %vm629, %v622, %v624
  %v635 = vsel %vm629, %v624, %v626
  %v636 = vsel %vm629, %v626, %v628
  %v645 = vsel %vm629, 0.0, %v614
  %v646 = vlaneseq
  %v647 = vshrl.u32 %v646, 7
  %v648 = vsub.s32 3, %v647
  %v649 = vrot.slane %v354, %v648
  %v650 = vlaneseq
  %v651 = vshrl.u32 %v650, 7
  %v652 = vsub.s32 3, %v651
  %v653 = vrot.slane %v355, %v652
  %v654 = vlaneseq
  %v655 = vshrl.u32 %v654, 7
  %v656 = vsub.s32 3, %v655
  %v657 = vrot.slane %v356, %v656
  %v658 = vlaneseq
  %v659 = vshrl.u32 %v658, 7
  %v660 = vsub.s32 3, %v659
  %v661 = vrot.slane %v357, %v660
  %v662 = vlaneseq
  %v663 = vshrl.u32 %v662, 7
  %v664 = vsub.s32 3, %v663
  %v665 = vrot.slane %v358, %v664
  %v666 = vlaneseq
  %v667 = vshrl.u32 %v666, 7
  %v668 = vsub.s32 3, %v667
  %v669 = vrot.slane %v359, %v668
  %v670 = vlaneseq
  %v671 = vshrl.u32 %v670, 7
  %v672 = vsub.s32 3, %v671
  %v673 = vrot.slane %v360, %v672
  %v674 = vlaneseq
  %v675 = vshrl.u32 %v674, 7
  %v676 = vsub.s32 3, %v675
  %v677 = vrot.slane %v361, %v676
  %v678 = vmul.f32 %v645, %v649
  %v679 = vmul.f32 %v630, %v653
  %v680 = vmul.f32 %v631, %v657
  %v681 = vmul.f32 %v632, %v661
  %v682 = vmul.f32 %v633, %v665
  %v683 = vmul.f32 %v634, %v669
  %v684 = vmul.f32 %v635, %v673
  %v685 = vmul.f32 %v636, %v677
  %686 = vrot.lane.b32.xlu0 %v346, 64
  %v687 = vpop.permute.xlu0 %686
  %688 = vrot.lane.b32.xlu0 %v347, 64
  %v689 = vpop.permute.xlu0 %688
  %690 = vrot.lane.b32.xlu0 %v348, 64
  %v691 = vpop.permute.xlu0 %690
  %692 = vrot.lane.b32.xlu0 %v349, 64
  %v693 = vpop.permute.xlu0 %692
  %694 = vrot.lane.b32.xlu0 %v350, 64
  %v695 = vpop.permute.xlu0 %694
  %696 = vrot.lane.b32.xlu0 %v351, 64
  %v697 = vpop.permute.xlu0 %696
  %698 = vrot.lane.b32.xlu0 %v352, 64
  %v699 = vpop.permute.xlu0 %698
  %700 = vrot.lane.b32.xlu0 %v353, 64
  %v701 = vpop.permute.xlu0 %700
  %vm702 = vcmask 523264
  %v703 = vsel %vm702, %v687, %v689
  %v704 = vsel %vm702, %v689, %v691
  %v705 = vsel %vm702, %v691, %v693
  %v706 = vsel %vm702, %v693, %v695
  %v707 = vsel %vm702, %v695, %v697
  %v708 = vsel %vm702, %v697, %v699
  %v709 = vsel %vm702, %v699, %v701
  %v718 = vsel %vm702, 0.0, %v687
  %v719 = vlaneseq
  %v720 = vshrl.u32 %v719, 7
  %v721 = vsub.s32 4, %v720
  %v722 = vrot.slane %v354, %v721
  %v723 = vlaneseq
  %v724 = vshrl.u32 %v723, 7
  %v725 = vsub.s32 4, %v724
  %v726 = vrot.slane %v355, %v725
  %v727 = vlaneseq
  %v728 = vshrl.u32 %v727, 7
  %v729 = vsub.s32 4, %v728
  %v730 = vrot.slane %v356, %v729
  %v731 = vlaneseq
  %v732 = vshrl.u32 %v731, 7
  %v733 = vsub.s32 4, %v732
  %v734 = vrot.slane %v357, %v733
  %v735 = vlaneseq
  %v736 = vshrl.u32 %v735, 7
  %v737 = vsub.s32 4, %v736
  %v738 = vrot.slane %v358, %v737
  %v739 = vlaneseq
  %v740 = vshrl.u32 %v739, 7
  %v741 = vsub.s32 4, %v740
  %v742 = vrot.slane %v359, %v741
  %v743 = vlaneseq
  %v744 = vshrl.u32 %v743, 7
  %v745 = vsub.s32 4, %v744
  %v746 = vrot.slane %v360, %v745
  %v747 = vlaneseq
  %v748 = vshrl.u32 %v747, 7
  %v749 = vsub.s32 4, %v748
  %v750 = vrot.slane %v361, %v749
  %v751 = vmul.f32 %v718, %v722
  %v752 = vmul.f32 %v703, %v726
  %v753 = vmul.f32 %v704, %v730
  %v754 = vmul.f32 %v705, %v734
  %v755 = vmul.f32 %v706, %v738
  %v756 = vmul.f32 %v707, %v742
  %v757 = vmul.f32 %v708, %v746
  %v758 = vmul.f32 %v709, %v750
  %759 = vrot.lane.b32.xlu0 %v346, 63
  %v760 = vpop.permute.xlu0 %759
  %761 = vrot.lane.b32.xlu0 %v347, 63
  %v762 = vpop.permute.xlu0 %761
  %763 = vrot.lane.b32.xlu0 %v348, 63
  %v764 = vpop.permute.xlu0 %763
  %765 = vrot.lane.b32.xlu0 %v349, 63
  %v766 = vpop.permute.xlu0 %765
  %767 = vrot.lane.b32.xlu0 %v350, 63
  %v768 = vpop.permute.xlu0 %767
  %769 = vrot.lane.b32.xlu0 %v351, 63
  %v770 = vpop.permute.xlu0 %769
  %771 = vrot.lane.b32.xlu0 %v352, 63
  %v772 = vpop.permute.xlu0 %771
  %773 = vrot.lane.b32.xlu0 %v353, 63
  %v774 = vpop.permute.xlu0 %773
  %vm775 = vcmask 515072
  %v776 = vsel %vm775, %v760, %v762
  %v777 = vsel %vm775, %v762, %v764
  %v778 = vsel %vm775, %v764, %v766
  %v779 = vsel %vm775, %v766, %v768
  %v780 = vsel %vm775, %v768, %v770
  %v781 = vsel %vm775, %v770, %v772
  %v782 = vsel %vm775, %v772, %v774
  %v791 = vsel %vm775, 0.0, %v760
  %v792 = vlaneseq
  %v793 = vshrl.u32 %v792, 7
  %v794 = vsub.s32 5, %v793
  %v795 = vrot.slane %v354, %v794
  %v796 = vlaneseq
  %v797 = vshrl.u32 %v796, 7
  %v798 = vsub.s32 5, %v797
  %v799 = vrot.slane %v355, %v798
  %v800 = vlaneseq
  %v801 = vshrl.u32 %v800, 7
  %v802 = vsub.s32 5, %v801
  %v803 = vrot.slane %v356, %v802
  %v804 = vlaneseq
  %v805 = vshrl.u32 %v804, 7
  %v806 = vsub.s32 5, %v805
  %v807 = vrot.slane %v357, %v806
  %v808 = vlaneseq
  %v809 = vshrl.u32 %v808, 7
  %v810 = vsub.s32 5, %v809
  %v811 = vrot.slane %v358, %v810
  %v812 = vlaneseq
  %v813 = vshrl.u32 %v812, 7
  %v814 = vsub.s32 5, %v813
  %v815 = vrot.slane %v359, %v814
  %v816 = vlaneseq
  %v817 = vshrl.u32 %v816, 7
  %v818 = vsub.s32 5, %v817
  %v819 = vrot.slane %v360, %v818
  %v820 = vlaneseq
  %v821 = vshrl.u32 %v820, 7
  %v822 = vsub.s32 5, %v821
  %v823 = vrot.slane %v361, %v822
  %v824 = vmul.f32 %v791, %v795
  %v825 = vmul.f32 %v776, %v799
  %v826 = vmul.f32 %v777, %v803
  %v827 = vmul.f32 %v778, %v807
  %v828 = vmul.f32 %v779, %v811
  %v829 = vmul.f32 %v780, %v815
  %v830 = vmul.f32 %v781, %v819
  %v831 = vmul.f32 %v782, %v823
  %832 = vrot.lane.b32.xlu0 %v346, 57
  %v833 = vpop.permute.xlu0 %832
  %834 = vrot.lane.b32.xlu0 %v347, 57
  %v835 = vpop.permute.xlu0 %834
  %836 = vrot.lane.b32.xlu0 %v348, 57
  %v837 = vpop.permute.xlu0 %836
  %838 = vrot.lane.b32.xlu0 %v349, 57
  %v839 = vpop.permute.xlu0 %838
  %840 = vrot.lane.b32.xlu0 %v350, 57
  %v841 = vpop.permute.xlu0 %840
  %842 = vrot.lane.b32.xlu0 %v351, 57
  %v843 = vpop.permute.xlu0 %842
  %844 = vrot.lane.b32.xlu0 %v352, 57
  %v845 = vpop.permute.xlu0 %844
  %846 = vrot.lane.b32.xlu0 %v353, 57
  %v847 = vpop.permute.xlu0 %846
  %vm848 = vcmask 465920
  %v849 = vsel %vm848, %v833, %v835
  %v850 = vsel %vm848, %v835, %v837
  %v851 = vsel %vm848, %v837, %v839
  %v852 = vsel %vm848, %v839, %v841
  %v853 = vsel %vm848, %v841, %v843
  %v854 = vsel %vm848, %v843, %v845
  %v855 = vsel %vm848, %v845, %v847
  %v864 = vsel %vm848, 0.0, %v833
  %v865 = vlaneseq
  %v866 = vshrl.u32 %v865, 7
  %v867 = vsub.s32 6, %v866
  %v868 = vrot.slane %v354, %v867
  %v869 = vlaneseq
  %v870 = vshrl.u32 %v869, 7
  %v871 = vsub.s32 6, %v870
  %v872 = vrot.slane %v355, %v871
  %v873 = vlaneseq
  %v874 = vshrl.u32 %v873, 7
  %v875 = vsub.s32 6, %v874
  %v876 = vrot.slane %v356, %v875
  %v877 = vlaneseq
  %v878 = vshrl.u32 %v877, 7
  %v879 = vsub.s32 6, %v878
  %v880 = vrot.slane %v357, %v879
  %v881 = vlaneseq
  %v882 = vshrl.u32 %v881, 7
  %v883 = vsub.s32 6, %v882
  %v884 = vrot.slane %v358, %v883
  %v885 = vlaneseq
  %v886 = vshrl.u32 %v885, 7
  %v887 = vsub.s32 6, %v886
  %v888 = vrot.slane %v359, %v887
  %v889 = vlaneseq
  %v890 = vshrl.u32 %v889, 7
  %v891 = vsub.s32 6, %v890
  %v892 = vrot.slane %v360, %v891
  %v893 = vlaneseq
  %v894 = vshrl.u32 %v893, 7
  %v895 = vsub.s32 6, %v894
  %v896 = vrot.slane %v361, %v895
  %v897 = vmul.f32 %v864, %v868
  %v898 = vmul.f32 %v849, %v872
  %v899 = vmul.f32 %v850, %v876
  %v900 = vmul.f32 %v851, %v880
  %v901 = vmul.f32 %v852, %v884
  %v902 = vmul.f32 %v853, %v888
  %v903 = vmul.f32 %v854, %v892
  %v904 = vmul.f32 %v855, %v896
  %905 = vrot.lane.b32.xlu0 %v346, 56
  %v906 = vpop.permute.xlu0 %905
  %907 = vrot.lane.b32.xlu0 %v347, 56
  %v908 = vpop.permute.xlu0 %907
  %909 = vrot.lane.b32.xlu0 %v348, 56
  %v910 = vpop.permute.xlu0 %909
  %911 = vrot.lane.b32.xlu0 %v349, 56
  %v912 = vpop.permute.xlu0 %911
  %913 = vrot.lane.b32.xlu0 %v350, 56
  %v914 = vpop.permute.xlu0 %913
  %915 = vrot.lane.b32.xlu0 %v351, 56
  %v916 = vpop.permute.xlu0 %915
  %917 = vrot.lane.b32.xlu0 %v352, 56
  %v918 = vpop.permute.xlu0 %917
  %919 = vrot.lane.b32.xlu0 %v353, 56
  %v920 = vpop.permute.xlu0 %919
  %vm921 = vcmask 457728
  %v922 = vsel %vm921, %v906, %v908
  %v923 = vsel %vm921, %v908, %v910
  %v924 = vsel %vm921, %v910, %v912
  %v925 = vsel %vm921, %v912, %v914
  %v926 = vsel %vm921, %v914, %v916
  %v927 = vsel %vm921, %v916, %v918
  %v928 = vsel %vm921, %v918, %v920
  %v937 = vsel %vm921, 0.0, %v906
  %v938 = vlaneseq
  %v939 = vshrl.u32 %v938, 7
  %v940 = vsub.s32 7, %v939
  %v941 = vrot.slane %v354, %v940
  %v942 = vlaneseq
  %v943 = vshrl.u32 %v942, 7
  %v944 = vsub.s32 7, %v943
  %v945 = vrot.slane %v355, %v944
  %v946 = vlaneseq
  %v947 = vshrl.u32 %v946, 7
  %v948 = vsub.s32 7, %v947
  %v949 = vrot.slane %v356, %v948
  %v950 = vlaneseq
  %v951 = vshrl.u32 %v950, 7
  %v952 = vsub.s32 7, %v951
  %v953 = vrot.slane %v357, %v952
  %v954 = vlaneseq
  %v955 = vshrl.u32 %v954, 7
  %v956 = vsub.s32 7, %v955
  %v957 = vrot.slane %v358, %v956
  %v958 = vlaneseq
  %v959 = vshrl.u32 %v958, 7
  %v960 = vsub.s32 7, %v959
  %v961 = vrot.slane %v359, %v960
  %v962 = vlaneseq
  %v963 = vshrl.u32 %v962, 7
  %v964 = vsub.s32 7, %v963
  %v965 = vrot.slane %v360, %v964
  %v966 = vlaneseq
  %v967 = vshrl.u32 %v966, 7
  %v968 = vsub.s32 7, %v967
  %v969 = vrot.slane %v361, %v968
  %v970 = vmul.f32 %v937, %v941
  %v971 = vmul.f32 %v922, %v945
  %v972 = vmul.f32 %v923, %v949
  %v973 = vmul.f32 %v924, %v953
  %v974 = vmul.f32 %v925, %v957
  %v975 = vmul.f32 %v926, %v961
  %v976 = vmul.f32 %v927, %v965
  %v977 = vmul.f32 %v928, %v969
  %978 = vrot.lane.b32.xlu0 %v346, 55
  %v979 = vpop.permute.xlu0 %978
  %980 = vrot.lane.b32.xlu0 %v347, 55
  %v981 = vpop.permute.xlu0 %980
  %982 = vrot.lane.b32.xlu0 %v348, 55
  %v983 = vpop.permute.xlu0 %982
  %984 = vrot.lane.b32.xlu0 %v349, 55
  %v985 = vpop.permute.xlu0 %984
  %986 = vrot.lane.b32.xlu0 %v350, 55
  %v987 = vpop.permute.xlu0 %986
  %988 = vrot.lane.b32.xlu0 %v351, 55
  %v989 = vpop.permute.xlu0 %988
  %990 = vrot.lane.b32.xlu0 %v352, 55
  %v991 = vpop.permute.xlu0 %990
  %992 = vrot.lane.b32.xlu0 %v353, 55
  %v993 = vpop.permute.xlu0 %992
  %vm994 = vcmask 449536
  %v995 = vsel %vm994, %v979, %v981
  %v996 = vsel %vm994, %v981, %v983
  %v997 = vsel %vm994, %v983, %v985
  %v998 = vsel %vm994, %v985, %v987
  %v999 = vsel %vm994, %v987, %v989
  %v1000 = vsel %vm994, %v989, %v991
  %v1001 = vsel %vm994, %v991, %v993
  %v1010 = vsel %vm994, 0.0, %v979
  %v1011 = vlaneseq
  %v1012 = vshrl.u32 %v1011, 7
  %v1013 = vsub.s32 0, %v1012
  %v1014 = vrot.slane %v362, %v1013
  %v1015 = vlaneseq
  %v1016 = vshrl.u32 %v1015, 7
  %v1017 = vsub.s32 0, %v1016
  %v1018 = vrot.slane %v363, %v1017
  %v1019 = vlaneseq
  %v1020 = vshrl.u32 %v1019, 7
  %v1021 = vsub.s32 0, %v1020
  %v1022 = vrot.slane %v364, %v1021
  %v1023 = vlaneseq
  %v1024 = vshrl.u32 %v1023, 7
  %v1025 = vsub.s32 0, %v1024
  %v1026 = vrot.slane %v365, %v1025
  %v1027 = vlaneseq
  %v1028 = vshrl.u32 %v1027, 7
  %v1029 = vsub.s32 0, %v1028
  %v1030 = vrot.slane %v366, %v1029
  %v1031 = vlaneseq
  %v1032 = vshrl.u32 %v1031, 7
  %v1033 = vsub.s32 0, %v1032
  %v1034 = vrot.slane %v367, %v1033
  %v1035 = vlaneseq
  %v1036 = vshrl.u32 %v1035, 7
  %v1037 = vsub.s32 0, %v1036
  %v1038 = vrot.slane %v368, %v1037
  %v1039 = vlaneseq
  %v1040 = vshrl.u32 %v1039, 7
  %v1041 = vsub.s32 0, %v1040
  %v1042 = vrot.slane %v369, %v1041
  %v1043 = vmul.f32 %v1010, %v1014
  %v1044 = vmul.f32 %v995, %v1018
  %v1045 = vmul.f32 %v996, %v1022
  %v1046 = vmul.f32 %v997, %v1026
  %v1047 = vmul.f32 %v998, %v1030
  %v1048 = vmul.f32 %v999, %v1034
  %v1049 = vmul.f32 %v1000, %v1038
  %v1050 = vmul.f32 %v1001, %v1042
  %1051 = vrot.lane.b32.xlu0 %v346, 9
  %v1052 = vpop.permute.xlu0 %1051
  %1053 = vrot.lane.b32.xlu0 %v347, 9
  %v1054 = vpop.permute.xlu0 %1053
  %1055 = vrot.lane.b32.xlu0 %v348, 9
  %v1056 = vpop.permute.xlu0 %1055
  %1057 = vrot.lane.b32.xlu0 %v349, 9
  %v1058 = vpop.permute.xlu0 %1057
  %1059 = vrot.lane.b32.xlu0 %v350, 9
  %v1060 = vpop.permute.xlu0 %1059
  %1061 = vrot.lane.b32.xlu0 %v351, 9
  %v1062 = vpop.permute.xlu0 %1061
  %1063 = vrot.lane.b32.xlu0 %v352, 9
  %v1064 = vpop.permute.xlu0 %1063
  %1065 = vrot.lane.b32.xlu0 %v353, 9
  %v1066 = vpop.permute.xlu0 %1065
  %vm1067 = vcmask 72704
  %v1068 = vsel %vm1067, %v1052, %v1054
  %v1069 = vsel %vm1067, %v1054, %v1056
  %v1070 = vsel %vm1067, %v1056, %v1058
  %v1071 = vsel %vm1067, %v1058, %v1060
  %v1072 = vsel %vm1067, %v1060, %v1062
  %v1073 = vsel %vm1067, %v1062, %v1064
  %v1074 = vsel %vm1067, %v1064, %v1066
  %v1083 = vsel %vm1067, 0.0, %v1052
  %v1084 = vlaneseq
  %v1085 = vshrl.u32 %v1084, 7
  %v1086 = vsub.s32 1, %v1085
  %v1087 = vrot.slane %v362, %v1086
  %v1088 = vlaneseq
  %v1089 = vshrl.u32 %v1088, 7
  %v1090 = vsub.s32 1, %v1089
  %v1091 = vrot.slane %v363, %v1090
  %v1092 = vlaneseq
  %v1093 = vshrl.u32 %v1092, 7
  %v1094 = vsub.s32 1, %v1093
  %v1095 = vrot.slane %v364, %v1094
  %v1096 = vlaneseq
  %v1097 = vshrl.u32 %v1096, 7
  %v1098 = vsub.s32 1, %v1097
  %v1099 = vrot.slane %v365, %v1098
  %v1100 = vlaneseq
  %v1101 = vshrl.u32 %v1100, 7
  %v1102 = vsub.s32 1, %v1101
  %v1103 = vrot.slane %v366, %v1102
  %v1104 = vlaneseq
  %v1105 = vshrl.u32 %v1104, 7
  %v1106 = vsub.s32 1, %v1105
  %v1107 = vrot.slane %v367, %v1106
  %v1108 = vlaneseq
  %v1109 = vshrl.u32 %v1108, 7
  %v1110 = vsub.s32 1, %v1109
  %v1111 = vrot.slane %v368, %v1110
  %v1112 = vlaneseq
  %v1113 = vshrl.u32 %v1112, 7
  %v1114 = vsub.s32 1, %v1113
  %v1115 = vrot.slane %v369, %v1114
  %v1116 = vmul.f32 %v1083, %v1087
  %v1117 = vmul.f32 %v1068, %v1091
  %v1118 = vmul.f32 %v1069, %v1095
  %v1119 = vmul.f32 %v1070, %v1099
  %v1120 = vmul.f32 %v1071, %v1103
  %v1121 = vmul.f32 %v1072, %v1107
  %v1122 = vmul.f32 %v1073, %v1111
  %v1123 = vmul.f32 %v1074, %v1115
  %1124 = vrot.lane.b32.xlu0 %v346, 8
  %v1125 = vpop.permute.xlu0 %1124
  %1126 = vrot.lane.b32.xlu0 %v347, 8
  %v1127 = vpop.permute.xlu0 %1126
  %1128 = vrot.lane.b32.xlu0 %v348, 8
  %v1129 = vpop.permute.xlu0 %1128
  %1130 = vrot.lane.b32.xlu0 %v349, 8
  %v1131 = vpop.permute.xlu0 %1130
  %1132 = vrot.lane.b32.xlu0 %v350, 8
  %v1133 = vpop.permute.xlu0 %1132
  %1134 = vrot.lane.b32.xlu0 %v351, 8
  %v1135 = vpop.permute.xlu0 %1134
  %1136 = vrot.lane.b32.xlu0 %v352, 8
  %v1137 = vpop.permute.xlu0 %1136
  %1138 = vrot.lane.b32.xlu0 %v353, 8
  %v1139 = vpop.permute.xlu0 %1138
  %v1140 = vsel %vm83, %v1125, %v1127
  %v1141 = vsel %vm83, %v1127, %v1129
  %v1142 = vsel %vm83, %v1129, %v1131
  %v1143 = vsel %vm83, %v1131, %v1133
  %v1144 = vsel %vm83, %v1133, %v1135
  %v1145 = vsel %vm83, %v1135, %v1137
  %v1146 = vsel %vm83, %v1137, %v1139
  %v1155 = vsel %vm83, 0.0, %v1125
  %v1156 = vlaneseq
  %v1157 = vshrl.u32 %v1156, 7
  %v1158 = vsub.s32 2, %v1157
  %v1159 = vrot.slane %v362, %v1158
  %v1160 = vlaneseq
  %v1161 = vshrl.u32 %v1160, 7
  %v1162 = vsub.s32 2, %v1161
  %v1163 = vrot.slane %v363, %v1162
  %v1164 = vlaneseq
  %v1165 = vshrl.u32 %v1164, 7
  %v1166 = vsub.s32 2, %v1165
  %v1167 = vrot.slane %v364, %v1166
  %v1168 = vlaneseq
  %v1169 = vshrl.u32 %v1168, 7
  %v1170 = vsub.s32 2, %v1169
  %v1171 = vrot.slane %v365, %v1170
  %v1172 = vlaneseq
  %v1173 = vshrl.u32 %v1172, 7
  %v1174 = vsub.s32 2, %v1173
  %v1175 = vrot.slane %v366, %v1174
  %v1176 = vlaneseq
  %v1177 = vshrl.u32 %v1176, 7
  %v1178 = vsub.s32 2, %v1177
  %v1179 = vrot.slane %v367, %v1178
  %v1180 = vlaneseq
  %v1181 = vshrl.u32 %v1180, 7
  %v1182 = vsub.s32 2, %v1181
  %v1183 = vrot.slane %v368, %v1182
  %v1184 = vlaneseq
  %v1185 = vshrl.u32 %v1184, 7
  %v1186 = vsub.s32 2, %v1185
  %v1187 = vrot.slane %v369, %v1186
  %v1188 = vmul.f32 %v1155, %v1159
  %v1189 = vmul.f32 %v1140, %v1163
  %v1190 = vmul.f32 %v1141, %v1167
  %v1191 = vmul.f32 %v1142, %v1171
  %v1192 = vmul.f32 %v1143, %v1175
  %v1193 = vmul.f32 %v1144, %v1179
  %v1194 = vmul.f32 %v1145, %v1183
  %v1195 = vmul.f32 %v1146, %v1187
  %1196 = vrot.lane.b32.xlu0 %v346, 7
  %v1197 = vpop.permute.xlu0 %1196
  %1198 = vrot.lane.b32.xlu0 %v347, 7
  %v1199 = vpop.permute.xlu0 %1198
  %1200 = vrot.lane.b32.xlu0 %v348, 7
  %v1201 = vpop.permute.xlu0 %1200
  %1202 = vrot.lane.b32.xlu0 %v349, 7
  %v1203 = vpop.permute.xlu0 %1202
  %1204 = vrot.lane.b32.xlu0 %v350, 7
  %v1205 = vpop.permute.xlu0 %1204
  %1206 = vrot.lane.b32.xlu0 %v351, 7
  %v1207 = vpop.permute.xlu0 %1206
  %1208 = vrot.lane.b32.xlu0 %v352, 7
  %v1209 = vpop.permute.xlu0 %1208
  %1210 = vrot.lane.b32.xlu0 %v353, 7
  %v1211 = vpop.permute.xlu0 %1210
  %vm1212 = vcmask 56320
  %v1213 = vsel %vm1212, %v1197, %v1199
  %v1214 = vsel %vm1212, %v1199, %v1201
  %v1215 = vsel %vm1212, %v1201, %v1203
  %v1216 = vsel %vm1212, %v1203, %v1205
  %v1217 = vsel %vm1212, %v1205, %v1207
  %v1218 = vsel %vm1212, %v1207, %v1209
  %v1219 = vsel %vm1212, %v1209, %v1211
  %v1228 = vsel %vm1212, 0.0, %v1197
  %v1229 = vlaneseq
  %v1230 = vshrl.u32 %v1229, 7
  %v1231 = vsub.s32 3, %v1230
  %v1232 = vrot.slane %v362, %v1231
  %v1233 = vlaneseq
  %v1234 = vshrl.u32 %v1233, 7
  %v1235 = vsub.s32 3, %v1234
  %v1236 = vrot.slane %v363, %v1235
  %v1237 = vlaneseq
  %v1238 = vshrl.u32 %v1237, 7
  %v1239 = vsub.s32 3, %v1238
  %v1240 = vrot.slane %v364, %v1239
  %v1241 = vlaneseq
  %v1242 = vshrl.u32 %v1241, 7
  %v1243 = vsub.s32 3, %v1242
  %v1244 = vrot.slane %v365, %v1243
  %v1245 = vlaneseq
  %v1246 = vshrl.u32 %v1245, 7
  %v1247 = vsub.s32 3, %v1246
  %v1248 = vrot.slane %v366, %v1247
  %v1249 = vlaneseq
  %v1250 = vshrl.u32 %v1249, 7
  %v1251 = vsub.s32 3, %v1250
  %v1252 = vrot.slane %v367, %v1251
  %v1253 = vlaneseq
  %v1254 = vshrl.u32 %v1253, 7
  %v1255 = vsub.s32 3, %v1254
  %v1256 = vrot.slane %v368, %v1255
  %v1257 = vlaneseq
  %v1258 = vshrl.u32 %v1257, 7
  %v1259 = vsub.s32 3, %v1258
  %v1260 = vrot.slane %v369, %v1259
  %v1261 = vmul.f32 %v1228, %v1232
  %v1262 = vmul.f32 %v1213, %v1236
  %v1263 = vmul.f32 %v1214, %v1240
  %v1264 = vmul.f32 %v1215, %v1244
  %v1265 = vmul.f32 %v1216, %v1248
  %v1266 = vmul.f32 %v1217, %v1252
  %v1267 = vmul.f32 %v1218, %v1256
  %v1268 = vmul.f32 %v1219, %v1260
  %1269 = vrot.lane.b32.xlu0 %v346, 1
  %v1270 = vpop.permute.xlu0 %1269
  %1271 = vrot.lane.b32.xlu0 %v347, 1
  %v1272 = vpop.permute.xlu0 %1271
  %1273 = vrot.lane.b32.xlu0 %v348, 1
  %v1274 = vpop.permute.xlu0 %1273
  %1275 = vrot.lane.b32.xlu0 %v349, 1
  %v1276 = vpop.permute.xlu0 %1275
  %1277 = vrot.lane.b32.xlu0 %v350, 1
  %v1278 = vpop.permute.xlu0 %1277
  %1279 = vrot.lane.b32.xlu0 %v351, 1
  %v1280 = vpop.permute.xlu0 %1279
  %1281 = vrot.lane.b32.xlu0 %v352, 1
  %v1282 = vpop.permute.xlu0 %1281
  %1283 = vrot.lane.b32.xlu0 %v353, 1
  %v1284 = vpop.permute.xlu0 %1283
  %vm1285 = vcmask 7168
  %v1286 = vsel %vm1285, %v1270, %v1272
  %v1287 = vsel %vm1285, %v1272, %v1274
  %v1288 = vsel %vm1285, %v1274, %v1276
  %v1289 = vsel %vm1285, %v1276, %v1278
  %v1290 = vsel %vm1285, %v1278, %v1280
  %v1291 = vsel %vm1285, %v1280, %v1282
  %v1292 = vsel %vm1285, %v1282, %v1284
  %v1301 = vsel %vm1285, 0.0, %v1270
  %v1302 = vlaneseq
  %v1303 = vshrl.u32 %v1302, 7
  %v1304 = vsub.s32 4, %v1303
  %v1305 = vrot.slane %v362, %v1304
  %v1306 = vlaneseq
  %v1307 = vshrl.u32 %v1306, 7
  %v1308 = vsub.s32 4, %v1307
  %v1309 = vrot.slane %v363, %v1308
  %v1310 = vlaneseq
  %v1311 = vshrl.u32 %v1310, 7
  %v1312 = vsub.s32 4, %v1311
  %v1313 = vrot.slane %v364, %v1312
  %v1314 = vlaneseq
  %v1315 = vshrl.u32 %v1314, 7
  %v1316 = vsub.s32 4, %v1315
  %v1317 = vrot.slane %v365, %v1316
  %v1318 = vlaneseq
  %v1319 = vshrl.u32 %v1318, 7
  %v1320 = vsub.s32 4, %v1319
  %v1321 = vrot.slane %v366, %v1320
  %v1322 = vlaneseq
  %v1323 = vshrl.u32 %v1322, 7
  %v1324 = vsub.s32 4, %v1323
  %v1325 = vrot.slane %v367, %v1324
  %v1326 = vlaneseq
  %v1327 = vshrl.u32 %v1326, 7
  %v1328 = vsub.s32 4, %v1327
  %v1329 = vrot.slane %v368, %v1328
  %v1330 = vlaneseq
  %v1331 = vshrl.u32 %v1330, 7
  %v1332 = vsub.s32 4, %v1331
  %v1333 = vrot.slane %v369, %v1332
  %v1334 = vmul.f32 %v1301, %v1305
  %v1335 = vmul.f32 %v1286, %v1309
  %v1336 = vmul.f32 %v1287, %v1313
  %v1337 = vmul.f32 %v1288, %v1317
  %v1338 = vmul.f32 %v1289, %v1321
  %v1339 = vmul.f32 %v1290, %v1325
  %v1340 = vmul.f32 %v1291, %v1329
  %v1341 = vmul.f32 %v1292, %v1333
  %v1342 = vlaneseq
  %v1343 = vshrl.u32 %v1342, 7
  %v1344 = vsub.s32 5, %v1343
  %v1345 = vrot.slane %v362, %v1344
  %v1346 = vlaneseq
  %v1347 = vshrl.u32 %v1346, 7
  %v1348 = vsub.s32 5, %v1347
  %v1349 = vrot.slane %v363, %v1348
  %v1350 = vlaneseq
  %v1351 = vshrl.u32 %v1350, 7
  %v1352 = vsub.s32 5, %v1351
  %v1353 = vrot.slane %v364, %v1352
  %v1354 = vlaneseq
  %v1355 = vshrl.u32 %v1354, 7
  %v1356 = vsub.s32 5, %v1355
  %v1357 = vrot.slane %v365, %v1356
  %v1358 = vlaneseq
  %v1359 = vshrl.u32 %v1358, 7
  %v1360 = vsub.s32 5, %v1359
  %v1361 = vrot.slane %v366, %v1360
  %v1362 = vlaneseq
  %v1363 = vshrl.u32 %v1362, 7
  %v1364 = vsub.s32 5, %v1363
  %v1365 = vrot.slane %v367, %v1364
  %v1366 = vlaneseq
  %v1367 = vshrl.u32 %v1366, 7
  %v1368 = vsub.s32 5, %v1367
  %v1369 = vrot.slane %v368, %v1368
  %v1370 = vlaneseq
  %v1371 = vshrl.u32 %v1370, 7
  %v1372 = vsub.s32 5, %v1371
  %v1373 = vrot.slane %v369, %v1372
  %v1374 = vmul.f32 %v346, %v1345
  %v1375 = vmul.f32 %v347, %v1349
  %v1376 = vmul.f32 %v348, %v1353
  %v1377 = vmul.f32 %v349, %v1357
  %v1378 = vmul.f32 %v350, %v1361
  %v1379 = vmul.f32 %v351, %v1365
  %v1380 = vmul.f32 %v352, %v1369
  %v1381 = vmul.f32 %v353, %v1373
  %1382 = vrot.lane.b32.xlu0 %v346, 127
  %v1383 = vpop.permute.xlu0 %1382
  %1384 = vrot.lane.b32.xlu0 %v347, 127
  %v1385 = vpop.permute.xlu0 %1384
  %1386 = vrot.lane.b32.xlu0 %v348, 127
  %v1387 = vpop.permute.xlu0 %1386
  %1388 = vrot.lane.b32.xlu0 %v349, 127
  %v1389 = vpop.permute.xlu0 %1388
  %1390 = vrot.lane.b32.xlu0 %v350, 127
  %v1391 = vpop.permute.xlu0 %1390
  %1392 = vrot.lane.b32.xlu0 %v351, 127
  %v1393 = vpop.permute.xlu0 %1392
  %1394 = vrot.lane.b32.xlu0 %v352, 127
  %v1395 = vpop.permute.xlu0 %1394
  %1396 = vrot.lane.b32.xlu0 %v353, 127
  %v1397 = vpop.permute.xlu0 %1396
  %vm1398 = vcmask 1039360
  %v1399 = vsel %vm1398, %v1383, %v1385
  %v1400 = vsel %vm1398, %v1385, %v1387
  %v1401 = vsel %vm1398, %v1387, %v1389
  %v1402 = vsel %vm1398, %v1389, %v1391
  %v1403 = vsel %vm1398, %v1391, %v1393
  %v1404 = vsel %vm1398, %v1393, %v1395
  %v1405 = vsel %vm1398, %v1395, %v1397
  %v1414 = vsel %vm1398, %v1397, 0.0
  %v1415 = vlaneseq
  %v1416 = vshrl.u32 %v1415, 7
  %v1417 = vsub.s32 6, %v1416
  %v1418 = vrot.slane %v362, %v1417
  %v1419 = vlaneseq
  %v1420 = vshrl.u32 %v1419, 7
  %v1421 = vsub.s32 6, %v1420
  %v1422 = vrot.slane %v363, %v1421
  %v1423 = vlaneseq
  %v1424 = vshrl.u32 %v1423, 7
  %v1425 = vsub.s32 6, %v1424
  %v1426 = vrot.slane %v364, %v1425
  %v1427 = vlaneseq
  %v1428 = vshrl.u32 %v1427, 7
  %v1429 = vsub.s32 6, %v1428
  %v1430 = vrot.slane %v365, %v1429
  %v1431 = vlaneseq
  %v1432 = vshrl.u32 %v1431, 7
  %v1433 = vsub.s32 6, %v1432
  %v1434 = vrot.slane %v366, %v1433
  %v1435 = vlaneseq
  %v1436 = vshrl.u32 %v1435, 7
  %v1437 = vsub.s32 6, %v1436
  %v1438 = vrot.slane %v367, %v1437
  %v1439 = vlaneseq
  %v1440 = vshrl.u32 %v1439, 7
  %v1441 = vsub.s32 6, %v1440
  %v1442 = vrot.slane %v368, %v1441
  %v1443 = vlaneseq
  %v1444 = vshrl.u32 %v1443, 7
  %v1445 = vsub.s32 6, %v1444
  %v1446 = vrot.slane %v369, %v1445
  %v1447 = vmul.f32 %v1399, %v1418
  %v1448 = vmul.f32 %v1400, %v1422
  %v1449 = vmul.f32 %v1401, %v1426
  %v1450 = vmul.f32 %v1402, %v1430
  %v1451 = vmul.f32 %v1403, %v1434
  %v1452 = vmul.f32 %v1404, %v1438
  %v1453 = vmul.f32 %v1405, %v1442
  %v1454 = vmul.f32 %v1414, %v1446
  %1455 = vrot.lane.b32.xlu0 %v346, 121
  %v1456 = vpop.permute.xlu0 %1455
  %1457 = vrot.lane.b32.xlu0 %v347, 121
  %v1458 = vpop.permute.xlu0 %1457
  %1459 = vrot.lane.b32.xlu0 %v348, 121
  %v1460 = vpop.permute.xlu0 %1459
  %1461 = vrot.lane.b32.xlu0 %v349, 121
  %v1462 = vpop.permute.xlu0 %1461
  %1463 = vrot.lane.b32.xlu0 %v350, 121
  %v1464 = vpop.permute.xlu0 %1463
  %1465 = vrot.lane.b32.xlu0 %v351, 121
  %v1466 = vpop.permute.xlu0 %1465
  %1467 = vrot.lane.b32.xlu0 %v352, 121
  %v1468 = vpop.permute.xlu0 %1467
  %1469 = vrot.lane.b32.xlu0 %v353, 121
  %v1470 = vpop.permute.xlu0 %1469
  %vm1471 = vcmask 990208
  %v1472 = vsel %vm1471, %v1456, %v1458
  %v1473 = vsel %vm1471, %v1458, %v1460
  %v1474 = vsel %vm1471, %v1460, %v1462
  %v1475 = vsel %vm1471, %v1462, %v1464
  %v1476 = vsel %vm1471, %v1464, %v1466
  %v1477 = vsel %vm1471, %v1466, %v1468
  %v1478 = vsel %vm1471, %v1468, %v1470
  %v1487 = vsel %vm1471, %v1470, 0.0
  %v1488 = vlaneseq
  %v1489 = vshrl.u32 %v1488, 7
  %v1490 = vsub.s32 7, %v1489
  %v1491 = vrot.slane %v362, %v1490
  %v1492 = vlaneseq
  %v1493 = vshrl.u32 %v1492, 7
  %v1494 = vsub.s32 7, %v1493
  %v1495 = vrot.slane %v363, %v1494
  %v1496 = vlaneseq
  %v1497 = vshrl.u32 %v1496, 7
  %v1498 = vsub.s32 7, %v1497
  %v1499 = vrot.slane %v364, %v1498
  %v1500 = vlaneseq
  %v1501 = vshrl.u32 %v1500, 7
  %v1502 = vsub.s32 7, %v1501
  %v1503 = vrot.slane %v365, %v1502
  %v1504 = vlaneseq
  %v1505 = vshrl.u32 %v1504, 7
  %v1506 = vsub.s32 7, %v1505
  %v1507 = vrot.slane %v366, %v1506
  %v1508 = vlaneseq
  %v1509 = vshrl.u32 %v1508, 7
  %v1510 = vsub.s32 7, %v1509
  %v1511 = vrot.slane %v367, %v1510
  %v1512 = vlaneseq
  %v1513 = vshrl.u32 %v1512, 7
  %v1514 = vsub.s32 7, %v1513
  %v1515 = vrot.slane %v368, %v1514
  %v1516 = vlaneseq
  %v1517 = vshrl.u32 %v1516, 7
  %v1518 = vsub.s32 7, %v1517
  %v1519 = vrot.slane %v369, %v1518
  %v1520 = vmul.f32 %v1472, %v1491
  %v1521 = vmul.f32 %v1473, %v1495
  %v1522 = vmul.f32 %v1474, %v1499
  %v1523 = vmul.f32 %v1475, %v1503
  %v1524 = vmul.f32 %v1476, %v1507
  %v1525 = vmul.f32 %v1477, %v1511
  %v1526 = vmul.f32 %v1478, %v1515
  %v1527 = vmul.f32 %v1487, %v1519
  %1528 = vrot.lane.b32.xlu0 %v346, 120
  %v1529 = vpop.permute.xlu0 %1528
  %1530 = vrot.lane.b32.xlu0 %v347, 120
  %v1531 = vpop.permute.xlu0 %1530
  %1532 = vrot.lane.b32.xlu0 %v348, 120
  %v1533 = vpop.permute.xlu0 %1532
  %1534 = vrot.lane.b32.xlu0 %v349, 120
  %v1535 = vpop.permute.xlu0 %1534
  %1536 = vrot.lane.b32.xlu0 %v350, 120
  %v1537 = vpop.permute.xlu0 %1536
  %1538 = vrot.lane.b32.xlu0 %v351, 120
  %v1539 = vpop.permute.xlu0 %1538
  %1540 = vrot.lane.b32.xlu0 %v352, 120
  %v1541 = vpop.permute.xlu0 %1540
  %1542 = vrot.lane.b32.xlu0 %v353, 120
  %v1543 = vpop.permute.xlu0 %1542
  %vm1544 = vcmask 982016
  %v1545 = vsel %vm1544, %v1529, %v1531
  %v1546 = vsel %vm1544, %v1531, %v1533
  %v1547 = vsel %vm1544, %v1533, %v1535
  %v1548 = vsel %vm1544, %v1535, %v1537
  %v1549 = vsel %vm1544, %v1537, %v1539
  %v1550 = vsel %vm1544, %v1539, %v1541
  %v1551 = vsel %vm1544, %v1541, %v1543
  %v1560 = vsel %vm1544, %v1543, 0.0
  %v1561 = vlaneseq
  %v1562 = vshrl.u32 %v1561, 7
  %v1563 = vsub.s32 0, %v1562
  %v1564 = vrot.slane %v370, %v1563
  %v1565 = vlaneseq
  %v1566 = vshrl.u32 %v1565, 7
  %v1567 = vsub.s32 0, %v1566
  %v1568 = vrot.slane %v371, %v1567
  %v1569 = vlaneseq
  %v1570 = vshrl.u32 %v1569, 7
  %v1571 = vsub.s32 0, %v1570
  %v1572 = vrot.slane %v372, %v1571
  %v1573 = vlaneseq
  %v1574 = vshrl.u32 %v1573, 7
  %v1575 = vsub.s32 0, %v1574
  %v1576 = vrot.slane %v373, %v1575
  %v1577 = vlaneseq
  %v1578 = vshrl.u32 %v1577, 7
  %v1579 = vsub.s32 0, %v1578
  %v1580 = vrot.slane %v374, %v1579
  %v1581 = vlaneseq
  %v1582 = vshrl.u32 %v1581, 7
  %v1583 = vsub.s32 0, %v1582
  %v1584 = vrot.slane %v375, %v1583
  %v1585 = vlaneseq
  %v1586 = vshrl.u32 %v1585, 7
  %v1587 = vsub.s32 0, %v1586
  %v1588 = vrot.slane %v376, %v1587
  %v1589 = vlaneseq
  %v1590 = vshrl.u32 %v1589, 7
  %v1591 = vsub.s32 0, %v1590
  %v1592 = vrot.slane %v377, %v1591
  %v1593 = vmul.f32 %v1545, %v1564
  %v1594 = vmul.f32 %v1546, %v1568
  %v1595 = vmul.f32 %v1547, %v1572
  %v1596 = vmul.f32 %v1548, %v1576
  %v1597 = vmul.f32 %v1549, %v1580
  %v1598 = vmul.f32 %v1550, %v1584
  %v1599 = vmul.f32 %v1551, %v1588
  %v1600 = vmul.f32 %v1560, %v1592
  %1601 = vrot.lane.b32.xlu0 %v346, 119
  %v1602 = vpop.permute.xlu0 %1601
  %1603 = vrot.lane.b32.xlu0 %v347, 119
  %v1604 = vpop.permute.xlu0 %1603
  %1605 = vrot.lane.b32.xlu0 %v348, 119
  %v1606 = vpop.permute.xlu0 %1605
  %1607 = vrot.lane.b32.xlu0 %v349, 119
  %v1608 = vpop.permute.xlu0 %1607
  %1609 = vrot.lane.b32.xlu0 %v350, 119
  %v1610 = vpop.permute.xlu0 %1609
  %1611 = vrot.lane.b32.xlu0 %v351, 119
  %v1612 = vpop.permute.xlu0 %1611
  %1613 = vrot.lane.b32.xlu0 %v352, 119
  %v1614 = vpop.permute.xlu0 %1613
  %1615 = vrot.lane.b32.xlu0 %v353, 119
  %v1616 = vpop.permute.xlu0 %1615
  %vm1617 = vcmask 973824
  %v1618 = vsel %vm1617, %v1602, %v1604
  %v1619 = vsel %vm1617, %v1604, %v1606
  %v1620 = vsel %vm1617, %v1606, %v1608
  %v1621 = vsel %vm1617, %v1608, %v1610
  %v1622 = vsel %vm1617, %v1610, %v1612
  %v1623 = vsel %vm1617, %v1612, %v1614
  %v1624 = vsel %vm1617, %v1614, %v1616
  %v1633 = vsel %vm1617, %v1616, 0.0
  %v1634 = vlaneseq
  %v1635 = vshrl.u32 %v1634, 7
  %v1636 = vsub.s32 1, %v1635
  %v1637 = vrot.slane %v370, %v1636
  %v1638 = vlaneseq
  %v1639 = vshrl.u32 %v1638, 7
  %v1640 = vsub.s32 1, %v1639
  %v1641 = vrot.slane %v371, %v1640
  %v1642 = vlaneseq
  %v1643 = vshrl.u32 %v1642, 7
  %v1644 = vsub.s32 1, %v1643
  %v1645 = vrot.slane %v372, %v1644
  %v1646 = vlaneseq
  %v1647 = vshrl.u32 %v1646, 7
  %v1648 = vsub.s32 1, %v1647
  %v1649 = vrot.slane %v373, %v1648
  %v1650 = vlaneseq
  %v1651 = vshrl.u32 %v1650, 7
  %v1652 = vsub.s32 1, %v1651
  %v1653 = vrot.slane %v374, %v1652
  %v1654 = vlaneseq
  %v1655 = vshrl.u32 %v1654, 7
  %v1656 = vsub.s32 1, %v1655
  %v1657 = vrot.slane %v375, %v1656
  %v1658 = vlaneseq
  %v1659 = vshrl.u32 %v1658, 7
  %v1660 = vsub.s32 1, %v1659
  %v1661 = vrot.slane %v376, %v1660
  %v1662 = vlaneseq
  %v1663 = vshrl.u32 %v1662, 7
  %v1664 = vsub.s32 1, %v1663
  %v1665 = vrot.slane %v377, %v1664
  %v1666 = vmul.f32 %v1618, %v1637
  %v1667 = vmul.f32 %v1619, %v1641
  %v1668 = vmul.f32 %v1620, %v1645
  %v1669 = vmul.f32 %v1621, %v1649
  %v1670 = vmul.f32 %v1622, %v1653
  %v1671 = vmul.f32 %v1623, %v1657
  %v1672 = vmul.f32 %v1624, %v1661
  %v1673 = vmul.f32 %v1633, %v1665
  %v1675 = vsel %vm410, %v409, 0.0
  %v1676 = vlaneseq
  %v1677 = vshrl.u32 %v1676, 7
  %v1678 = vsub.s32 2, %v1677
  %v1679 = vrot.slane %v370, %v1678
  %v1680 = vlaneseq
  %v1681 = vshrl.u32 %v1680, 7
  %v1682 = vsub.s32 2, %v1681
  %v1683 = vrot.slane %v371, %v1682
  %v1684 = vlaneseq
  %v1685 = vshrl.u32 %v1684, 7
  %v1686 = vsub.s32 2, %v1685
  %v1687 = vrot.slane %v372, %v1686
  %v1688 = vlaneseq
  %v1689 = vshrl.u32 %v1688, 7
  %v1690 = vsub.s32 2, %v1689
  %v1691 = vrot.slane %v373, %v1690
  %v1692 = vlaneseq
  %v1693 = vshrl.u32 %v1692, 7
  %v1694 = vsub.s32 2, %v1693
  %v1695 = vrot.slane %v374, %v1694
  %v1696 = vlaneseq
  %v1697 = vshrl.u32 %v1696, 7
  %v1698 = vsub.s32 2, %v1697
  %v1699 = vrot.slane %v375, %v1698
  %v1700 = vlaneseq
  %v1701 = vshrl.u32 %v1700, 7
  %v1702 = vsub.s32 2, %v1701
  %v1703 = vrot.slane %v376, %v1702
  %v1704 = vlaneseq
  %v1705 = vshrl.u32 %v1704, 7
  %v1706 = vsub.s32 2, %v1705
  %v1707 = vrot.slane %v377, %v1706
  %v1708 = vmul.f32 %v411, %v1679
  %v1709 = vmul.f32 %v412, %v1683
  %v1710 = vmul.f32 %v413, %v1687
  %v1711 = vmul.f32 %v414, %v1691
  %v1712 = vmul.f32 %v415, %v1695
  %v1713 = vmul.f32 %v416, %v1699
  %v1714 = vmul.f32 %v417, %v1703
  %v1715 = vmul.f32 %v1675, %v1707
  %v1717 = vsel %vm483, %v482, 0.0
  %v1718 = vlaneseq
  %v1719 = vshrl.u32 %v1718, 7
  %v1720 = vsub.s32 3, %v1719
  %v1721 = vrot.slane %v370, %v1720
  %v1722 = vlaneseq
  %v1723 = vshrl.u32 %v1722, 7
  %v1724 = vsub.s32 3, %v1723
  %v1725 = vrot.slane %v371, %v1724
  %v1726 = vlaneseq
  %v1727 = vshrl.u32 %v1726, 7
  %v1728 = vsub.s32 3, %v1727
  %v1729 = vrot.slane %v372, %v1728
  %v1730 = vlaneseq
  %v1731 = vshrl.u32 %v1730, 7
  %v1732 = vsub.s32 3, %v1731
  %v1733 = vrot.slane %v373, %v1732
  %v1734 = vlaneseq
  %v1735 = vshrl.u32 %v1734, 7
  %v1736 = vsub.s32 3, %v1735
  %v1737 = vrot.slane %v374, %v1736
  %v1738 = vlaneseq
  %v1739 = vshrl.u32 %v1738, 7
  %v1740 = vsub.s32 3, %v1739
  %v1741 = vrot.slane %v375, %v1740
  %v1742 = vlaneseq
  %v1743 = vshrl.u32 %v1742, 7
  %v1744 = vsub.s32 3, %v1743
  %v1745 = vrot.slane %v376, %v1744
  %v1746 = vlaneseq
  %v1747 = vshrl.u32 %v1746, 7
  %v1748 = vsub.s32 3, %v1747
  %v1749 = vrot.slane %v377, %v1748
  %v1750 = vmul.f32 %v484, %v1721
  %v1751 = vmul.f32 %v485, %v1725
  %v1752 = vmul.f32 %v486, %v1729
  %v1753 = vmul.f32 %v487, %v1733
  %v1754 = vmul.f32 %v488, %v1737
  %v1755 = vmul.f32 %v489, %v1741
  %v1756 = vmul.f32 %v490, %v1745
  %v1757 = vmul.f32 %v1717, %v1749
  %v1759 = vsel %vm556, %v555, 0.0
  %v1760 = vlaneseq
  %v1761 = vshrl.u32 %v1760, 7
  %v1762 = vsub.s32 4, %v1761
  %v1763 = vrot.slane %v370, %v1762
  %v1764 = vlaneseq
  %v1765 = vshrl.u32 %v1764, 7
  %v1766 = vsub.s32 4, %v1765
  %v1767 = vrot.slane %v371, %v1766
  %v1768 = vlaneseq
  %v1769 = vshrl.u32 %v1768, 7
  %v1770 = vsub.s32 4, %v1769
  %v1771 = vrot.slane %v372, %v1770
  %v1772 = vlaneseq
  %v1773 = vshrl.u32 %v1772, 7
  %v1774 = vsub.s32 4, %v1773
  %v1775 = vrot.slane %v373, %v1774
  %v1776 = vlaneseq
  %v1777 = vshrl.u32 %v1776, 7
  %v1778 = vsub.s32 4, %v1777
  %v1779 = vrot.slane %v374, %v1778
  %v1780 = vlaneseq
  %v1781 = vshrl.u32 %v1780, 7
  %v1782 = vsub.s32 4, %v1781
  %v1783 = vrot.slane %v375, %v1782
  %v1784 = vlaneseq
  %v1785 = vshrl.u32 %v1784, 7
  %v1786 = vsub.s32 4, %v1785
  %v1787 = vrot.slane %v376, %v1786
  %v1788 = vlaneseq
  %v1789 = vshrl.u32 %v1788, 7
  %v1790 = vsub.s32 4, %v1789
  %v1791 = vrot.slane %v377, %v1790
  %v1792 = vmul.f32 %v557, %v1763
  %v1793 = vmul.f32 %v558, %v1767
  %v1794 = vmul.f32 %v559, %v1771
  %v1795 = vmul.f32 %v560, %v1775
  %v1796 = vmul.f32 %v561, %v1779
  %v1797 = vmul.f32 %v562, %v1783
  %v1798 = vmul.f32 %v563, %v1787
  %v1799 = vmul.f32 %v1759, %v1791
  %v1801 = vsel %vm629, %v628, 0.0
  %v1802 = vlaneseq
  %v1803 = vshrl.u32 %v1802, 7
  %v1804 = vsub.s32 5, %v1803
  %v1805 = vrot.slane %v370, %v1804
  %v1806 = vlaneseq
  %v1807 = vshrl.u32 %v1806, 7
  %v1808 = vsub.s32 5, %v1807
  %v1809 = vrot.slane %v371, %v1808
  %v1810 = vlaneseq
  %v1811 = vshrl.u32 %v1810, 7
  %v1812 = vsub.s32 5, %v1811
  %v1813 = vrot.slane %v372, %v1812
  %v1814 = vlaneseq
  %v1815 = vshrl.u32 %v1814, 7
  %v1816 = vsub.s32 5, %v1815
  %v1817 = vrot.slane %v373, %v1816
  %v1818 = vlaneseq
  %v1819 = vshrl.u32 %v1818, 7
  %v1820 = vsub.s32 5, %v1819
  %v1821 = vrot.slane %v374, %v1820
  %v1822 = vlaneseq
  %v1823 = vshrl.u32 %v1822, 7
  %v1824 = vsub.s32 5, %v1823
  %v1825 = vrot.slane %v375, %v1824
  %v1826 = vlaneseq
  %v1827 = vshrl.u32 %v1826, 7
  %v1828 = vsub.s32 5, %v1827
  %v1829 = vrot.slane %v376, %v1828
  %v1830 = vlaneseq
  %v1831 = vshrl.u32 %v1830, 7
  %v1832 = vsub.s32 5, %v1831
  %v1833 = vrot.slane %v377, %v1832
  %v1834 = vmul.f32 %v630, %v1805
  %v1835 = vmul.f32 %v631, %v1809
  %v1836 = vmul.f32 %v632, %v1813
  %v1837 = vmul.f32 %v633, %v1817
  %v1838 = vmul.f32 %v634, %v1821
  %v1839 = vmul.f32 %v635, %v1825
  %v1840 = vmul.f32 %v636, %v1829
  %v1841 = vmul.f32 %v1801, %v1833
  %v1843 = vsel %vm702, %v701, 0.0
  %v1844 = vlaneseq
  %v1845 = vshrl.u32 %v1844, 7
  %v1846 = vsub.s32 6, %v1845
  %v1847 = vrot.slane %v370, %v1846
  %v1848 = vlaneseq
  %v1849 = vshrl.u32 %v1848, 7
  %v1850 = vsub.s32 6, %v1849
  %v1851 = vrot.slane %v371, %v1850
  %v1852 = vlaneseq
  %v1853 = vshrl.u32 %v1852, 7
  %v1854 = vsub.s32 6, %v1853
  %v1855 = vrot.slane %v372, %v1854
  %v1856 = vlaneseq
  %v1857 = vshrl.u32 %v1856, 7
  %v1858 = vsub.s32 6, %v1857
  %v1859 = vrot.slane %v373, %v1858
  %v1860 = vlaneseq
  %v1861 = vshrl.u32 %v1860, 7
  %v1862 = vsub.s32 6, %v1861
  %v1863 = vrot.slane %v374, %v1862
  %v1864 = vlaneseq
  %v1865 = vshrl.u32 %v1864, 7
  %v1866 = vsub.s32 6, %v1865
  %v1867 = vrot.slane %v375, %v1866
  %v1868 = vlaneseq
  %v1869 = vshrl.u32 %v1868, 7
  %v1870 = vsub.s32 6, %v1869
  %v1871 = vrot.slane %v376, %v1870
  %v1872 = vlaneseq
  %v1873 = vshrl.u32 %v1872, 7
  %v1874 = vsub.s32 6, %v1873
  %v1875 = vrot.slane %v377, %v1874
  %v1876 = vmul.f32 %v703, %v1847
  %v1877 = vmul.f32 %v704, %v1851
  %v1878 = vmul.f32 %v705, %v1855
  %v1879 = vmul.f32 %v706, %v1859
  %v1880 = vmul.f32 %v707, %v1863
  %v1881 = vmul.f32 %v708, %v1867
  %v1882 = vmul.f32 %v709, %v1871
  %v1883 = vmul.f32 %v1843, %v1875
  %v1885 = vsel %vm775, %v774, 0.0
  %v1886 = vlaneseq
  %v1887 = vshrl.u32 %v1886, 7
  %v1888 = vsub.s32 7, %v1887
  %v1889 = vrot.slane %v370, %v1888
  %v1890 = vlaneseq
  %v1891 = vshrl.u32 %v1890, 7
  %v1892 = vsub.s32 7, %v1891
  %v1893 = vrot.slane %v371, %v1892
  %v1894 = vlaneseq
  %v1895 = vshrl.u32 %v1894, 7
  %v1896 = vsub.s32 7, %v1895
  %v1897 = vrot.slane %v372, %v1896
  %v1898 = vlaneseq
  %v1899 = vshrl.u32 %v1898, 7
  %v1900 = vsub.s32 7, %v1899
  %v1901 = vrot.slane %v373, %v1900
  %v1902 = vlaneseq
  %v1903 = vshrl.u32 %v1902, 7
  %v1904 = vsub.s32 7, %v1903
  %v1905 = vrot.slane %v374, %v1904
  %v1906 = vlaneseq
  %v1907 = vshrl.u32 %v1906, 7
  %v1908 = vsub.s32 7, %v1907
  %v1909 = vrot.slane %v375, %v1908
  %v1910 = vlaneseq
  %v1911 = vshrl.u32 %v1910, 7
  %v1912 = vsub.s32 7, %v1911
  %v1913 = vrot.slane %v376, %v1912
  %v1914 = vlaneseq
  %v1915 = vshrl.u32 %v1914, 7
  %v1916 = vsub.s32 7, %v1915
  %v1917 = vrot.slane %v377, %v1916
  %v1918 = vmul.f32 %v776, %v1889
  %v1919 = vmul.f32 %v777, %v1893
  %v1920 = vmul.f32 %v778, %v1897
  %v1921 = vmul.f32 %v779, %v1901
  %v1922 = vmul.f32 %v780, %v1905
  %v1923 = vmul.f32 %v781, %v1909
  %v1924 = vmul.f32 %v782, %v1913
  %v1925 = vmul.f32 %v1885, %v1917
  %v1927 = vsel %vm848, %v847, 0.0
  %v1928 = vlaneseq
  %v1929 = vshrl.u32 %v1928, 7
  %v1930 = vsub.s32 0, %v1929
  %v1931 = vrot.slane %v378, %v1930
  %v1932 = vlaneseq
  %v1933 = vshrl.u32 %v1932, 7
  %v1934 = vsub.s32 0, %v1933
  %v1935 = vrot.slane %v379, %v1934
  %v1936 = vlaneseq
  %v1937 = vshrl.u32 %v1936, 7
  %v1938 = vsub.s32 0, %v1937
  %v1939 = vrot.slane %v380, %v1938
  %v1940 = vlaneseq
  %v1941 = vshrl.u32 %v1940, 7
  %v1942 = vsub.s32 0, %v1941
  %v1943 = vrot.slane %v381, %v1942
  %v1944 = vlaneseq
  %v1945 = vshrl.u32 %v1944, 7
  %v1946 = vsub.s32 0, %v1945
  %v1947 = vrot.slane %v382, %v1946
  %v1948 = vlaneseq
  %v1949 = vshrl.u32 %v1948, 7
  %v1950 = vsub.s32 0, %v1949
  %v1951 = vrot.slane %v383, %v1950
  %v1952 = vlaneseq
  %v1953 = vshrl.u32 %v1952, 7
  %v1954 = vsub.s32 0, %v1953
  %v1955 = vrot.slane %v384, %v1954
  %v1956 = vlaneseq
  %v1957 = vshrl.u32 %v1956, 7
  %v1958 = vsub.s32 0, %v1957
  %v1959 = vrot.slane %v385, %v1958
  %v1960 = vmul.f32 %v849, %v1931
  %v1961 = vmul.f32 %v850, %v1935
  %v1962 = vmul.f32 %v851, %v1939
  %v1963 = vmul.f32 %v852, %v1943
  %v1964 = vmul.f32 %v853, %v1947
  %v1965 = vmul.f32 %v854, %v1951
  %v1966 = vmul.f32 %v855, %v1955
  %v1967 = vmul.f32 %v1927, %v1959
  %v1969 = vsel %vm921, %v920, 0.0
  %v1970 = vlaneseq
  %v1971 = vshrl.u32 %v1970, 7
  %v1972 = vsub.s32 1, %v1971
  %v1973 = vrot.slane %v378, %v1972
  %v1974 = vlaneseq
  %v1975 = vshrl.u32 %v1974, 7
  %v1976 = vsub.s32 1, %v1975
  %v1977 = vrot.slane %v379, %v1976
  %v1978 = vlaneseq
  %v1979 = vshrl.u32 %v1978, 7
  %v1980 = vsub.s32 1, %v1979
  %v1981 = vrot.slane %v380, %v1980
  %v1982 = vlaneseq
  %v1983 = vshrl.u32 %v1982, 7
  %v1984 = vsub.s32 1, %v1983
  %v1985 = vrot.slane %v381, %v1984
  %v1986 = vlaneseq
  %v1987 = vshrl.u32 %v1986, 7
  %v1988 = vsub.s32 1, %v1987
  %v1989 = vrot.slane %v382, %v1988
  %v1990 = vlaneseq
  %v1991 = vshrl.u32 %v1990, 7
  %v1992 = vsub.s32 1, %v1991
  %v1993 = vrot.slane %v383, %v1992
  %v1994 = vlaneseq
  %v1995 = vshrl.u32 %v1994, 7
  %v1996 = vsub.s32 1, %v1995
  %v1997 = vrot.slane %v384, %v1996
  %v1998 = vlaneseq
  %v1999 = vshrl.u32 %v1998, 7
  %v2000 = vsub.s32 1, %v1999
  %v2001 = vrot.slane %v385, %v2000
  %v2002 = vmul.f32 %v922, %v1973
  %v2003 = vmul.f32 %v923, %v1977
  %v2004 = vmul.f32 %v924, %v1981
  %v2005 = vmul.f32 %v925, %v1985
  %v2006 = vmul.f32 %v926, %v1989
  %v2007 = vmul.f32 %v927, %v1993
  %v2008 = vmul.f32 %v928, %v1997
  %v2009 = vmul.f32 %v1969, %v2001
  %v2011 = vsel %vm994, %v993, 0.0
  %v2012 = vlaneseq
  %v2013 = vshrl.u32 %v2012, 7
  %v2014 = vsub.s32 2, %v2013
  %v2015 = vrot.slane %v378, %v2014
  %v2016 = vlaneseq
  %v2017 = vshrl.u32 %v2016, 7
  %v2018 = vsub.s32 2, %v2017
  %v2019 = vrot.slane %v379, %v2018
  %v2020 = vlaneseq
  %v2021 = vshrl.u32 %v2020, 7
  %v2022 = vsub.s32 2, %v2021
  %v2023 = vrot.slane %v380, %v2022
  %v2024 = vlaneseq
  %v2025 = vshrl.u32 %v2024, 7
  %v2026 = vsub.s32 2, %v2025
  %v2027 = vrot.slane %v381, %v2026
  %v2028 = vlaneseq
  %v2029 = vshrl.u32 %v2028, 7
  %v2030 = vsub.s32 2, %v2029
  %v2031 = vrot.slane %v382, %v2030
  %v2032 = vlaneseq
  %v2033 = vshrl.u32 %v2032, 7
  %v2034 = vsub.s32 2, %v2033
  %v2035 = vrot.slane %v383, %v2034
  %v2036 = vlaneseq
  %v2037 = vshrl.u32 %v2036, 7
  %v2038 = vsub.s32 2, %v2037
  %v2039 = vrot.slane %v384, %v2038
  %v2040 = vlaneseq
  %v2041 = vshrl.u32 %v2040, 7
  %v2042 = vsub.s32 2, %v2041
  %v2043 = vrot.slane %v385, %v2042
  %v2044 = vmul.f32 %v995, %v2015
  %v2045 = vmul.f32 %v996, %v2019
  %v2046 = vmul.f32 %v997, %v2023
  %v2047 = vmul.f32 %v998, %v2027
  %v2048 = vmul.f32 %v999, %v2031
  %v2049 = vmul.f32 %v1000, %v2035
  %v2050 = vmul.f32 %v1001, %v2039
  %v2051 = vmul.f32 %v2011, %v2043
  %v2052 = vpack.c.bf16 %v532, %v459
  %v2053 = vpack.c.bf16 %v533, %v460
  %v2054 = vpack.c.bf16 %v534, %v461
  %v2055 = vpack.c.bf16 %v535, %v462
  %v2056 = vpack.c.bf16 %v536, %v463
  %v2057 = vpack.c.bf16 %v537, %v464
  %v2058 = vpack.c.bf16 %v538, %v465
  %v2059 = vpack.c.bf16 %v539, %v466
  %v2060 = vpack.c.bf16 %v678, %v605
  %v2061 = vpack.c.bf16 %v679, %v606
  %v2062 = vpack.c.bf16 %v680, %v607
  %v2063 = vpack.c.bf16 %v681, %v608
  %v2064 = vpack.c.bf16 %v682, %v609
  %v2065 = vpack.c.bf16 %v683, %v610
  %v2066 = vpack.c.bf16 %v684, %v611
  %v2067 = vpack.c.bf16 %v685, %v612
  %v2068 = vpack.c.bf16 %v824, %v751
  %v2069 = vpack.c.bf16 %v825, %v752
  %v2070 = vpack.c.bf16 %v826, %v753
  %v2071 = vpack.c.bf16 %v827, %v754
  %v2072 = vpack.c.bf16 %v828, %v755
  %v2073 = vpack.c.bf16 %v829, %v756
  %v2074 = vpack.c.bf16 %v830, %v757
  %v2075 = vpack.c.bf16 %v831, %v758
  %v2076 = vpack.c.bf16 %v970, %v897
  %v2077 = vpack.c.bf16 %v971, %v898
  %v2078 = vpack.c.bf16 %v972, %v899
  %v2079 = vpack.c.bf16 %v973, %v900
  %v2080 = vpack.c.bf16 %v974, %v901
  %v2081 = vpack.c.bf16 %v975, %v902
  %v2082 = vpack.c.bf16 %v976, %v903
  %v2083 = vpack.c.bf16 %v977, %v904
  %v2084 = vpack.c.bf16 %v1116, %v1043
  %v2085 = vpack.c.bf16 %v1117, %v1044
  %v2086 = vpack.c.bf16 %v1118, %v1045
  %v2087 = vpack.c.bf16 %v1119, %v1046
  %v2088 = vpack.c.bf16 %v1120, %v1047
  %v2089 = vpack.c.bf16 %v1121, %v1048
  %v2090 = vpack.c.bf16 %v1122, %v1049
  %v2091 = vpack.c.bf16 %v1123, %v1050
  %v2092 = vpack.c.bf16 %v1261, %v1188
  %v2093 = vpack.c.bf16 %v1262, %v1189
  %v2094 = vpack.c.bf16 %v1263, %v1190
  %v2095 = vpack.c.bf16 %v1264, %v1191
  %v2096 = vpack.c.bf16 %v1265, %v1192
  %v2097 = vpack.c.bf16 %v1266, %v1193
  %v2098 = vpack.c.bf16 %v1267, %v1194
  %v2099 = vpack.c.bf16 %v1268, %v1195
  %v2100 = vpack.c.bf16 %v1374, %v1334
  %v2101 = vpack.c.bf16 %v1375, %v1335
  %v2102 = vpack.c.bf16 %v1376, %v1336
  %v2103 = vpack.c.bf16 %v1377, %v1337
  %v2104 = vpack.c.bf16 %v1378, %v1338
  %v2105 = vpack.c.bf16 %v1379, %v1339
  %v2106 = vpack.c.bf16 %v1380, %v1340
  %v2107 = vpack.c.bf16 %v1381, %v1341
  %v2108 = vpack.c.bf16 %v1520, %v1447
  %v2109 = vpack.c.bf16 %v1521, %v1448
  %v2110 = vpack.c.bf16 %v1522, %v1449
  %v2111 = vpack.c.bf16 %v1523, %v1450
  %v2112 = vpack.c.bf16 %v1524, %v1451
  %v2113 = vpack.c.bf16 %v1525, %v1452
  %v2114 = vpack.c.bf16 %v1526, %v1453
  %v2115 = vpack.c.bf16 %v1527, %v1454
  %v2116 = vpack.c.bf16 %v1666, %v1593
  %v2117 = vpack.c.bf16 %v1667, %v1594
  %v2118 = vpack.c.bf16 %v1668, %v1595
  %v2119 = vpack.c.bf16 %v1669, %v1596
  %v2120 = vpack.c.bf16 %v1670, %v1597
  %v2121 = vpack.c.bf16 %v1671, %v1598
  %v2122 = vpack.c.bf16 %v1672, %v1599
  %v2123 = vpack.c.bf16 %v1673, %v1600
  %v2124 = vpack.c.bf16 %v1750, %v1708
  %v2125 = vpack.c.bf16 %v1751, %v1709
  %v2126 = vpack.c.bf16 %v1752, %v1710
  %v2127 = vpack.c.bf16 %v1753, %v1711
  %v2128 = vpack.c.bf16 %v1754, %v1712
  %v2129 = vpack.c.bf16 %v1755, %v1713
  %v2130 = vpack.c.bf16 %v1756, %v1714
  %v2131 = vpack.c.bf16 %v1757, %v1715
  %v2132 = vpack.c.bf16 %v1834, %v1792
  %v2133 = vpack.c.bf16 %v1835, %v1793
  %v2134 = vpack.c.bf16 %v1836, %v1794
  %v2135 = vpack.c.bf16 %v1837, %v1795
  %v2136 = vpack.c.bf16 %v1838, %v1796
  %v2137 = vpack.c.bf16 %v1839, %v1797
  %v2138 = vpack.c.bf16 %v1840, %v1798
  %v2139 = vpack.c.bf16 %v1841, %v1799
  %v2140 = vpack.c.bf16 %v1918, %v1876
  %v2141 = vpack.c.bf16 %v1919, %v1877
  %v2142 = vpack.c.bf16 %v1920, %v1878
  %v2143 = vpack.c.bf16 %v1921, %v1879
  %v2144 = vpack.c.bf16 %v1922, %v1880
  %v2145 = vpack.c.bf16 %v1923, %v1881
  %v2146 = vpack.c.bf16 %v1924, %v1882
  %v2147 = vpack.c.bf16 %v1925, %v1883
  %v2148 = vpack.c.bf16 %v2002, %v1960
  %v2149 = vpack.c.bf16 %v2003, %v1961
  %v2150 = vpack.c.bf16 %v2004, %v1962
  %v2151 = vpack.c.bf16 %v2005, %v1963
  %v2152 = vpack.c.bf16 %v2006, %v1964
  %v2153 = vpack.c.bf16 %v2007, %v1965
  %v2154 = vpack.c.bf16 %v2008, %v1966
  %v2155 = vpack.c.bf16 %v2009, %v1967
  %v2156 = vpack.c.bf16 %v2044, %v2044
  %v2157 = vpack.c.bf16 %v2045, %v2045
  %v2158 = vpack.c.bf16 %v2046, %v2046
  %v2159 = vpack.c.bf16 %v2047, %v2047
  %v2160 = vpack.c.bf16 %v2048, %v2048
  %v2161 = vpack.c.bf16 %v2049, %v2049
  %v2162 = vpack.c.bf16 %v2050, %v2050
  %v2163 = vpack.c.bf16 %v2051, %v2051
  %v2164 = vld [vmem:[%s5] sm:$0xff]
  %v2165 = vld [vmem:[%s6] sm:$0xff]
  %2167 = vset.pattern.permute.xlu0 0
  %2168 = vperm.xlu0 %2167, %v2165
  %v2169 = vpop.permute.xlu0 %2168
  %v2172 = vunpack.c.l.b16 %v2164
  %v2173 = vunpack.c.h.b16 %v2164
  %v2174 = vpack.c.b16 %v2172, %v2172
  %v2175 = vpack.c.b16 %v2173, %v2173
  %vm2177 = vcmask 719872
  %v2179 = vsel %vm2177, %v2175, 0
  %v2182 = vsel %vm87, %v2156, 0
  %v2185 = vsel %vm87, %v2157, 0
  %v2188 = vsel %vm87, %v2158, 0
  %v2191 = vsel %vm87, %v2159, 0
  %v2194 = vsel %vm87, %v2160, 0
  %v2197 = vsel %vm87, %v2161, 0
  %v2200 = vsel %vm87, %v2162, 0
  %v2203 = vsel %vm87, %v2163, 0
  %2205 = vmatprep.subr.bf16.mxu0 %v2053
  %2206 = vmatpush1.bf16.msra.mxu0 %v2052
  %2207 = vmatprep.subr.bf16.mxu0 %v2061
  %2208 = vmatpush1.bf16.msra.mxu0 %v2060
  %2209 = vmatprep.subr.bf16.mxu0 %v2069
  %2210 = vmatpush1.bf16.msra.mxu0 %v2068
  %2211 = vmatprep.subr.bf16.mxu0 %v2077
  %2212 = vmatpush1.bf16.msra.mxu0 %v2076
  %2213 = vmatprep.subr.bf16.mxu0 %v2085
  %2214 = vmatpush1.bf16.msra.mxu0 %v2084
  %2215 = vmatprep.subr.bf16.mxu0 %v2093
  %2216 = vmatpush1.bf16.msra.mxu0 %v2092
  %2217 = vmatprep.subr.bf16.mxu0 %v2101
  %2218 = vmatpush1.bf16.msra.mxu0 %v2100
  %2219 = vmatprep.subr.bf16.mxu0 %v2109
  %2220 = vmatpush1.bf16.msra.mxu0 %v2108
  %2221 = vmatprep.subr.bf16.mxu0 %v2117
  %2222 = vmatpush1.bf16.msra.mxu0 %v2116
  %2223 = vmatprep.subr.bf16.mxu0 %v2125
  %2224 = vmatpush1.bf16.msra.mxu0 %v2124
  %2225 = vmatprep.subr.bf16.mxu0 %v2133
  %2226 = vmatpush1.bf16.msra.mxu0 %v2132
  %2227 = vmatprep.subr.bf16.mxu0 %v2141
  %2228 = vmatpush1.bf16.msra.mxu0 %v2140
  %2229 = vmatprep.subr.bf16.mxu0 %v2149
  %2230 = vmatpush1.bf16.msra.mxu0 %v2148
  %2231 = vmatprep.subr.bf16.mxu0 %v2185
  %2232 = vmatpush1.bf16.msra.mxu0 %v2182
  %2233 = vmatprep.subr.bf16.mxu0 0
  %2234 = vmatpush1.bf16.msra.mxu0 0
  %2235 = vmatprep.subr.bf16.mxu0 0
  %2236 = vmatpush1.bf16.msra.mxu0 0
  %2237 = vmatprep.mubr.bf16.mxu0 %v2179
  %2238 = vmatmul.mubr.bf16.gmra.mrb[0].mxu0 %v2174
  %v2239 = vpop.f32.mrb[0].mxu0
  %v2240 = vadd.f32 %v2169, %v2239
  %v2241 = vpop.f32.mrb[0].mxu0
  %v2242 = vadd.f32 %v2169, %v2241
  %v2243 = vpop.f32.mrb[0].mxu0
  %v2244 = vpop.f32.mrb[0].mxu0
  %2245 = vdwg.mxu0
  %2246 = vmatprep.subr.bf16.mxu0 %v2055
  %2247 = vmatpush1.bf16.msra.mxu0 %v2054
  %2248 = vmatprep.subr.bf16.mxu0 %v2063
  %2249 = vmatpush1.bf16.msra.mxu0 %v2062
  %2250 = vmatprep.subr.bf16.mxu0 %v2071
  %2251 = vmatpush1.bf16.msra.mxu0 %v2070
  %2252 = vmatprep.subr.bf16.mxu0 %v2079
  %2253 = vmatpush1.bf16.msra.mxu0 %v2078
  %2254 = vmatprep.subr.bf16.mxu0 %v2087
  %2255 = vmatpush1.bf16.msra.mxu0 %v2086
  %2256 = vmatprep.subr.bf16.mxu0 %v2095
  %2257 = vmatpush1.bf16.msra.mxu0 %v2094
  %2258 = vmatprep.subr.bf16.mxu0 %v2103
  %2259 = vmatpush1.bf16.msra.mxu0 %v2102
  %2260 = vmatprep.subr.bf16.mxu0 %v2111
  %2261 = vmatpush1.bf16.msra.mxu0 %v2110
  %2262 = vmatprep.subr.bf16.mxu0 %v2119
  %2263 = vmatpush1.bf16.msra.mxu0 %v2118
  %2264 = vmatprep.subr.bf16.mxu0 %v2127
  %2265 = vmatpush1.bf16.msra.mxu0 %v2126
  %2266 = vmatprep.subr.bf16.mxu0 %v2135
  %2267 = vmatpush1.bf16.msra.mxu0 %v2134
  %2268 = vmatprep.subr.bf16.mxu0 %v2143
  %2269 = vmatpush1.bf16.msra.mxu0 %v2142
  %2270 = vmatprep.subr.bf16.mxu0 %v2151
  %2271 = vmatpush1.bf16.msra.mxu0 %v2150
  %2272 = vmatprep.subr.bf16.mxu0 %v2191
  %2273 = vmatpush1.bf16.msra.mxu0 %v2188
  %2274 = vmatprep.subr.bf16.mxu0 0
  %2275 = vmatpush1.bf16.msra.mxu0 0
  %2276 = vmatprep.subr.bf16.mxu0 0
  %2277 = vmatpush1.bf16.msra.mxu0 0
  %2278 = vmatprep.mubr.bf16.mxu0 %v2179
  %2279 = vmatmul.mubr.bf16.gmra.mrb[0].mxu0 %v2174
  %v2280 = vpop.f32.mrb[0].mxu0
  %v2281 = vadd.f32 %v2169, %v2280
  %v2282 = vpop.f32.mrb[0].mxu0
  %v2283 = vadd.f32 %v2169, %v2282
  %v2284 = vpop.f32.mrb[0].mxu0
  %v2285 = vpop.f32.mrb[0].mxu0
  %2286 = vdwg.mxu0
  %2287 = vmatprep.subr.bf16.mxu0 %v2057
  %2288 = vmatpush1.bf16.msra.mxu0 %v2056
  %2289 = vmatprep.subr.bf16.mxu0 %v2065
  %2290 = vmatpush1.bf16.msra.mxu0 %v2064
  %2291 = vmatprep.subr.bf16.mxu0 %v2073
  %2292 = vmatpush1.bf16.msra.mxu0 %v2072
  %2293 = vmatprep.subr.bf16.mxu0 %v2081
  %2294 = vmatpush1.bf16.msra.mxu0 %v2080
  %2295 = vmatprep.subr.bf16.mxu0 %v2089
  %2296 = vmatpush1.bf16.msra.mxu0 %v2088
  %2297 = vmatprep.subr.bf16.mxu0 %v2097
  %2298 = vmatpush1.bf16.msra.mxu0 %v2096
  %2299 = vmatprep.subr.bf16.mxu0 %v2105
  %2300 = vmatpush1.bf16.msra.mxu0 %v2104
  %2301 = vmatprep.subr.bf16.mxu0 %v2113
  %2302 = vmatpush1.bf16.msra.mxu0 %v2112
  %2303 = vmatprep.subr.bf16.mxu0 %v2121
  %2304 = vmatpush1.bf16.msra.mxu0 %v2120
  %2305 = vmatprep.subr.bf16.mxu0 %v2129
  %2306 = vmatpush1.bf16.msra.mxu0 %v2128
  %2307 = vmatprep.subr.bf16.mxu0 %v2137
  %2308 = vmatpush1.bf16.msra.mxu0 %v2136
  %2309 = vmatprep.subr.bf16.mxu0 %v2145
  %2310 = vmatpush1.bf16.msra.mxu0 %v2144
  %2311 = vmatprep.subr.bf16.mxu0 %v2153
  %2312 = vmatpush1.bf16.msra.mxu0 %v2152
  %2313 = vmatprep.subr.bf16.mxu0 %v2197
  %2314 = vmatpush1.bf16.msra.mxu0 %v2194
  %2315 = vmatprep.subr.bf16.mxu0 0
  %2316 = vmatpush1.bf16.msra.mxu0 0
  %2317 = vmatprep.subr.bf16.mxu0 0
  %2318 = vmatpush1.bf16.msra.mxu0 0
  %2319 = vmatprep.mubr.bf16.mxu0 %v2179
  %2320 = vmatmul.mubr.bf16.gmra.mrb[0].mxu0 %v2174
  %v2321 = vpop.f32.mrb[0].mxu0
  %v2322 = vadd.f32 %v2169, %v2321
  %v2323 = vpop.f32.mrb[0].mxu0
  %v2324 = vadd.f32 %v2169, %v2323
  %v2325 = vpop.f32.mrb[0].mxu0
  %v2326 = vpop.f32.mrb[0].mxu0
  %2327 = vdwg.mxu0
  %2328 = vmatprep.subr.bf16.mxu0 %v2059
  %2329 = vmatpush1.bf16.msra.mxu0 %v2058
  %2330 = vmatprep.subr.bf16.mxu0 %v2067
  %2331 = vmatpush1.bf16.msra.mxu0 %v2066
  %2332 = vmatprep.subr.bf16.mxu0 %v2075
  %2333 = vmatpush1.bf16.msra.mxu0 %v2074
  %2334 = vmatprep.subr.bf16.mxu0 %v2083
  %2335 = vmatpush1.bf16.msra.mxu0 %v2082
  %2336 = vmatprep.subr.bf16.mxu0 %v2091
  %2337 = vmatpush1.bf16.msra.mxu0 %v2090
  %2338 = vmatprep.subr.bf16.mxu0 %v2099
  %2339 = vmatpush1.bf16.msra.mxu0 %v2098
  %2340 = vmatprep.subr.bf16.mxu0 %v2107
  %2341 = vmatpush1.bf16.msra.mxu0 %v2106
  %2342 = vmatprep.subr.bf16.mxu0 %v2115
  %2343 = vmatpush1.bf16.msra.mxu0 %v2114
  %2344 = vmatprep.subr.bf16.mxu0 %v2123
  %2345 = vmatpush1.bf16.msra.mxu0 %v2122
  %2346 = vmatprep.subr.bf16.mxu0 %v2131
  %2347 = vmatpush1.bf16.msra.mxu0 %v2130
  %2348 = vmatprep.subr.bf16.mxu0 %v2139
  %2349 = vmatpush1.bf16.msra.mxu0 %v2138
  %2350 = vmatprep.subr.bf16.mxu0 %v2147
  %2351 = vmatpush1.bf16.msra.mxu0 %v2146
  %2352 = vmatprep.subr.bf16.mxu0 %v2155
  %2353 = vmatpush1.bf16.msra.mxu0 %v2154
  %2354 = vmatprep.subr.bf16.mxu0 %v2203
  %2355 = vmatpush1.bf16.msra.mxu0 %v2200
  %2356 = vmatprep.subr.bf16.mxu0 0
  %2357 = vmatpush1.bf16.msra.mxu0 0
  %2358 = vmatprep.subr.bf16.mxu0 0
  %2359 = vmatpush1.bf16.msra.mxu0 0
  %2360 = vmatprep.mubr.bf16.mxu0 %v2179
  %2361 = vmatmul.mubr.bf16.gmra.mrb[0].mxu0 %v2174
  %v2362 = vpop.f32.mrb[0].mxu0
  %v2363 = vadd.f32 %v2169, %v2362
  %v2364 = vpop.f32.mrb[0].mxu0
  %v2365 = vadd.f32 %v2169, %v2364
  %v2366 = vpop.f32.mrb[0].mxu0
  %v2367 = vpop.f32.mrb[0].mxu0
  %2368 = vdwg.mxu0
  %v2369 = vld [vmem:[%s7] sm:$0xff]
  %v2370 = vld [vmem:[%s8] sm:$0xff]
  %v2371 = vadd.f32 %v2240, %v2242
  %v2372 = vadd.f32 %v2371, %v2281
  %v2373 = vadd.f32 %v2372, %v2283
  %v2374 = vadd.f32 %v2373, %v2322
  %v2375 = vadd.f32 %v2374, %v2324
  %v2376 = vadd.f32 %v2375, %v2363
  %v2377 = vadd.f32 %v2376, %v2365
  %2378 = vadd.xlane.f32.xlu0 %v2377
  %v2379 = vpop.xlane.xlu0 %2378
  %v2380 = vmul.f32 %v2379, %v287
  %v2381 = vsub.f32 %v2240, %v2380
  %v2382 = vsub.f32 %v2242, %v2380
  %v2383 = vsub.f32 %v2281, %v2380
  %v2384 = vsub.f32 %v2283, %v2380
  %v2385 = vsub.f32 %v2322, %v2380
  %v2386 = vsub.f32 %v2324, %v2380
  %v2387 = vsub.f32 %v2363, %v2380
  %v2388 = vsub.f32 %v2365, %v2380
  %v2389 = vmul.f32 %v2381, %v2381
  %v2390 = vmul.f32 %v2382, %v2382
  %v2391 = vmul.f32 %v2383, %v2383
  %v2392 = vmul.f32 %v2384, %v2384
  %v2393 = vmul.f32 %v2385, %v2385
  %v2394 = vmul.f32 %v2386, %v2386
  %v2395 = vmul.f32 %v2387, %v2387
  %v2396 = vmul.f32 %v2388, %v2388
  %v2397 = vadd.f32 %v2389, %v2390
  %v2398 = vadd.f32 %v2397, %v2391
  %v2399 = vadd.f32 %v2398, %v2392
  %v2400 = vadd.f32 %v2399, %v2393
  %v2401 = vadd.f32 %v2400, %v2394
  %v2402 = vadd.f32 %v2401, %v2395
  %v2403 = vadd.f32 %v2402, %v2396
  %2404 = vadd.xlane.f32.xlu0 %v2403
  %v2405 = vpop.xlane.xlu0 %2404
  %v2406 = vmul.f32 %v2405, %v287
  %v2407 = vadd.f32 %v2406, 1e-05
  %v2408 = vrsqrt.pop %v2407
  %v2409 = vmul.f32 %v2369, %v2408
  %v2410 = vmul.f32 %v2409, %v2380
  %v2411 = vsub.f32 %v2370, %v2410
  %2413 = vset.pattern.permute.xlu0 0
  %2414 = vperm.xlu0 %2413, %v2409
  %v2415 = vpop.permute.xlu0 %2414
  %v2417 = vmul.f32 %v2240, %v2415
  %v2418 = vmul.f32 %v2242, %v2415
  %v2419 = vmul.f32 %v2281, %v2415
  %v2420 = vmul.f32 %v2283, %v2415
  %v2421 = vmul.f32 %v2322, %v2415
  %v2422 = vmul.f32 %v2324, %v2415
  %v2423 = vmul.f32 %v2363, %v2415
  %v2424 = vmul.f32 %v2365, %v2415
  %2426 = vset.pattern.permute.xlu0 0
  %2427 = vperm.xlu0 %2426, %v2411
  %v2428 = vpop.permute.xlu0 %2427
  %v2430 = vadd.f32 %v2417, %v2428
  %v2431 = vadd.f32 %v2418, %v2428
  %v2432 = vadd.f32 %v2419, %v2428
  %v2433 = vadd.f32 %v2420, %v2428
  %v2434 = vadd.f32 %v2421, %v2428
  %v2435 = vadd.f32 %v2422, %v2428
  %v2436 = vadd.f32 %v2423, %v2428
  %v2437 = vadd.f32 %v2424, %v2428
  %v2438 = vmax.f32 %v2430, 0.0
  %v2439 = vmax.f32 %v2431, 0.0
  %v2440 = vmax.f32 %v2432, 0.0
  %v2441 = vmax.f32 %v2433, 0.0
  %v2442 = vmax.f32 %v2434, 0.0
  %v2443 = vmax.f32 %v2435, 0.0
  %v2444 = vmax.f32 %v2436, 0.0
  %v2445 = vmax.f32 %v2437, 0.0
  %v2446 = vld [vmem:[%s9] sm:$0xf]
  %v2447 = vpack.c.bf16 %v2438, %v2438
  %v2448 = vpack.c.bf16 %v2439, %v2439
  %v2449 = vpack.c.bf16 %v2440, %v2440
  %v2450 = vpack.c.bf16 %v2441, %v2441
  %v2451 = vpack.c.bf16 %v2442, %v2442
  %v2452 = vpack.c.bf16 %v2443, %v2443
  %v2453 = vpack.c.bf16 %v2444, %v2444
  %v2454 = vpack.c.bf16 %v2445, %v2445
  %v2455 = vld [vmem:[%s10] sm:$0xff]
  %2457 = vset.pattern.permute.xlu0 0
  %2458 = vperm.xlu0 %2457, %v2455
  %v2459 = vpop.permute.xlu0 %2458
  %v2462 = vsel %vm83, %v2446, 0
  %v2465 = vsel %vm87, %v2447, 0
  %v2468 = vsel %vm87, %v2448, 0
  %v2471 = vsel %vm87, %v2449, 0
  %v2474 = vsel %vm87, %v2450, 0
  %v2477 = vsel %vm87, %v2451, 0
  %v2480 = vsel %vm87, %v2452, 0
  %v2483 = vsel %vm87, %v2453, 0
  %v2486 = vsel %vm87, %v2454, 0
  %2488 = vmatprep.subr.bf16.mxu0 %v2468
  %2489 = vmatpush1.bf16.msra.mxu0 %v2465
  %2490 = vmatprep.subr.bf16.mxu0 0
  %2491 = vmatpush1.bf16.msra.mxu0 0
  %2492 = vmatprep.subr.bf16.mxu0 0
  %2493 = vmatpush1.bf16.msra.mxu0 0
  %2494 = vmatprep.subr.bf16.mxu0 0
  %2495 = vmatpush1.bf16.msra.mxu0 0
  %2496 = vmatprep.subr.bf16.mxu0 0
  %2497 = vmatpush1.bf16.msra.mxu0 0
  %2498 = vmatprep.subr.bf16.mxu0 0
  %2499 = vmatpush1.bf16.msra.mxu0 0
  %2500 = vmatprep.subr.bf16.mxu0 0
  %2501 = vmatpush1.bf16.msra.mxu0 0
  %2502 = vmatprep.subr.bf16.mxu0 0
  %2503 = vmatpush1.bf16.msra.mxu0 0
  %2504 = vmatprep.subr.bf16.mxu0 0
  %2505 = vmatpush1.bf16.msra.mxu0 0
  %2506 = vmatprep.subr.bf16.mxu0 0
  %2507 = vmatpush1.bf16.msra.mxu0 0
  %2508 = vmatprep.subr.bf16.mxu0 0
  %2509 = vmatpush1.bf16.msra.mxu0 0
  %2510 = vmatprep.subr.bf16.mxu0 0
  %2511 = vmatpush1.bf16.msra.mxu0 0
  %2512 = vmatprep.subr.bf16.mxu0 0
  %2513 = vmatpush1.bf16.msra.mxu0 0
  %2514 = vmatprep.subr.bf16.mxu0 0
  %2515 = vmatpush1.bf16.msra.mxu0 0
  %2516 = vmatprep.subr.bf16.mxu0 0
  %2517 = vmatpush1.bf16.msra.mxu0 0
  %2518 = vmatprep.subr.bf16.mxu0 0
  %2519 = vmatpush1.bf16.msra.mxu0 0
  %2520 = vmatprep.mubr.bf16.mxu0 0
  %2521 = vmatmul.mubr.bf16.gmra.mrb[0].mxu0 %v2462
  %v2522 = vpop.f32.mrb[0].mxu0
  %v2523 = vadd.f32 %v2459, %v2522
  %v2524 = vpop.f32.mrb[0].mxu0
  %v2525 = vadd.f32 %v2459, %v2524
  %v2526 = vpop.f32.mrb[0].mxu0
  %v2527 = vpop.f32.mrb[0].mxu0
  %2528 = vdwg.mxu0
  %2529 = vmatprep.subr.bf16.mxu0 %v2474
  %2530 = vmatpush1.bf16.msra.mxu0 %v2471
  %2531 = vmatprep.subr.bf16.mxu0 0
  %2532 = vmatpush1.bf16.msra.mxu0 0
  %2533 = vmatprep.subr.bf16.mxu0 0
  %2534 = vmatpush1.bf16.msra.mxu0 0
  %2535 = vmatprep.subr.bf16.mxu0 0
  %2536 = vmatpush1.bf16.msra.mxu0 0
  %2537 = vmatprep.subr.bf16.mxu0 0
  %2538 = vmatpush1.bf16.msra.mxu0 0
  %2539 = vmatprep.subr.bf16.mxu0 0
  %2540 = vmatpush1.bf16.msra.mxu0 0
  %2541 = vmatprep.subr.bf16.mxu0 0
  %2542 = vmatpush1.bf16.msra.mxu0 0
  %2543 = vmatprep.subr.bf16.mxu0 0
  %2544 = vmatpush1.bf16.msra.mxu0 0
  %2545 = vmatprep.subr.bf16.mxu0 0
  %2546 = vmatpush1.bf16.msra.mxu0 0
  %2547 = vmatprep.subr.bf16.mxu0 0
  %2548 = vmatpush1.bf16.msra.mxu0 0
  %2549 = vmatprep.subr.bf16.mxu0 0
  %2550 = vmatpush1.bf16.msra.mxu0 0
  %2551 = vmatprep.subr.bf16.mxu0 0
  %2552 = vmatpush1.bf16.msra.mxu0 0
  %2553 = vmatprep.subr.bf16.mxu0 0
  %2554 = vmatpush1.bf16.msra.mxu0 0
  %2555 = vmatprep.subr.bf16.mxu0 0
  %2556 = vmatpush1.bf16.msra.mxu0 0
  %2557 = vmatprep.subr.bf16.mxu0 0
  %2558 = vmatpush1.bf16.msra.mxu0 0
  %2559 = vmatprep.subr.bf16.mxu0 0
  %2560 = vmatpush1.bf16.msra.mxu0 0
  %2561 = vmatprep.mubr.bf16.mxu0 0
  %2562 = vmatmul.mubr.bf16.gmra.mrb[0].mxu0 %v2462
  %v2563 = vpop.f32.mrb[0].mxu0
  %v2564 = vadd.f32 %v2459, %v2563
  %v2565 = vpop.f32.mrb[0].mxu0
  %v2566 = vadd.f32 %v2459, %v2565
  %v2567 = vpop.f32.mrb[0].mxu0
  %v2568 = vpop.f32.mrb[0].mxu0
  %2569 = vdwg.mxu0
  %2570 = vmatprep.subr.bf16.mxu0 %v2480
  %2571 = vmatpush1.bf16.msra.mxu0 %v2477
  %2572 = vmatprep.subr.bf16.mxu0 0
  %2573 = vmatpush1.bf16.msra.mxu0 0
  %2574 = vmatprep.subr.bf16.mxu0 0
  %2575 = vmatpush1.bf16.msra.mxu0 0
  %2576 = vmatprep.subr.bf16.mxu0 0
  %2577 = vmatpush1.bf16.msra.mxu0 0
  %2578 = vmatprep.subr.bf16.mxu0 0
  %2579 = vmatpush1.bf16.msra.mxu0 0
  %2580 = vmatprep.subr.bf16.mxu0 0
  %2581 = vmatpush1.bf16.msra.mxu0 0
  %2582 = vmatprep.subr.bf16.mxu0 0
  %2583 = vmatpush1.bf16.msra.mxu0 0
  %2584 = vmatprep.subr.bf16.mxu0 0
  %2585 = vmatpush1.bf16.msra.mxu0 0
  %2586 = vmatprep.subr.bf16.mxu0 0
  %2587 = vmatpush1.bf16.msra.mxu0 0
  %2588 = vmatprep.subr.bf16.mxu0 0
  %2589 = vmatpush1.bf16.msra.mxu0 0
  %2590 = vmatprep.subr.bf16.mxu0 0
  %2591 = vmatpush1.bf16.msra.mxu0 0
  %2592 = vmatprep.subr.bf16.mxu0 0
  %2593 = vmatpush1.bf16.msra.mxu0 0
  %2594 = vmatprep.subr.bf16.mxu0 0
  %2595 = vmatpush1.bf16.msra.mxu0 0
  %2596 = vmatprep.subr.bf16.mxu0 0
  %2597 = vmatpush1.bf16.msra.mxu0 0
  %2598 = vmatprep.subr.bf16.mxu0 0
  %2599 = vmatpush1.bf16.msra.mxu0 0
  %2600 = vmatprep.subr.bf16.mxu0 0
  %2601 = vmatpush1.bf16.msra.mxu0 0
  %2602 = vmatprep.mubr.bf16.mxu0 0
  %2603 = vmatmul.mubr.bf16.gmra.mrb[0].mxu0 %v2462
  %v2604 = vpop.f32.mrb[0].mxu0
  %v2605 = vadd.f32 %v2459, %v2604
  %v2606 = vpop.f32.mrb[0].mxu0
  %v2607 = vadd.f32 %v2459, %v2606
  %v2608 = vpop.f32.mrb[0].mxu0
  %v2609 = vpop.f32.mrb[0].mxu0
  %2610 = vdwg.mxu0
  %2611 = vmatprep.subr.bf16.mxu0 %v2486
  %2612 = vmatpush1.bf16.msra.mxu0 %v2483
  %2613 = vmatprep.subr.bf16.mxu0 0
  %2614 = vmatpush1.bf16.msra.mxu0 0
  %2615 = vmatprep.subr.bf16.mxu0 0
  %2616 = vmatpush1.bf16.msra.mxu0 0
  %2617 = vmatprep.subr.bf16.mxu0 0
  %2618 = vmatpush1.bf16.msra.mxu0 0
  %2619 = vmatprep.subr.bf16.mxu0 0
  %2620 = vmatpush1.bf16.msra.mxu0 0
  %2621 = vmatprep.subr.bf16.mxu0 0
  %2622 = vmatpush1.bf16.msra.mxu0 0
  %2623 = vmatprep.subr.bf16.mxu0 0
  %2624 = vmatpush1.bf16.msra.mxu0 0
  %2625 = vmatprep.subr.bf16.mxu0 0
  %2626 = vmatpush1.bf16.msra.mxu0 0
  %2627 = vmatprep.subr.bf16.mxu0 0
  %2628 = vmatpush1.bf16.msra.mxu0 0
  %2629 = vmatprep.subr.bf16.mxu0 0
  %2630 = vmatpush1.bf16.msra.mxu0 0
  %2631 = vmatprep.subr.bf16.mxu0 0
  %2632 = vmatpush1.bf16.msra.mxu0 0
  %2633 = vmatprep.subr.bf16.mxu0 0
  %2634 = vmatpush1.bf16.msra.mxu0 0
  %2635 = vmatprep.subr.bf16.mxu0 0
  %2636 = vmatpush1.bf16.msra.mxu0 0
  %2637 = vmatprep.subr.bf16.mxu0 0
  %2638 = vmatpush1.bf16.msra.mxu0 0
  %2639 = vmatprep.subr.bf16.mxu0 0
  %2640 = vmatpush1.bf16.msra.mxu0 0
  %2641 = vmatprep.subr.bf16.mxu0 0
  %2642 = vmatpush1.bf16.msra.mxu0 0
  %2643 = vmatprep.mubr.bf16.mxu0 0
  %2644 = vmatmul.mubr.bf16.gmra.mrb[0].mxu0 %v2462
  %v2645 = vpop.f32.mrb[0].mxu0
  %v2646 = vadd.f32 %v2459, %v2645
  %v2647 = vpop.f32.mrb[0].mxu0
  %v2648 = vadd.f32 %v2459, %v2647
  %v2649 = vpop.f32.mrb[0].mxu0
  %v2650 = vpop.f32.mrb[0].mxu0
  %2651 = vdwg.mxu0
  %v2652 = vadd.f32 %v2523, %v2525
  %v2653 = vadd.f32 %v2652, %v2564
  %v2654 = vadd.f32 %v2653, %v2566
  %2655 = vadd.xlane.f32.xlu0 %v2654
  %v2656 = vpop.xlane.xlu0 %2655
  %v2657 = vrcp.pop 512.0
  %v2658 = vmul.f32 %v2656, %v2657
  %v2659 = vadd.f32 %v2605, %v2607
  %v2660 = vadd.f32 %v2659, %v2646
  %v2661 = vadd.f32 %v2660, %v2648
  %2662 = vadd.xlane.f32.xlu0 %v2661
  %v2663 = vpop.xlane.xlu0 %2662
  %v2664 = vmul.f32 %v2663, %v2657
  %v2665 = vsel %vm1285, %v2658, %v2664
  %v2666 = vld [vmem:[%s11] sm:$0x3]
  %v2667 = vld [vmem:[%s12] sm:$0x3]
  %2669 = vset.pattern.permute.xlu0 0
  %2670 = vperm.xlu0 %2669, %v2667
  %v2671 = vpop.permute.xlu0 %2670
  %v2674 = vsel %vm83, %v2666, 0
  %2676 = vmatprep.subr.mxu0 0.0
  %2677 = vmatpush1.msra.mxu0 %v2665
  %2678 = vmatprep.subr.mxu0 0.0
  %2679 = vmatpush1.msra.mxu0 0.0
  %2680 = vmatprep.subr.mxu0 0.0
  %2681 = vmatpush1.msra.mxu0 0.0
  %2682 = vmatprep.subr.mxu0 0.0
  %2683 = vmatpush1.msra.mxu0 0.0
  %2684 = vmatprep.subr.mxu0 0.0
  %2685 = vmatpush1.msra.mxu0 0.0
  %2686 = vmatprep.subr.mxu0 0.0
  %2687 = vmatpush1.msra.mxu0 0.0
  %2688 = vmatprep.subr.mxu0 0.0
  %2689 = vmatpush1.msra.mxu0 0.0
  %2690 = vmatprep.subr.mxu0 0.0
  %2691 = vmatpush1.msra.mxu0 0.0
  %2692 = vmatprep.subr.mxu0 0.0
  %2693 = vmatpush1.msra.mxu0 0.0
  %2694 = vmatprep.subr.mxu0 0.0
  %2695 = vmatpush1.msra.mxu0 0.0
  %2696 = vmatprep.subr.mxu0 0.0
  %2697 = vmatpush1.msra.mxu0 0.0
  %2698 = vmatprep.subr.mxu0 0.0
  %2699 = vmatpush1.msra.mxu0 0.0
  %2700 = vmatprep.subr.mxu0 0.0
  %2701 = vmatpush1.msra.mxu0 0.0
  %2702 = vmatprep.subr.mxu0 0.0
  %2703 = vmatpush1.msra.mxu0 0.0
  %2704 = vmatprep.subr.mxu0 0.0
  %2705 = vmatpush1.msra.mxu0 0.0
  %2706 = vmatprep.subr.mxu0 0.0
  %2707 = vmatpush1.msra.mxu0 0.0
  %2708 = vmatprep.subr.mxu0 0.0
  %2709 = vmatpush1.msra.mxu0 0.0
  %2710 = vmatprep.subr.mxu0 0.0
  %2711 = vmatpush1.msra.mxu0 0.0
  %2712 = vmatprep.subr.mxu0 0.0
  %2713 = vmatpush1.msra.mxu0 0.0
  %2714 = vmatprep.subr.mxu0 0.0
  %2715 = vmatpush1.msra.mxu0 0.0
  %2716 = vmatprep.subr.mxu0 0.0
  %2717 = vmatpush1.msra.mxu0 0.0
  %2718 = vmatprep.subr.mxu0 0.0
  %2719 = vmatpush1.msra.mxu0 0.0
  %2720 = vmatprep.subr.mxu0 0.0
  %2721 = vmatpush1.msra.mxu0 0.0
  %2722 = vmatprep.subr.mxu0 0.0
  %2723 = vmatpush1.msra.mxu0 0.0
  %2724 = vmatprep.subr.mxu0 0.0
  %2725 = vmatpush1.msra.mxu0 0.0
  %2726 = vmatprep.subr.mxu0 0.0
  %2727 = vmatpush1.msra.mxu0 0.0
  %2728 = vmatprep.subr.mxu0 0.0
  %2729 = vmatpush1.msra.mxu0 0.0
  %2730 = vmatprep.subr.mxu0 0.0
  %2731 = vmatpush1.msra.mxu0 0.0
  %2732 = vmatprep.subr.mxu0 0.0
  %2733 = vmatpush1.msra.mxu0 0.0
  %2734 = vmatprep.subr.mxu0 0.0
  %2735 = vmatpush1.msra.mxu0 0.0
  %2736 = vmatprep.subr.mxu0 0.0
  %2737 = vmatpush1.msra.mxu0 0.0
  %2738 = vmatprep.subr.mxu0 0.0
  %2739 = vmatpush1.msra.mxu0 0.0
  %2740 = vmatprep.mubr.f32.mxu0 0.0
  %2741 = vmatmul.mubr.f32.gmra.mrb[0].mxu0 %v2674
  %v2742 = vpop.f32.mrb[0].mxu0
  %v2743 = vadd.f32 %v2671, %v2742
  %v2744 = vpop.f32.mrb[0].mxu0
  %2745 = vdwg.mxu0
  %vm2746 = vcmp.gt.f32.partialorder %v2743, 0.0
  %v2747 = vmul.f32 %v2743, 0.01
  %v2748 = vsel %vm2746, %v2743, %v2747
  %v2749 = vld [vmem:[%s13] sm:$0xff]
  %v2750 = vld [vmem:[%s14] sm:$0xff]
  %2752 = vset.pattern.permute.xlu0 0
  %2753 = vperm.xlu0 %2752, %v2750
  %v2754 = vpop.permute.xlu0 %2753
  %vm2756 = vcmask 15360
  %v2758 = vsel %vm2756, %v2749, 0
  %vm2760 = vcmask 1041408
  %v2762 = vsel %vm2760, %v2748, 0
  %2764 = vmatprep.subr.mxu0 0.0
  %2765 = vmatpush1.msra.mxu0 %v2762
  %2766 = vmatprep.subr.mxu0 0.0
  %2767 = vmatpush1.msra.mxu0 0.0
  %2768 = vmatprep.subr.mxu0 0.0
  %2769 = vmatpush1.msra.mxu0 0.0
  %2770 = vmatprep.subr.mxu0 0.0
  %2771 = vmatpush1.msra.mxu0 0.0
  %2772 = vmatprep.subr.mxu0 0.0
  %2773 = vmatpush1.msra.mxu0 0.0
  %2774 = vmatprep.subr.mxu0 0.0
  %2775 = vmatpush1.msra.mxu0 0.0
  %2776 = vmatprep.subr.mxu0 0.0
  %2777 = vmatpush1.msra.mxu0 0.0
  %2778 = vmatprep.subr.mxu0 0.0
  %2779 = vmatpush1.msra.mxu0 0.0
  %2780 = vmatprep.subr.mxu0 0.0
  %2781 = vmatpush1.msra.mxu0 0.0
  %2782 = vmatprep.subr.mxu0 0.0
  %2783 = vmatpush1.msra.mxu0 0.0
  %2784 = vmatprep.subr.mxu0 0.0
  %2785 = vmatpush1.msra.mxu0 0.0
  %2786 = vmatprep.subr.mxu0 0.0
  %2787 = vmatpush1.msra.mxu0 0.0
  %2788 = vmatprep.subr.mxu0 0.0
  %2789 = vmatpush1.msra.mxu0 0.0
  %2790 = vmatprep.subr.mxu0 0.0
  %2791 = vmatpush1.msra.mxu0 0.0
  %2792 = vmatprep.subr.mxu0 0.0
  %2793 = vmatpush1.msra.mxu0 0.0
  %2794 = vmatprep.subr.mxu0 0.0
  %2795 = vmatpush1.msra.mxu0 0.0
  %2796 = vmatprep.subr.mxu0 0.0
  %2797 = vmatpush1.msra.mxu0 0.0
  %2798 = vmatprep.subr.mxu0 0.0
  %2799 = vmatpush1.msra.mxu0 0.0
  %2800 = vmatprep.subr.mxu0 0.0
  %2801 = vmatpush1.msra.mxu0 0.0
  %2802 = vmatprep.subr.mxu0 0.0
  %2803 = vmatpush1.msra.mxu0 0.0
  %2804 = vmatprep.subr.mxu0 0.0
  %2805 = vmatpush1.msra.mxu0 0.0
  %2806 = vmatprep.subr.mxu0 0.0
  %2807 = vmatpush1.msra.mxu0 0.0
  %2808 = vmatprep.subr.mxu0 0.0
  %2809 = vmatpush1.msra.mxu0 0.0
  %2810 = vmatprep.subr.mxu0 0.0
  %2811 = vmatpush1.msra.mxu0 0.0
  %2812 = vmatprep.subr.mxu0 0.0
  %2813 = vmatpush1.msra.mxu0 0.0
  %2814 = vmatprep.subr.mxu0 0.0
  %2815 = vmatpush1.msra.mxu0 0.0
  %2816 = vmatprep.subr.mxu0 0.0
  %2817 = vmatpush1.msra.mxu0 0.0
  %2818 = vmatprep.subr.mxu0 0.0
  %2819 = vmatpush1.msra.mxu0 0.0
  %2820 = vmatprep.subr.mxu0 0.0
  %2821 = vmatpush1.msra.mxu0 0.0
  %2822 = vmatprep.subr.mxu0 0.0
  %2823 = vmatpush1.msra.mxu0 0.0
  %2824 = vmatprep.subr.mxu0 0.0
  %2825 = vmatpush1.msra.mxu0 0.0
  %2826 = vmatprep.subr.mxu0 0.0
  %2827 = vmatpush1.msra.mxu0 0.0
  %2828 = vmatprep.mubr.f32.mxu0 0.0
  %2829 = vmatmul.mubr.f32.gmra.mrb[0].mxu0 %v2758
  %v2830 = vpop.f32.mrb[0].mxu0
  %v2831 = vadd.f32 %v2754, %v2830
  %v2832 = vpop.f32.mrb[0].mxu0
  %2833 = vdwg.mxu0
  %v2834 = vsub.f32 0.0, %v2831
  %v2835 = vmul.f32 %v2834, 1.442695
  %v2836 = vpow.pop %v2835
  %v2837 = vadd.f32 %v2836, 1.0
  %v2838 = vrcp.pop %v2837
  %v2839 = vmul.f32 1.0, %v2838
  %2841 = vset.pattern.permute.xlu0 0
  %2842 = vperm.xlu0 %2841, %v2839
  %v2843 = vpop.permute.xlu0 %2842
  %2845 = vset.pattern.permute.xlu0 1
  %2846 = vperm.xlu0 %2845, %v2839
  %v2847 = vpop.permute.xlu0 %2846
  %v2849 = vmul.f32 %v2523, %v2843
  %v2850 = vmul.f32 %v2525, %v2843
  %v2851 = vmul.f32 %v2564, %v2843
  %v2852 = vmul.f32 %v2566, %v2843
  %v2853 = vmul.f32 %v2605, %v2847
  %v2854 = vmul.f32 %v2607, %v2847
  %v2855 = vmul.f32 %v2646, %v2847
  %v2856 = vmul.f32 %v2648, %v2847
  %v2857 = vadd.f32 %v60, %v2849
  %v2858 = vadd.f32 %v61, %v2850
  %v2859 = vadd.f32 %v62, %v2851
  %v2860 = vadd.f32 %v63, %v2852
  %v2861 = vadd.f32 %v64, %v2853
  %v2862 = vadd.f32 %v65, %v2854
  %v2863 = vadd.f32 %v66, %v2855
  %v2864 = vadd.f32 %v67, %v2856
  %v2865 = vld [vmem:[%s15] sm:$0xff]
  %v2866 = vld [vmem:[%s16] sm:$0xff]
  %v2867 = vadd.f32 %v2857, %v2858
  %v2868 = vadd.f32 %v2867, %v2859
  %v2869 = vadd.f32 %v2868, %v2860
  %v2870 = vadd.f32 %v2869, %v2861
  %v2871 = vadd.f32 %v2870, %v2862
  %v2872 = vadd.f32 %v2871, %v2863
  %v2873 = vadd.f32 %v2872, %v2864
  %2874 = vadd.xlane.f32.xlu0 %v2873
  %v2875 = vpop.xlane.xlu0 %2874
  %v2876 = vmul.f32 %v2875, %v287
  %v2877 = vsub.f32 %v2857, %v2876
  %v2878 = vsub.f32 %v2858, %v2876
  %v2879 = vsub.f32 %v2859, %v2876
  %v2880 = vsub.f32 %v2860, %v2876
  %v2881 = vsub.f32 %v2861, %v2876
  %v2882 = vsub.f32 %v2862, %v2876
  %v2883 = vsub.f32 %v2863, %v2876
  %v2884 = vsub.f32 %v2864, %v2876
  %v2885 = vmul.f32 %v2877, %v2877
  %v2886 = vmul.f32 %v2878, %v2878
  %v2887 = vmul.f32 %v2879, %v2879
  %v2888 = vmul.f32 %v2880, %v2880
  %v2889 = vmul.f32 %v2881, %v2881
  %v2890 = vmul.f32 %v2882, %v2882
  %v2891 = vmul.f32 %v2883, %v2883
  %v2892 = vmul.f32 %v2884, %v2884
  %v2893 = vadd.f32 %v2885, %v2886
  %v2894 = vadd.f32 %v2893, %v2887
  %v2895 = vadd.f32 %v2894, %v2888
  %v2896 = vadd.f32 %v2895, %v2889
  %v2897 = vadd.f32 %v2896, %v2890
  %v2898 = vadd.f32 %v2897, %v2891
  %v2899 = vadd.f32 %v2898, %v2892
  %2900 = vadd.xlane.f32.xlu0 %v2899
  %v2901 = vpop.xlane.xlu0 %2900
  %v2902 = vmul.f32 %v2901, %v287
  %v2903 = vadd.f32 %v2902, 1e-05
  %v2904 = vrsqrt.pop %v2903
  %v2905 = vmul.f32 %v2865, %v2904
  %v2906 = vmul.f32 %v2905, %v2876
  %v2907 = vsub.f32 %v2866, %v2906
  %2909 = vset.pattern.permute.xlu0 0
  %2910 = vperm.xlu0 %2909, %v2905
  %v2911 = vpop.permute.xlu0 %2910
  %v2913 = vmul.f32 %v2857, %v2911
  %v2914 = vmul.f32 %v2858, %v2911
  %v2915 = vmul.f32 %v2859, %v2911
  %v2916 = vmul.f32 %v2860, %v2911
  %v2917 = vmul.f32 %v2861, %v2911
  %v2918 = vmul.f32 %v2862, %v2911
  %v2919 = vmul.f32 %v2863, %v2911
  %v2920 = vmul.f32 %v2864, %v2911
  %2922 = vset.pattern.permute.xlu0 0
  %2923 = vperm.xlu0 %2922, %v2907
  %v2924 = vpop.permute.xlu0 %2923
  %v2926 = vadd.f32 %v2913, %v2924
  %v2927 = vadd.f32 %v2914, %v2924
  %v2928 = vadd.f32 %v2915, %v2924
  %v2929 = vadd.f32 %v2916, %v2924
  %v2930 = vadd.f32 %v2917, %v2924
  %v2931 = vadd.f32 %v2918, %v2924
  %v2932 = vadd.f32 %v2919, %v2924
  %v2933 = vadd.f32 %v2920, %v2924
  %v2934 = vmax.f32 %v2926, 0.0
  %v2935 = vmax.f32 %v2927, 0.0
  %v2936 = vmax.f32 %v2928, 0.0
  %v2937 = vmax.f32 %v2929, 0.0
  %v2938 = vmax.f32 %v2930, 0.0
  %v2939 = vmax.f32 %v2931, 0.0
  %v2940 = vmax.f32 %v2932, 0.0
  %v2941 = vmax.f32 %v2933, 0.0
  %2942 = vst [vmem:[%s18] sm:$0xff] %v2934
  %2943 = vst [vmem:[%s18 + $0x8] sm:$0xff] %v2935
  %2944 = vst [vmem:[%s18 + $0x10] sm:$0xff] %v2936
  %2945 = vst [vmem:[%s18 + $0x18] sm:$0xff] %v2937
  %2946 = vst [vmem:[%s18 + $0x20] sm:$0xff] %v2938
  %2947 = vst [vmem:[%s18 + $0x28] sm:$0xff] %v2939
  %2948 = vst [vmem:[%s18 + $0x30] sm:$0xff] %v2940
  %2949 = vst [vmem:[%s18 + $0x38] sm:$0xff] %v2941
  // Predicated region
  $region74: #{se_resblock_forward.1} parent=0 // pred_check
    _
  $region75: #{se_resblock_forward.1} parent=0 // pred_check_branch
    %2951 = sbr.rel (0) target = $region77
  $region76: #{se_resblock_forward.1} parent=0 // pred_region
    _
  $region77: #{se_resblock_forward.1} parent=0 // pred_fallthru
    _
  // Predicated region
  $region78: #{se_resblock_forward.1} parent=0 // pred_check
    _
  $region79: #{se_resblock_forward.1} parent=0 // pred_check_branch
    %2953 = sbr.rel (0) target = $region81
  $region80: #{se_resblock_forward.1} parent=0 // pred_region
    _
  $region81: #{se_resblock_forward.1} parent=0 // pred_fallthru
    _

</llo_original>
